<compile_context>
chip_gen: v6e
topology: v6e:2x2x1
jax: 0.10.0
libtpu: 0.0.40
codegen_flags: <defaults>
</compile_context>

<pallas_src>
import jax
import jax.numpy as jnp
from jax.experimental import pallas as pl
from jax.experimental.pallas import tpu as pltpu

TILE_B = 256        # batch rows per grid step (MXU-row friendly on v6e/v7x)
K_PAD = 896         # 784 zero-padded to 7*128 lanes
OUT_PAD = 128       # 10 classes padded to one full lane width (lane-dense store)
NEG_INF = -1e30     # bias for padded (fake) classes -> exp() underflows to 0


def mlp_kernel(x_ref,
               w1_ref, b1_ref,
               w2_ref, b2_ref,
               w3_ref, b3_ref,
               w4_ref, b4_ref,
               out_ref):
    # x_ref: (TILE_B, K_PAD) bf16; weights bf16 in (in, out) layout; biases f32 (1, out).
    x = x_ref[...]

    h = jnp.dot(x, w1_ref[...], preferred_element_type=jnp.float32) + b1_ref[...]
    h = jnp.maximum(h, 0.0)

    h = jnp.dot(h.astype(jnp.bfloat16), w2_ref[...],
                preferred_element_type=jnp.float32) + b2_ref[...]
    h = jnp.maximum(h, 0.0)

    h = jnp.dot(h.astype(jnp.bfloat16), w3_ref[...],
                preferred_element_type=jnp.float32) + b3_ref[...]
    h = jnp.maximum(h, 0.0)

    logits = jnp.dot(h.astype(jnp.bfloat16), w4_ref[...],
                     preferred_element_type=jnp.float32) + b4_ref[...]

    # log_softmax over the last axis; padded classes have bias -1e30 so after the
    # max-shift they contribute exp(~-1e30) = 0 to the sum (real 10 classes only).
    m = jnp.max(logits, axis=-1, keepdims=True)
    shifted = logits - m
    lse = jnp.log(jnp.sum(jnp.exp(shifted), axis=-1, keepdims=True))
    out_ref[...] = shifted - lse


def classifier_forward(x_nchw, params):
    """x_nchw: (B, 1, 28, 28) float32. Returns (B, 10) log-probabilities (f32)."""
    B = x_nchw.shape[0]
    x_flat = x_nchw.reshape(B, -1).astype(jnp.float32)       # (B, 784) like x.view(B, -1)
    in_dim = x_flat.shape[1]                                  # 784

    padded_B = pl.cdiv(B, TILE_B) * TILE_B

    # Zero-pad batch to a multiple of TILE_B and K to 7*128; cast matmul input to bf16.
    x_pad = (jnp.zeros((padded_B, K_PAD), jnp.float32)
             .at[:B, :in_dim].set(x_flat)
             .astype(jnp.bfloat16))

    (w1, b1), (w2, b2), (w3, b3), (w4, b4) = params
    # PyTorch Linear stores W as (out, in); pre-transpose to (in, out) for x @ W.
    w1t = (jnp.zeros((K_PAD, w1.shape[0]), jnp.float32)
           .at[:in_dim, :].set(w1.T)
           .astype(jnp.bfloat16))                             # (896, 256)
    w2t = w2.T.astype(jnp.bfloat16)                           # (256, 128)
    w3t = w3.T.astype(jnp.bfloat16)                           # (128, 64)
    w4t = (jnp.zeros((w4.shape[1], OUT_PAD), jnp.float32)
           .at[:, :w4.shape[0]].set(w4.T)
           .astype(jnp.bfloat16))                             # (64, 128)

    b1r = b1.reshape(1, -1).astype(jnp.float32)
    b2r = b2.reshape(1, -1).astype(jnp.float32)
    b3r = b3.reshape(1, -1).astype(jnp.float32)
    b4r = (jnp.full((1, OUT_PAD), NEG_INF, jnp.float32)
           .at[0, :b4.shape[0]].set(b4.astype(jnp.float32)))  # (1, 128)

    grid = (padded_B // TILE_B,)

    # Weights/biases: constant index_map -> resident across grid steps (DMA once).
    resident = lambda shape: pl.BlockSpec(shape, lambda i: (0, 0))

    out_padded = pl.pallas_call(
        mlp_kernel,
        out_shape=jax.ShapeDtypeStruct((padded_B, OUT_PAD), jnp.float32),
        grid=grid,
        in_specs=[
            pl.BlockSpec((TILE_B, K_PAD), lambda i: (i, 0)),
            resident(w1t.shape), resident(b1r.shape),
            resident(w2t.shape), resident(b2r.shape),
            resident(w3t.shape), resident(b3r.shape),
            resident(w4t.shape), resident(b4r.shape),
        ],
        out_specs=pl.BlockSpec((TILE_B, OUT_PAD), lambda i: (i, 0)),
        compiler_params=pltpu.CompilerParams(
            dimension_semantics=("parallel",)),
    )(x_pad, w1t, b1r, w2t, b2r, w3t, b3r, w4t, b4r)

    return out_padded[:B, :10]


def init_params(key):
    """Deterministic synthetic init matching nn.Linear shapes (out, in)."""
    dims = [(256, 784), (128, 256), (64, 128), (10, 64)]
    params = []
    for (out_d, in_d) in dims:
        kw, kb, key = jax.random.split(key, 3)
        bound = 1.0 / jnp.sqrt(in_d)
        w = jax.random.uniform(kw, (out_d, in_d), jnp.float32, -bound, bound)
        b = jax.random.uniform(kb, (out_d,), jnp.float32, -bound, bound)
        params.append((w, b))
    return params


def reference_forward(x_nchw, params):
    """Pure-JAX f32 reference of the PyTorch module."""
    x = x_nchw.reshape(x_nchw.shape[0], -1).astype(jnp.float32)
    (w1, b1), (w2, b2), (w3, b3), (w4, b4) = params
    h = jnp.maximum(x @ w1.T + b1, 0.0)
    h = jnp.maximum(h @ w2.T + b2, 0.0)
    h = jnp.maximum(h @ w3.T + b3, 0.0)
    logits = h @ w4.T + b4
    return jax.nn.log_softmax(logits, axis=-1)


if __name__ == "__main__":
    key = jax.random.PRNGKey(0)
    kx, kp = jax.random.split(key)

    B = 8
    x = jax.random.normal(kx, (B, 1, 28, 28), jnp.float32)  # NCHW Fashion-MNIST shape
    params = init_params(kp)

    logp = classifier_forward(x, params)
    jax.block_until_ready(logp)

    # Sanity: shape, rows exp-sum to 1, and close to the f32 reference
    # (bf16 matmul operands -> allow a loose tolerance).
    ref = reference_forward(x, params)
    row_sums = jnp.exp(logp).sum(axis=-1)
    assert logp.shape == (B, 10)
    assert jnp.allclose(row_sums, jnp.ones_like(row_sums), atol=1e-3)
    assert jnp.max(jnp.abs(logp - ref)) < 0.1

    print("KERNEL_OK")
</pallas_src>

<mosaic_0001>
module attributes {stable_mosaic.version = 11 : i64} {
  func.func @mlp_kernel(%arg0: i32, %arg1: memref<256x896xbf16, #tpu.memory_space<vmem>>, %arg2: memref<896x256xbf16, #tpu.memory_space<vmem>>, %arg3: memref<1x256xf32, #tpu.memory_space<vmem>>, %arg4: memref<256x128xbf16, #tpu.memory_space<vmem>>, %arg5: memref<1x128xf32, #tpu.memory_space<vmem>>, %arg6: memref<128x64xbf16, #tpu.memory_space<vmem>>, %arg7: memref<1x64xf32, #tpu.memory_space<vmem>>, %arg8: memref<64x128xbf16, #tpu.memory_space<vmem>>, %arg9: memref<1x128xf32, #tpu.memory_space<vmem>>, %arg10: memref<256x128xf32, #tpu.memory_space<vmem>>) attributes {dimension_semantics = [#tpu.dimension_semantics<parallel>], iteration_bounds = array<i64: 1>, scalar_prefetch = 0 : i64, scratch_operands = 0 : i64, tpu.core_type = #tpu.core_type<tc>, window_params = [{transform_indices = @transform_0, window_bounds = array<i64: 256, 896>}, {pipeline_mode = #tpu.pipeline_mode<synchronous>, transform_indices = @transform_1, window_bounds = array<i64: 896, 256>}, {pipeline_mode = #tpu.pipeline_mode<synchronous>, transform_indices = @transform_2, window_bounds = array<i64: 1, 256>}, {pipeline_mode = #tpu.pipeline_mode<synchronous>, transform_indices = @transform_3, window_bounds = array<i64: 256, 128>}, {pipeline_mode = #tpu.pipeline_mode<synchronous>, transform_indices = @transform_4, window_bounds = array<i64: 1, 128>}, {pipeline_mode = #tpu.pipeline_mode<synchronous>, transform_indices = @transform_5, window_bounds = array<i64: 128, 64>}, {pipeline_mode = #tpu.pipeline_mode<synchronous>, transform_indices = @transform_6, window_bounds = array<i64: 1, 64>}, {pipeline_mode = #tpu.pipeline_mode<synchronous>, transform_indices = @transform_7, window_bounds = array<i64: 64, 128>}, {pipeline_mode = #tpu.pipeline_mode<synchronous>, transform_indices = @transform_8, window_bounds = array<i64: 1, 128>}, {transform_indices = @transform_9, window_bounds = array<i64: 256, 128>}]} {
    %c0 = arith.constant 0 : index
    %c0_0 = arith.constant 0 : index
    %0 = vector.load %arg1[%c0, %c0_0] : memref<256x896xbf16, #tpu.memory_space<vmem>>, vector<256x896xbf16>
    %c0_1 = arith.constant 0 : index
    %c0_2 = arith.constant 0 : index
    %1 = vector.load %arg2[%c0_1, %c0_2] : memref<896x256xbf16, #tpu.memory_space<vmem>>, vector<896x256xbf16>
    %cst = arith.constant dense<0.000000e+00> : vector<256x256xf32>
    %2 = tpu.matmul %0, %1, %cst {dimension_numbers = #tpu.dot_dimension_numbers<[1], [0], [0], [1], [0, 0, 1, 1], [], []>} : vector<256x896xbf16>, vector<896x256xbf16>, vector<256x256xf32> -> vector<256x256xf32>
    %c0_3 = arith.constant 0 : index
    %c0_4 = arith.constant 0 : index
    %3 = vector.load %arg3[%c0_3, %c0_4] : memref<1x256xf32, #tpu.memory_space<vmem>>, vector<1x256xf32>
    %4 = vector.broadcast %3 : vector<1x256xf32> to vector<256x256xf32>
    %5 = arith.addf %2, %4 : vector<256x256xf32>
    %cst_5 = arith.constant 0.000000e+00 : f32
    %6 = vector.broadcast %cst_5 : f32 to vector<256x256xf32>
    %7 = arith.maximumf %5, %6 : vector<256x256xf32>
    %8 = arith.truncf %7 : vector<256x256xf32> to vector<256x256xbf16>
    %c0_6 = arith.constant 0 : index
    %c0_7 = arith.constant 0 : index
    %9 = vector.load %arg4[%c0_6, %c0_7] : memref<256x128xbf16, #tpu.memory_space<vmem>>, vector<256x128xbf16>
    %cst_8 = arith.constant dense<0.000000e+00> : vector<256x128xf32>
    %10 = tpu.matmul %8, %9, %cst_8 {dimension_numbers = #tpu.dot_dimension_numbers<[1], [0], [0], [1], [0, 0, 1, 1], [], []>} : vector<256x256xbf16>, vector<256x128xbf16>, vector<256x128xf32> -> vector<256x128xf32>
    %c0_9 = arith.constant 0 : index
    %c0_10 = arith.constant 0 : index
    %11 = vector.load %arg5[%c0_9, %c0_10] : memref<1x128xf32, #tpu.memory_space<vmem>>, vector<1x128xf32>
    %12 = vector.broadcast %11 : vector<1x128xf32> to vector<256x128xf32>
    %13 = arith.addf %10, %12 : vector<256x128xf32>
    %cst_11 = arith.constant 0.000000e+00 : f32
    %14 = vector.broadcast %cst_11 : f32 to vector<256x128xf32>
    %15 = arith.maximumf %13, %14 : vector<256x128xf32>
    %16 = arith.truncf %15 : vector<256x128xf32> to vector<256x128xbf16>
    %c0_12 = arith.constant 0 : index
    %c0_13 = arith.constant 0 : index
    %17 = vector.load %arg6[%c0_12, %c0_13] : memref<128x64xbf16, #tpu.memory_space<vmem>>, vector<128x64xbf16>
    %cst_14 = arith.constant dense<0.000000e+00> : vector<256x64xf32>
    %18 = tpu.matmul %16, %17, %cst_14 {dimension_numbers = #tpu.dot_dimension_numbers<[1], [0], [0], [1], [0, 0, 1, 1], [], []>} : vector<256x128xbf16>, vector<128x64xbf16>, vector<256x64xf32> -> vector<256x64xf32>
    %c0_15 = arith.constant 0 : index
    %c0_16 = arith.constant 0 : index
    %19 = vector.load %arg7[%c0_15, %c0_16] : memref<1x64xf32, #tpu.memory_space<vmem>>, vector<1x64xf32>
    %20 = vector.broadcast %19 : vector<1x64xf32> to vector<256x64xf32>
    %21 = arith.addf %18, %20 : vector<256x64xf32>
    %cst_17 = arith.constant 0.000000e+00 : f32
    %22 = vector.broadcast %cst_17 : f32 to vector<256x64xf32>
    %23 = arith.maximumf %21, %22 : vector<256x64xf32>
    %24 = arith.truncf %23 : vector<256x64xf32> to vector<256x64xbf16>
    %c0_18 = arith.constant 0 : index
    %c0_19 = arith.constant 0 : index
    %25 = vector.load %arg8[%c0_18, %c0_19] : memref<64x128xbf16, #tpu.memory_space<vmem>>, vector<64x128xbf16>
    %cst_20 = arith.constant dense<0.000000e+00> : vector<256x128xf32>
    %26 = tpu.matmul %24, %25, %cst_20 {dimension_numbers = #tpu.dot_dimension_numbers<[1], [0], [0], [1], [0, 0, 1, 1], [], []>} : vector<256x64xbf16>, vector<64x128xbf16>, vector<256x128xf32> -> vector<256x128xf32>
    %c0_21 = arith.constant 0 : index
    %c0_22 = arith.constant 0 : index
    %27 = vector.load %arg9[%c0_21, %c0_22] : memref<1x128xf32, #tpu.memory_space<vmem>>, vector<1x128xf32>
    %28 = vector.broadcast %27 : vector<1x128xf32> to vector<256x128xf32>
    %29 = arith.addf %26, %28 : vector<256x128xf32>
    %cst_23 = arith.constant dense<0xFF800000> : vector<256xf32>
    %30 = vector.multi_reduction <maximumf>, %29, %cst_23 [1] : vector<256x128xf32> to vector<256xf32>
    %31 = vector.shape_cast %30 : vector<256xf32> to vector<256x1xf32>
    %32 = vector.broadcast %31 : vector<256x1xf32> to vector<256x128xf32>
    %33 = arith.subf %29, %32 : vector<256x128xf32>
    %34 = math.exp %33 : vector<256x128xf32>
    %cst_24 = arith.constant dense<0.000000e+00> : vector<256xf32>
    %35 = vector.multi_reduction <add>, %34, %cst_24 [1] : vector<256x128xf32> to vector<256xf32>
    %36 = vector.shape_cast %35 : vector<256xf32> to vector<256x1xf32>
    %37 = math.log %36 : vector<256x1xf32>
    %38 = vector.broadcast %37 : vector<256x1xf32> to vector<256x128xf32>
    %39 = arith.subf %33, %38 : vector<256x128xf32>
    %c0_25 = arith.constant 0 : index
    %c0_26 = arith.constant 0 : index
    %40 = vector.load %arg10[%c0_25, %c0_26] : memref<256x128xf32, #tpu.memory_space<vmem>>, vector<256x128xf32>
    tpu.vector_store %arg10[%c0_25, %c0_26], %39 {strides = array<i32>} : memref<256x128xf32, #tpu.memory_space<vmem>>, vector<256x128xf32>,
    return
  }
  func.func @transform_0(%arg0: i32) -> (i32, i32) {
    %c0_i32 = arith.constant 0 : i32
    %c0_i32_0 = arith.constant 0 : i32
    return %arg0, %c0_i32 : i32, i32
  }
  func.func @transform_1(%arg0: i32) -> (i32, i32) {
    %c0_i32 = arith.constant 0 : i32
    %c0_i32_0 = arith.constant 0 : i32
    %c0_i32_1 = arith.constant 0 : i32
    return %c0_i32, %c0_i32_0 : i32, i32
  }
  func.func @transform_2(%arg0: i32) -> (i32, i32) {
    %c0_i32 = arith.constant 0 : i32
    %c0_i32_0 = arith.constant 0 : i32
    %c0_i32_1 = arith.constant 0 : i32
    return %c0_i32, %c0_i32_0 : i32, i32
  }
  func.func @transform_3(%arg0: i32) -> (i32, i32) {
    %c0_i32 = arith.constant 0 : i32
    %c0_i32_0 = arith.constant 0 : i32
    %c0_i32_1 = arith.constant 0 : i32
    return %c0_i32, %c0_i32_0 : i32, i32
  }
  func.func @transform_4(%arg0: i32) -> (i32, i32) {
    %c0_i32 = arith.constant 0 : i32
    %c0_i32_0 = arith.constant 0 : i32
    %c0_i32_1 = arith.constant 0 : i32
    return %c0_i32, %c0_i32_0 : i32, i32
  }
  func.func @transform_5(%arg0: i32) -> (i32, i32) {
    %c0_i32 = arith.constant 0 : i32
    %c0_i32_0 = arith.constant 0 : i32
    %c0_i32_1 = arith.constant 0 : i32
    return %c0_i32, %c0_i32_0 : i32, i32
  }
  func.func @transform_6(%arg0: i32) -> (i32, i32) {
    %c0_i32 = arith.constant 0 : i32
    %c0_i32_0 = arith.constant 0 : i32
    %c0_i32_1 = arith.constant 0 : i32
    return %c0_i32, %c0_i32_0 : i32, i32
  }
  func.func @transform_7(%arg0: i32) -> (i32, i32) {
    %c0_i32 = arith.constant 0 : i32
    %c0_i32_0 = arith.constant 0 : i32
    %c0_i32_1 = arith.constant 0 : i32
    return %c0_i32, %c0_i32_0 : i32, i32
  }
  func.func @transform_8(%arg0: i32) -> (i32, i32) {
    %c0_i32 = arith.constant 0 : i32
    %c0_i32_0 = arith.constant 0 : i32
    %c0_i32_1 = arith.constant 0 : i32
    return %c0_i32, %c0_i32_0 : i32, i32
  }
  func.func @transform_9(%arg0: i32) -> (i32, i32) {
    %c0_i32 = arith.constant 0 : i32
    %c0_i32_0 = arith.constant 0 : i32
    return %arg0, %c0_i32 : i32, i32
  }
}

</mosaic_0001>

<llo_original>
// kernel: tpu_custom_call.1
$region0: #{tpu_custom_call.1}
  #allocation0 [shape = 'u32[]', space=smem, size = 0x4, offset = 0x4, fixed_abs, tag = 'smem constant byte address 0x4 - core index']
  #allocation1 [shape = 'u32[144,128]{1,0:T(1,128)}', space=vmem, size = 0x12000, scoped, tag = 'internal scratch']
  %s0 = inlined_call_operand.hbm [shape: bf16[256,896], index: 0, kind: input, shape index: {}]
  %s1 = inlined_call_operand.hbm [shape: bf16[896,256], index: 1, kind: input, shape index: {}]
  %s2 = inlined_call_operand.vmem [shape: f32[1,256], index: 2, kind: input, shape index: {}]
  %s3 = inlined_call_operand.hbm [shape: bf16[256,128], index: 3, kind: input, shape index: {}]
  %s4 = inlined_call_operand.vmem [shape: f32[1,128], index: 4, kind: input, shape index: {}]
  %s5 = inlined_call_operand.vmem [shape: bf16[128,64], index: 5, kind: input, shape index: {}]
  %s6 = inlined_call_operand.vmem [shape: f32[1,64], index: 6, kind: input, shape index: {}]
  %s7 = inlined_call_operand.vmem [shape: bf16[64,128], index: 7, kind: input, shape index: {}]
  %s8 = inlined_call_operand.vmem [shape: f32[1,128], index: 8, kind: input, shape index: {}]
  %s9 = inlined_call_operand.hbm [shape: f32[256,128], index: 9, kind: output, shape index: {}]
  %s10 = sld [smem:[#allocation0]]
  $region58: #{tpu_custom_call.1} parent=0
    _
  %s12 = ssub.s32 1, %s10
  %s13 = scalar_select 0, %s12, %s10
  $region1: #{tpu_custom_call.1} parent=0
    #allocation2 [shape = 'u8[458752]{0}', space=vmem, size = 0x70000, scoped, tag = 'input window, operand 0, single buffered']
    #allocation3 [shape = 's32[1]{0}', space=sflag, size = 0x4, scoped, tag = 'scoped memory for tpu_custom_call.1']
    #allocation4 [shape = 's32[1]{0}', space=sflag, size = 0x4, scoped, tag = 'scoped memory for tpu_custom_call.1']
    #allocation5 [shape = 'u8[458752]{0}', space=vmem, size = 0x70000, scoped, tag = 'input window, operand 1, single buffered']
    #allocation6 [shape = 's32[1]{0}', space=sflag, size = 0x4, scoped, tag = 'scoped memory for tpu_custom_call.1']
    #allocation7 [shape = 'u8[65536]{0}', space=vmem, size = 0x10000, scoped, tag = 'input window, operand 3, single buffered']
    #allocation8 [shape = 'u8[131072]{0}', space=vmem, size = 0x20000, scoped, tag = 'output window, operand 0, single buffered']
    %14 = vsyncpa [#allocation3], 0
    %15 = vsyncpa [#allocation6], 0
    %16 = vsyncpa [#allocation4], 0
    // Predicated region
    $region2: #{tpu_custom_call.1} parent=1 // pred_check
      _
    $region3: #{tpu_custom_call.1} parent=1 // pred_check_branch
      %18 = sbr.rel (0) target = $region5
    $region4: #{tpu_custom_call.1} parent=1 // pred_region
      %s20 = ssub.s32 14336, 14336
      %21 = vsyncadd [#allocation3], %s20
      %s22 = sshll.u32 [#allocation2], 4
      %s23 = int_to_ptr.vmem [resolvable:$true] %s22
      %28 = dma.hbm_to_vmem [thread:$0]  %s0, 14336, %s23, [#allocation3], 448, 448, 28
    $region5: #{tpu_custom_call.1} parent=1 // pred_fallthru
      _
    // Predicated region
    $region6: #{tpu_custom_call.1} parent=1 // pred_check
      _
    $region7: #{tpu_custom_call.1} parent=1 // pred_check_branch
      %30 = sbr.rel (0) target = $region9
    $region8: #{tpu_custom_call.1} parent=1 // pred_region
      %s32 = ssub.s32 14336, 14336
      %33 = vsyncadd [#allocation6], %s32
      %s34 = sshll.u32 [#allocation5], 4
      %s35 = int_to_ptr.vmem [resolvable:$true] %s34
      %40 = dma.hbm_to_vmem [thread:$0]  %s1, 14336, %s35, [#allocation6], 128, 128, 8
    $region9: #{tpu_custom_call.1} parent=1 // pred_fallthru
      _
    // Predicated region
    $region10: #{tpu_custom_call.1} parent=1 // pred_check
      _
    $region11: #{tpu_custom_call.1} parent=1 // pred_check_branch
      %42 = sbr.rel (0) target = $region13
    $region12: #{tpu_custom_call.1} parent=1 // pred_region
      _
    $region13: #{tpu_custom_call.1} parent=1 // pred_fallthru
      _
    // Predicated region
    $region14: #{tpu_custom_call.1} parent=1 // pred_check
      _
    $region15: #{tpu_custom_call.1} parent=1 // pred_check_branch
      %44 = sbr.rel (0) target = $region17
    $region16: #{tpu_custom_call.1} parent=1 // pred_region
      %s46 = ssub.s32 2048, 2048
      %47 = vsyncadd [#allocation6], %s46
      %s48 = sshll.u32 [#allocation7], 4
      %s49 = int_to_ptr.vmem [resolvable:$true] %s48
      %54 = dma.hbm_to_vmem [thread:$0]  %s3, 2048, %s49, [#allocation6], 64, 64, 4
    $region17: #{tpu_custom_call.1} parent=1 // pred_fallthru
      _
    // Predicated region
    $region18: #{tpu_custom_call.1} parent=1 // pred_check
      _
    $region19: #{tpu_custom_call.1} parent=1 // pred_check_branch
      %56 = sbr.rel (0) target = $region21
    $region20: #{tpu_custom_call.1} parent=1 // pred_region
      _
    $region21: #{tpu_custom_call.1} parent=1 // pred_fallthru
      _
    // Predicated region
    $region22: #{tpu_custom_call.1} parent=1 // pred_check
      _
    $region23: #{tpu_custom_call.1} parent=1 // pred_check_branch
      %58 = sbr.rel (0) target = $region25
    $region24: #{tpu_custom_call.1} parent=1 // pred_region
      _
    $region25: #{tpu_custom_call.1} parent=1 // pred_fallthru
      _
    // Predicated region
    $region26: #{tpu_custom_call.1} parent=1 // pred_check
      _
    $region27: #{tpu_custom_call.1} parent=1 // pred_check_branch
      %60 = sbr.rel (0) target = $region29
    $region28: #{tpu_custom_call.1} parent=1 // pred_region
      _
    $region29: #{tpu_custom_call.1} parent=1 // pred_fallthru
      _
    // Predicated region
    $region30: #{tpu_custom_call.1} parent=1 // pred_check
      _
    $region31: #{tpu_custom_call.1} parent=1 // pred_check_branch
      %62 = sbr.rel (0) target = $region33
    $region32: #{tpu_custom_call.1} parent=1 // pred_region
      _
    $region33: #{tpu_custom_call.1} parent=1 // pred_fallthru
      _
    // Predicated region
    $region34: #{tpu_custom_call.1} parent=1 // pred_check
      _
    $region35: #{tpu_custom_call.1} parent=1 // pred_check_branch
      %64 = sbr.rel (0) target = $region37
    $region36: #{tpu_custom_call.1} parent=1 // pred_region
      _
    $region37: #{tpu_custom_call.1} parent=1 // pred_fallthru
      _
    // Predicated region
    $region38: #{tpu_custom_call.1} parent=1 // pred_check
      _
    $region39: #{tpu_custom_call.1} parent=1 // pred_check_branch
      %66 = sbr.rel (0) target = $region41
    $region40: #{tpu_custom_call.1} parent=1 // pred_region
      %67 = dma.done [#allocation3], 14336
    $region41: #{tpu_custom_call.1} parent=1 // pred_fallthru
      _
    // Predicated region
    $region42: #{tpu_custom_call.1} parent=1 // pred_check
      _
    $region43: #{tpu_custom_call.1} parent=1 // pred_check_branch
      %69 = sbr.rel (0) target = $region45
    $region44: #{tpu_custom_call.1} parent=1 // pred_region
      %70 = dma.done [#allocation6], 14336
    $region45: #{tpu_custom_call.1} parent=1 // pred_fallthru
      _
    // Predicated region
    $region46: #{tpu_custom_call.1} parent=1 // pred_check
      _
    $region47: #{tpu_custom_call.1} parent=1 // pred_check_branch
      %72 = sbr.rel (0) target = $region49
    $region48: #{tpu_custom_call.1} parent=1 // pred_region
      %73 = dma.done [#allocation6], 2048
    $region49: #{tpu_custom_call.1} parent=1 // pred_fallthru
      _
    %v75 = vld [vmem:[#allocation2] sm:$0xff]
    %v76 = vld [vmem:[#allocation2 + $0x8] sm:$0xff]
    %v77 = vld [vmem:[#allocation2 + $0x10] sm:$0xff]
    %v78 = vld [vmem:[#allocation2 + $0x18] sm:$0xf]
    %v79 = vld [vmem:[#allocation2 + $0x1c] sm:$0xff]
    %v80 = vld [vmem:[#allocation2 + $0x24] sm:$0xff]
    %v81 = vld [vmem:[#allocation2 + $0x2c] sm:$0xff]
    %v82 = vld [vmem:[#allocation2 + $0x34] sm:$0xf]
    %v83 = vld [vmem:[#allocation2 + $0x38] sm:$0xff]
    %v84 = vld [vmem:[#allocation2 + $0x40] sm:$0xff]
    %v85 = vld [vmem:[#allocation2 + $0x48] sm:$0xff]
    %v86 = vld [vmem:[#allocation2 + $0x50] sm:$0xf]
    %v87 = vld [vmem:[#allocation2 + $0x54] sm:$0xff]
    %v88 = vld [vmem:[#allocation2 + $0x5c] sm:$0xff]
    %v89 = vld [vmem:[#allocation2 + $0x64] sm:$0xff]
    %v90 = vld [vmem:[#allocation2 + $0x6c] sm:$0xf]
    %v91 = vld [vmem:[#allocation2 + $0x70] sm:$0xff]
    %v92 = vld [vmem:[#allocation2 + $0x78] sm:$0xff]
    %v93 = vld [vmem:[#allocation2 + $0x80] sm:$0xff]
    %v94 = vld [vmem:[#allocation2 + $0x88] sm:$0xf]
    %v95 = vld [vmem:[#allocation2 + $0x8c] sm:$0xff]
    %v96 = vld [vmem:[#allocation2 + $0x94] sm:$0xff]
    %v97 = vld [vmem:[#allocation2 + $0x9c] sm:$0xff]
    %v98 = vld [vmem:[#allocation2 + $0xa4] sm:$0xf]
    %v99 = vld [vmem:[#allocation2 + $0xa8] sm:$0xff]
    %v100 = vld [vmem:[#allocation2 + $0xb0] sm:$0xff]
    %v101 = vld [vmem:[#allocation2 + $0xb8] sm:$0xff]
    %v102 = vld [vmem:[#allocation2 + $0xc0] sm:$0xf]
    %v103 = vld [vmem:[#allocation2 + $0xc4] sm:$0xff]
    %v104 = vld [vmem:[#allocation2 + $0xcc] sm:$0xff]
    %v105 = vld [vmem:[#allocation2 + $0xd4] sm:$0xff]
    %v106 = vld [vmem:[#allocation2 + $0xdc] sm:$0xf]
    %v107 = vld [vmem:[#allocation2 + $0xe0] sm:$0xff]
    %v108 = vld [vmem:[#allocation2 + $0xe8] sm:$0xff]
    %v109 = vld [vmem:[#allocation2 + $0xf0] sm:$0xff]
    %v110 = vld [vmem:[#allocation2 + $0xf8] sm:$0xf]
    %v111 = vld [vmem:[#allocation2 + $0xfc] sm:$0xff]
    %v112 = vld [vmem:[#allocation2 + $0x104] sm:$0xff]
    %v113 = vld [vmem:[#allocation2 + $0x10c] sm:$0xff]
    %v114 = vld [vmem:[#allocation2 + $0x114] sm:$0xf]
    %v115 = vld [vmem:[#allocation2 + $0x118] sm:$0xff]
    %v116 = vld [vmem:[#allocation2 + $0x120] sm:$0xff]
    %v117 = vld [vmem:[#allocation2 + $0x128] sm:$0xff]
    %v118 = vld [vmem:[#allocation2 + $0x130] sm:$0xf]
    %v119 = vld [vmem:[#allocation2 + $0x134] sm:$0xff]
    %v120 = vld [vmem:[#allocation2 + $0x13c] sm:$0xff]
    %v121 = vld [vmem:[#allocation2 + $0x144] sm:$0xff]
    %v122 = vld [vmem:[#allocation2 + $0x14c] sm:$0xf]
    %v123 = vld [vmem:[#allocation2 + $0x150] sm:$0xff]
    %v124 = vld [vmem:[#allocation2 + $0x158] sm:$0xff]
    %v125 = vld [vmem:[#allocation2 + $0x160] sm:$0xff]
    %v126 = vld [vmem:[#allocation2 + $0x168] sm:$0xf]
    %v127 = vld [vmem:[#allocation2 + $0x16c] sm:$0xff]
    %v128 = vld [vmem:[#allocation2 + $0x174] sm:$0xff]
    %v129 = vld [vmem:[#allocation2 + $0x17c] sm:$0xff]
    %v130 = vld [vmem:[#allocation2 + $0x184] sm:$0xf]
    %v131 = vld [vmem:[#allocation2 + $0x188] sm:$0xff]
    %v132 = vld [vmem:[#allocation2 + $0x190] sm:$0xff]
    %v133 = vld [vmem:[#allocation2 + $0x198] sm:$0xff]
    %v134 = vld [vmem:[#allocation2 + $0x1a0] sm:$0xf]
    %v135 = vld [vmem:[#allocation2 + $0x1a4] sm:$0xff]
    %v136 = vld [vmem:[#allocation2 + $0x1ac] sm:$0xff]
    %v137 = vld [vmem:[#allocation2 + $0x1b4] sm:$0xff]
    %v138 = vld [vmem:[#allocation2 + $0x1bc] sm:$0xf]
    %v139 = vld [vmem:[#allocation2 + $0x1c0] sm:$0xff]
    %v140 = vld [vmem:[#allocation2 + $0x1c8] sm:$0xff]
    %v141 = vld [vmem:[#allocation2 + $0x1d0] sm:$0xff]
    %v142 = vld [vmem:[#allocation2 + $0x1d8] sm:$0xf]
    %v143 = vld [vmem:[#allocation2 + $0x1dc] sm:$0xff]
    %v144 = vld [vmem:[#allocation2 + $0x1e4] sm:$0xff]
    %v145 = vld [vmem:[#allocation2 + $0x1ec] sm:$0xff]
    %v146 = vld [vmem:[#allocation2 + $0x1f4] sm:$0xf]
    %v147 = vld [vmem:[#allocation2 + $0x1f8] sm:$0xff]
    %v148 = vld [vmem:[#allocation2 + $0x200] sm:$0xff]
    %v149 = vld [vmem:[#allocation2 + $0x208] sm:$0xff]
    %v150 = vld [vmem:[#allocation2 + $0x210] sm:$0xf]
    %v151 = vld [vmem:[#allocation2 + $0x214] sm:$0xff]
    %v152 = vld [vmem:[#allocation2 + $0x21c] sm:$0xff]
    %v153 = vld [vmem:[#allocation2 + $0x224] sm:$0xff]
    %v154 = vld [vmem:[#allocation2 + $0x22c] sm:$0xf]
    %v155 = vld [vmem:[#allocation2 + $0x230] sm:$0xff]
    %v156 = vld [vmem:[#allocation2 + $0x238] sm:$0xff]
    %v157 = vld [vmem:[#allocation2 + $0x240] sm:$0xff]
    %v158 = vld [vmem:[#allocation2 + $0x248] sm:$0xf]
    %v159 = vld [vmem:[#allocation2 + $0x24c] sm:$0xff]
    %v160 = vld [vmem:[#allocation2 + $0x254] sm:$0xff]
    %v161 = vld [vmem:[#allocation2 + $0x25c] sm:$0xff]
    %v162 = vld [vmem:[#allocation2 + $0x264] sm:$0xf]
    %v163 = vld [vmem:[#allocation2 + $0x268] sm:$0xff]
    %v164 = vld [vmem:[#allocation2 + $0x270] sm:$0xff]
    %v165 = vld [vmem:[#allocation2 + $0x278] sm:$0xff]
    %v166 = vld [vmem:[#allocation2 + $0x280] sm:$0xf]
    %v167 = vld [vmem:[#allocation2 + $0x284] sm:$0xff]
    %v168 = vld [vmem:[#allocation2 + $0x28c] sm:$0xff]
    %v169 = vld [vmem:[#allocation2 + $0x294] sm:$0xff]
    %v170 = vld [vmem:[#allocation2 + $0x29c] sm:$0xf]
    %v171 = vld [vmem:[#allocation2 + $0x2a0] sm:$0xff]
    %v172 = vld [vmem:[#allocation2 + $0x2a8] sm:$0xff]
    %v173 = vld [vmem:[#allocation2 + $0x2b0] sm:$0xff]
    %v174 = vld [vmem:[#allocation2 + $0x2b8] sm:$0xf]
    %v175 = vld [vmem:[#allocation2 + $0x2bc] sm:$0xff]
    %v176 = vld [vmem:[#allocation2 + $0x2c4] sm:$0xff]
    %v177 = vld [vmem:[#allocation2 + $0x2cc] sm:$0xff]
    %v178 = vld [vmem:[#allocation2 + $0x2d4] sm:$0xf]
    %v179 = vld [vmem:[#allocation2 + $0x2d8] sm:$0xff]
    %v180 = vld [vmem:[#allocation2 + $0x2e0] sm:$0xff]
    %v181 = vld [vmem:[#allocation2 + $0x2e8] sm:$0xff]
    %v182 = vld [vmem:[#allocation2 + $0x2f0] sm:$0xf]
    %v183 = vld [vmem:[#allocation2 + $0x2f4] sm:$0xff]
    %v184 = vld [vmem:[#allocation2 + $0x2fc] sm:$0xff]
    %v185 = vld [vmem:[#allocation2 + $0x304] sm:$0xff]
    %v186 = vld [vmem:[#allocation2 + $0x30c] sm:$0xf]
    %v187 = vld [vmem:[#allocation2 + $0x310] sm:$0xff]
    %v188 = vld [vmem:[#allocation2 + $0x318] sm:$0xff]
    %v189 = vld [vmem:[#allocation2 + $0x320] sm:$0xff]
    %v190 = vld [vmem:[#allocation2 + $0x328] sm:$0xf]
    %v191 = vld [vmem:[#allocation2 + $0x32c] sm:$0xff]
    %v192 = vld [vmem:[#allocation2 + $0x334] sm:$0xff]
    %v193 = vld [vmem:[#allocation2 + $0x33c] sm:$0xff]
    %v194 = vld [vmem:[#allocation2 + $0x344] sm:$0xf]
    %v195 = vld [vmem:[#allocation2 + $0x348] sm:$0xff]
    %v196 = vld [vmem:[#allocation2 + $0x350] sm:$0xff]
    %v197 = vld [vmem:[#allocation2 + $0x358] sm:$0xff]
    %v198 = vld [vmem:[#allocation2 + $0x360] sm:$0xf]
    %v199 = vld [vmem:[#allocation2 + $0x364] sm:$0xff]
    %v200 = vld [vmem:[#allocation2 + $0x36c] sm:$0xff]
    %v201 = vld [vmem:[#allocation2 + $0x374] sm:$0xff]
    %v202 = vld [vmem:[#allocation2 + $0x37c] sm:$0xf]
    %v203 = vld [vmem:[#allocation5] sm:$0xff]
    %v204 = vld [vmem:[#allocation5 + $0x8] sm:$0xff]
    %v205 = vld [vmem:[#allocation5 + $0x10] sm:$0xff]
    %v206 = vld [vmem:[#allocation5 + $0x18] sm:$0xff]
    %v207 = vld [vmem:[#allocation5 + $0x20] sm:$0xff]
    %v208 = vld [vmem:[#allocation5 + $0x28] sm:$0xff]
    %v209 = vld [vmem:[#allocation5 + $0x30] sm:$0xff]
    %v210 = vld [vmem:[#allocation5 + $0x38] sm:$0xff]
    %v211 = vld [vmem:[#allocation5 + $0x40] sm:$0xff]
    %v212 = vld [vmem:[#allocation5 + $0x48] sm:$0xff]
    %v213 = vld [vmem:[#allocation5 + $0x50] sm:$0xff]
    %v214 = vld [vmem:[#allocation5 + $0x58] sm:$0xff]
    %v215 = vld [vmem:[#allocation5 + $0x60] sm:$0xff]
    %v216 = vld [vmem:[#allocation5 + $0x68] sm:$0xff]
    %v217 = vld [vmem:[#allocation5 + $0x70] sm:$0xff]
    %v218 = vld [vmem:[#allocation5 + $0x78] sm:$0xff]
    %v219 = vld [vmem:[#allocation5 + $0x80] sm:$0xff]
    %v220 = vld [vmem:[#allocation5 + $0x88] sm:$0xff]
    %v221 = vld [vmem:[#allocation5 + $0x90] sm:$0xff]
    %v222 = vld [vmem:[#allocation5 + $0x98] sm:$0xff]
    %v223 = vld [vmem:[#allocation5 + $0xa0] sm:$0xff]
    %v224 = vld [vmem:[#allocation5 + $0xa8] sm:$0xff]
    %v225 = vld [vmem:[#allocation5 + $0xb0] sm:$0xff]
    %v226 = vld [vmem:[#allocation5 + $0xb8] sm:$0xff]
    %v227 = vld [vmem:[#allocation5 + $0xc0] sm:$0xff]
    %v228 = vld [vmem:[#allocation5 + $0xc8] sm:$0xff]
    %v229 = vld [vmem:[#allocation5 + $0xd0] sm:$0xff]
    %v230 = vld [vmem:[#allocation5 + $0xd8] sm:$0xff]
    %v231 = vld [vmem:[#allocation5 + $0xe0] sm:$0xff]
    %v232 = vld [vmem:[#allocation5 + $0xe8] sm:$0xff]
    %v233 = vld [vmem:[#allocation5 + $0xf0] sm:$0xff]
    %v234 = vld [vmem:[#allocation5 + $0xf8] sm:$0xff]
    %v235 = vld [vmem:[#allocation5 + $0x100] sm:$0xff]
    %v236 = vld [vmem:[#allocation5 + $0x108] sm:$0xff]
    %v237 = vld [vmem:[#allocation5 + $0x110] sm:$0xff]
    %v238 = vld [vmem:[#allocation5 + $0x118] sm:$0xff]
    %v239 = vld [vmem:[#allocation5 + $0x120] sm:$0xff]
    %v240 = vld [vmem:[#allocation5 + $0x128] sm:$0xff]
    %v241 = vld [vmem:[#allocation5 + $0x130] sm:$0xff]
    %v242 = vld [vmem:[#allocation5 + $0x138] sm:$0xff]
    %v243 = vld [vmem:[#allocation5 + $0x140] sm:$0xff]
    %v244 = vld [vmem:[#allocation5 + $0x148] sm:$0xff]
    %v245 = vld [vmem:[#allocation5 + $0x150] sm:$0xff]
    %v246 = vld [vmem:[#allocation5 + $0x158] sm:$0xff]
    %v247 = vld [vmem:[#allocation5 + $0x160] sm:$0xff]
    %v248 = vld [vmem:[#allocation5 + $0x168] sm:$0xff]
    %v249 = vld [vmem:[#allocation5 + $0x170] sm:$0xff]
    %v250 = vld [vmem:[#allocation5 + $0x178] sm:$0xff]
    %v251 = vld [vmem:[#allocation5 + $0x180] sm:$0xff]
    %v252 = vld [vmem:[#allocation5 + $0x188] sm:$0xff]
    %v253 = vld [vmem:[#allocation5 + $0x190] sm:$0xff]
    %v254 = vld [vmem:[#allocation5 + $0x198] sm:$0xff]
    %v255 = vld [vmem:[#allocation5 + $0x1a0] sm:$0xff]
    %v256 = vld [vmem:[#allocation5 + $0x1a8] sm:$0xff]
    %v257 = vld [vmem:[#allocation5 + $0x1b0] sm:$0xff]
    %v258 = vld [vmem:[#allocation5 + $0x1b8] sm:$0xff]
    %v259 = vld [vmem:[#allocation5 + $0x1c0] sm:$0xff]
    %v260 = vld [vmem:[#allocation5 + $0x1c8] sm:$0xff]
    %v261 = vld [vmem:[#allocation5 + $0x1d0] sm:$0xff]
    %v262 = vld [vmem:[#allocation5 + $0x1d8] sm:$0xff]
    %v263 = vld [vmem:[#allocation5 + $0x1e0] sm:$0xff]
    %v264 = vld [vmem:[#allocation5 + $0x1e8] sm:$0xff]
    %v265 = vld [vmem:[#allocation5 + $0x1f0] sm:$0xff]
    %v266 = vld [vmem:[#allocation5 + $0x1f8] sm:$0xff]
    %v267 = vld [vmem:[#allocation5 + $0x200] sm:$0xff]
    %v268 = vld [vmem:[#allocation5 + $0x208] sm:$0xff]
    %v269 = vld [vmem:[#allocation5 + $0x210] sm:$0xff]
    %v270 = vld [vmem:[#allocation5 + $0x218] sm:$0xff]
    %v271 = vld [vmem:[#allocation5 + $0x220] sm:$0xff]
    %v272 = vld [vmem:[#allocation5 + $0x228] sm:$0xff]
    %v273 = vld [vmem:[#allocation5 + $0x230] sm:$0xff]
    %v274 = vld [vmem:[#allocation5 + $0x238] sm:$0xff]
    %v275 = vld [vmem:[#allocation5 + $0x240] sm:$0xff]
    %v276 = vld [vmem:[#allocation5 + $0x248] sm:$0xff]
    %v277 = vld [vmem:[#allocation5 + $0x250] sm:$0xff]
    %v278 = vld [vmem:[#allocation5 + $0x258] sm:$0xff]
    %v279 = vld [vmem:[#allocation5 + $0x260] sm:$0xff]
    %v280 = vld [vmem:[#allocation5 + $0x268] sm:$0xff]
    %v281 = vld [vmem:[#allocation5 + $0x270] sm:$0xff]
    %v282 = vld [vmem:[#allocation5 + $0x278] sm:$0xff]
    %v283 = vld [vmem:[#allocation5 + $0x280] sm:$0xff]
    %v284 = vld [vmem:[#allocation5 + $0x288] sm:$0xff]
    %v285 = vld [vmem:[#allocation5 + $0x290] sm:$0xff]
    %v286 = vld [vmem:[#allocation5 + $0x298] sm:$0xff]
    %v287 = vld [vmem:[#allocation5 + $0x2a0] sm:$0xff]
    %v288 = vld [vmem:[#allocation5 + $0x2a8] sm:$0xff]
    %v289 = vld [vmem:[#allocation5 + $0x2b0] sm:$0xff]
    %v290 = vld [vmem:[#allocation5 + $0x2b8] sm:$0xff]
    %v291 = vld [vmem:[#allocation5 + $0x2c0] sm:$0xff]
    %v292 = vld [vmem:[#allocation5 + $0x2c8] sm:$0xff]
    %v293 = vld [vmem:[#allocation5 + $0x2d0] sm:$0xff]
    %v294 = vld [vmem:[#allocation5 + $0x2d8] sm:$0xff]
    %v295 = vld [vmem:[#allocation5 + $0x2e0] sm:$0xff]
    %v296 = vld [vmem:[#allocation5 + $0x2e8] sm:$0xff]
    %v297 = vld [vmem:[#allocation5 + $0x2f0] sm:$0xff]
    %v298 = vld [vmem:[#allocation5 + $0x2f8] sm:$0xff]
    %v299 = vld [vmem:[#allocation5 + $0x300] sm:$0xff]
    %v300 = vld [vmem:[#allocation5 + $0x308] sm:$0xff]
    %v301 = vld [vmem:[#allocation5 + $0x310] sm:$0xff]
    %v302 = vld [vmem:[#allocation5 + $0x318] sm:$0xff]
    %v303 = vld [vmem:[#allocation5 + $0x320] sm:$0xff]
    %v304 = vld [vmem:[#allocation5 + $0x328] sm:$0xff]
    %v305 = vld [vmem:[#allocation5 + $0x330] sm:$0xff]
    %v306 = vld [vmem:[#allocation5 + $0x338] sm:$0xff]
    %v307 = vld [vmem:[#allocation5 + $0x340] sm:$0xff]
    %v308 = vld [vmem:[#allocation5 + $0x348] sm:$0xff]
    %v309 = vld [vmem:[#allocation5 + $0x350] sm:$0xff]
    %v310 = vld [vmem:[#allocation5 + $0x358] sm:$0xff]
    %v311 = vld [vmem:[#allocation5 + $0x360] sm:$0xff]
    %v312 = vld [vmem:[#allocation5 + $0x368] sm:$0xff]
    %v313 = vld [vmem:[#allocation5 + $0x370] sm:$0xff]
    %v314 = vld [vmem:[#allocation5 + $0x378] sm:$0xff]
    %v315 = vld [vmem:[%s2] sm:$0x3]
    %v317 = vlaneseq
    %v318 = vshrl.u32 %v317, 7
    %v319 = vsub.s32 0, %v318
    %v320 = vrot.slane %v315, %v319
    %v321 = vlaneseq
    %v322 = vshrl.u32 %v321, 7
    %v323 = vsub.s32 1, %v322
    %v324 = vrot.slane %v315, %v323
    %v455 = vunpack.c.l.b16 %v75
    %v456 = vunpack.c.h.b16 %v75
    %v457 = vunpack.c.l.b16 %v76
    %v458 = vunpack.c.h.b16 %v76
    %v459 = vunpack.c.l.b16 %v77
    %v460 = vunpack.c.h.b16 %v77
    %v461 = vunpack.c.l.b16 %v78
    %v462 = vunpack.c.l.b16 %v79
    %v463 = vunpack.c.h.b16 %v79
    %v464 = vunpack.c.l.b16 %v80
    %v465 = vunpack.c.h.b16 %v80
    %v466 = vunpack.c.l.b16 %v81
    %v467 = vunpack.c.h.b16 %v81
    %v468 = vunpack.c.l.b16 %v82
    %v469 = vunpack.c.l.b16 %v83
    %v470 = vunpack.c.h.b16 %v83
    %v471 = vunpack.c.l.b16 %v84
    %v472 = vunpack.c.h.b16 %v84
    %v473 = vunpack.c.l.b16 %v85
    %v474 = vunpack.c.h.b16 %v85
    %v475 = vunpack.c.l.b16 %v86
    %v476 = vunpack.c.l.b16 %v87
    %v477 = vunpack.c.h.b16 %v87
    %v478 = vunpack.c.l.b16 %v88
    %v479 = vunpack.c.h.b16 %v88
    %v480 = vunpack.c.l.b16 %v89
    %v481 = vunpack.c.h.b16 %v89
    %v482 = vunpack.c.l.b16 %v90
    %v483 = vunpack.c.l.b16 %v91
    %v484 = vunpack.c.h.b16 %v91
    %v485 = vunpack.c.l.b16 %v92
    %v486 = vunpack.c.h.b16 %v92
    %v487 = vunpack.c.l.b16 %v93
    %v488 = vunpack.c.h.b16 %v93
    %v489 = vunpack.c.l.b16 %v94
    %v490 = vunpack.c.l.b16 %v95
    %v491 = vunpack.c.h.b16 %v95
    %v492 = vunpack.c.l.b16 %v96
    %v493 = vunpack.c.h.b16 %v96
    %v494 = vunpack.c.l.b16 %v97
    %v495 = vunpack.c.h.b16 %v97
    %v496 = vunpack.c.l.b16 %v98
    %v497 = vunpack.c.l.b16 %v99
    %v498 = vunpack.c.h.b16 %v99
    %v499 = vunpack.c.l.b16 %v100
    %v500 = vunpack.c.h.b16 %v100
    %v501 = vunpack.c.l.b16 %v101
    %v502 = vunpack.c.h.b16 %v101
    %v503 = vunpack.c.l.b16 %v102
    %v504 = vunpack.c.l.b16 %v103
    %v505 = vunpack.c.h.b16 %v103
    %v506 = vunpack.c.l.b16 %v104
    %v507 = vunpack.c.h.b16 %v104
    %v508 = vunpack.c.l.b16 %v105
    %v509 = vunpack.c.h.b16 %v105
    %v510 = vunpack.c.l.b16 %v106
    %v511 = vunpack.c.l.b16 %v107
    %v512 = vunpack.c.h.b16 %v107
    %v513 = vunpack.c.l.b16 %v108
    %v514 = vunpack.c.h.b16 %v108
    %v515 = vunpack.c.l.b16 %v109
    %v516 = vunpack.c.h.b16 %v109
    %v517 = vunpack.c.l.b16 %v110
    %v518 = vunpack.c.l.b16 %v111
    %v519 = vunpack.c.h.b16 %v111
    %v520 = vunpack.c.l.b16 %v112
    %v521 = vunpack.c.h.b16 %v112
    %v522 = vunpack.c.l.b16 %v113
    %v523 = vunpack.c.h.b16 %v113
    %v524 = vunpack.c.l.b16 %v114
    %v525 = vunpack.c.l.b16 %v115
    %v526 = vunpack.c.h.b16 %v115
    %v527 = vunpack.c.l.b16 %v116
    %v528 = vunpack.c.h.b16 %v116
    %v529 = vunpack.c.l.b16 %v117
    %v530 = vunpack.c.h.b16 %v117
    %v531 = vunpack.c.l.b16 %v118
    %v532 = vunpack.c.l.b16 %v119
    %v533 = vunpack.c.h.b16 %v119
    %v534 = vunpack.c.l.b16 %v120
    %v535 = vunpack.c.h.b16 %v120
    %v536 = vunpack.c.l.b16 %v121
    %v537 = vunpack.c.h.b16 %v121
    %v538 = vunpack.c.l.b16 %v122
    %v539 = vunpack.c.l.b16 %v123
    %v540 = vunpack.c.h.b16 %v123
    %v541 = vunpack.c.l.b16 %v124
    %v542 = vunpack.c.h.b16 %v124
    %v543 = vunpack.c.l.b16 %v125
    %v544 = vunpack.c.h.b16 %v125
    %v545 = vunpack.c.l.b16 %v126
    %v546 = vunpack.c.l.b16 %v127
    %v547 = vunpack.c.h.b16 %v127
    %v548 = vunpack.c.l.b16 %v128
    %v549 = vunpack.c.h.b16 %v128
    %v550 = vunpack.c.l.b16 %v129
    %v551 = vunpack.c.h.b16 %v129
    %v552 = vunpack.c.l.b16 %v130
    %v553 = vunpack.c.l.b16 %v131
    %v554 = vunpack.c.h.b16 %v131
    %v555 = vunpack.c.l.b16 %v132
    %v556 = vunpack.c.h.b16 %v132
    %v557 = vunpack.c.l.b16 %v133
    %v558 = vunpack.c.h.b16 %v133
    %v559 = vunpack.c.l.b16 %v134
    %v560 = vunpack.c.l.b16 %v135
    %v561 = vunpack.c.h.b16 %v135
    %v562 = vunpack.c.l.b16 %v136
    %v563 = vunpack.c.h.b16 %v136
    %v564 = vunpack.c.l.b16 %v137
    %v565 = vunpack.c.h.b16 %v137
    %v566 = vunpack.c.l.b16 %v138
    %v567 = vunpack.c.l.b16 %v139
    %v568 = vunpack.c.h.b16 %v139
    %v569 = vunpack.c.l.b16 %v140
    %v570 = vunpack.c.h.b16 %v140
    %v571 = vunpack.c.l.b16 %v141
    %v572 = vunpack.c.h.b16 %v141
    %v573 = vunpack.c.l.b16 %v142
    %v574 = vunpack.c.l.b16 %v143
    %v575 = vunpack.c.h.b16 %v143
    %v576 = vunpack.c.l.b16 %v144
    %v577 = vunpack.c.h.b16 %v144
    %v578 = vunpack.c.l.b16 %v145
    %v579 = vunpack.c.h.b16 %v145
    %v580 = vunpack.c.l.b16 %v146
    %v581 = vunpack.c.l.b16 %v147
    %v582 = vunpack.c.h.b16 %v147
    %v583 = vunpack.c.l.b16 %v148
    %v584 = vunpack.c.h.b16 %v148
    %v585 = vunpack.c.l.b16 %v149
    %v586 = vunpack.c.h.b16 %v149
    %v587 = vunpack.c.l.b16 %v150
    %v588 = vunpack.c.l.b16 %v151
    %v589 = vunpack.c.h.b16 %v151
    %v590 = vunpack.c.l.b16 %v152
    %v591 = vunpack.c.h.b16 %v152
    %v592 = vunpack.c.l.b16 %v153
    %v593 = vunpack.c.h.b16 %v153
    %v594 = vunpack.c.l.b16 %v154
    %v595 = vunpack.c.l.b16 %v155
    %v596 = vunpack.c.h.b16 %v155
    %v597 = vunpack.c.l.b16 %v156
    %v598 = vunpack.c.h.b16 %v156
    %v599 = vunpack.c.l.b16 %v157
    %v600 = vunpack.c.h.b16 %v157
    %v601 = vunpack.c.l.b16 %v158
    %v602 = vunpack.c.l.b16 %v159
    %v603 = vunpack.c.h.b16 %v159
    %v604 = vunpack.c.l.b16 %v160
    %v605 = vunpack.c.h.b16 %v160
    %v606 = vunpack.c.l.b16 %v161
    %v607 = vunpack.c.h.b16 %v161
    %v608 = vunpack.c.l.b16 %v162
    %v609 = vunpack.c.l.b16 %v163
    %v610 = vunpack.c.h.b16 %v163
    %v611 = vunpack.c.l.b16 %v164
    %v612 = vunpack.c.h.b16 %v164
    %v613 = vunpack.c.l.b16 %v165
    %v614 = vunpack.c.h.b16 %v165
    %v615 = vunpack.c.l.b16 %v166
    %v616 = vunpack.c.l.b16 %v167
    %v617 = vunpack.c.h.b16 %v167
    %v618 = vunpack.c.l.b16 %v168
    %v619 = vunpack.c.h.b16 %v168
    %v620 = vunpack.c.l.b16 %v169
    %v621 = vunpack.c.h.b16 %v169
    %v622 = vunpack.c.l.b16 %v170
    %v623 = vunpack.c.l.b16 %v171
    %v624 = vunpack.c.h.b16 %v171
    %v625 = vunpack.c.l.b16 %v172
    %v626 = vunpack.c.h.b16 %v172
    %v627 = vunpack.c.l.b16 %v173
    %v628 = vunpack.c.h.b16 %v173
    %v629 = vunpack.c.l.b16 %v174
    %v630 = vunpack.c.l.b16 %v175
    %v631 = vunpack.c.h.b16 %v175
    %v632 = vunpack.c.l.b16 %v176
    %v633 = vunpack.c.h.b16 %v176
    %v634 = vunpack.c.l.b16 %v177
    %v635 = vunpack.c.h.b16 %v177
    %v636 = vunpack.c.l.b16 %v178
    %v637 = vunpack.c.l.b16 %v179
    %v638 = vunpack.c.h.b16 %v179
    %v639 = vunpack.c.l.b16 %v180
    %v640 = vunpack.c.h.b16 %v180
    %v641 = vunpack.c.l.b16 %v181
    %v642 = vunpack.c.h.b16 %v181
    %v643 = vunpack.c.l.b16 %v182
    %v644 = vunpack.c.l.b16 %v183
    %v645 = vunpack.c.h.b16 %v183
    %v646 = vunpack.c.l.b16 %v184
    %v647 = vunpack.c.h.b16 %v184
    %v648 = vunpack.c.l.b16 %v185
    %v649 = vunpack.c.h.b16 %v185
    %v650 = vunpack.c.l.b16 %v186
    %v651 = vunpack.c.l.b16 %v187
    %v652 = vunpack.c.h.b16 %v187
    %v653 = vunpack.c.l.b16 %v188
    %v654 = vunpack.c.h.b16 %v188
    %v655 = vunpack.c.l.b16 %v189
    %v656 = vunpack.c.h.b16 %v189
    %v657 = vunpack.c.l.b16 %v190
    %v658 = vunpack.c.l.b16 %v191
    %v659 = vunpack.c.h.b16 %v191
    %v660 = vunpack.c.l.b16 %v192
    %v661 = vunpack.c.h.b16 %v192
    %v662 = vunpack.c.l.b16 %v193
    %v663 = vunpack.c.h.b16 %v193
    %v664 = vunpack.c.l.b16 %v194
    %v665 = vunpack.c.l.b16 %v195
    %v666 = vunpack.c.h.b16 %v195
    %v667 = vunpack.c.l.b16 %v196
    %v668 = vunpack.c.h.b16 %v196
    %v669 = vunpack.c.l.b16 %v197
    %v670 = vunpack.c.h.b16 %v197
    %v671 = vunpack.c.l.b16 %v198
    %v672 = vunpack.c.l.b16 %v199
    %v673 = vunpack.c.h.b16 %v199
    %v674 = vunpack.c.l.b16 %v200
    %v675 = vunpack.c.h.b16 %v200
    %v676 = vunpack.c.l.b16 %v201
    %v677 = vunpack.c.h.b16 %v201
    %v678 = vunpack.c.l.b16 %v202
    %v679 = vpack.c.b16 %v462, %v455
    %v680 = vpack.c.b16 %v463, %v456
    %v681 = vpack.c.b16 %v464, %v457
    %v682 = vpack.c.b16 %v465, %v458
    %v683 = vpack.c.b16 %v466, %v459
    %v684 = vpack.c.b16 %v467, %v460
    %v685 = vpack.c.b16 %v468, %v461
    %v686 = vpack.c.b16 %v476, %v469
    %v687 = vpack.c.b16 %v477, %v470
    %v688 = vpack.c.b16 %v478, %v471
    %v689 = vpack.c.b16 %v479, %v472
    %v690 = vpack.c.b16 %v480, %v473
    %v691 = vpack.c.b16 %v481, %v474
    %v692 = vpack.c.b16 %v482, %v475
    %v693 = vpack.c.b16 %v490, %v483
    %v694 = vpack.c.b16 %v491, %v484
    %v695 = vpack.c.b16 %v492, %v485
    %v696 = vpack.c.b16 %v493, %v486
    %v697 = vpack.c.b16 %v494, %v487
    %v698 = vpack.c.b16 %v495, %v488
    %v699 = vpack.c.b16 %v496, %v489
    %v700 = vpack.c.b16 %v504, %v497
    %v701 = vpack.c.b16 %v505, %v498
    %v702 = vpack.c.b16 %v506, %v499
    %v703 = vpack.c.b16 %v507, %v500
    %v704 = vpack.c.b16 %v508, %v501
    %v705 = vpack.c.b16 %v509, %v502
    %v706 = vpack.c.b16 %v510, %v503
    %v707 = vpack.c.b16 %v518, %v511
    %v708 = vpack.c.b16 %v519, %v512
    %v709 = vpack.c.b16 %v520, %v513
    %v710 = vpack.c.b16 %v521, %v514
    %v711 = vpack.c.b16 %v522, %v515
    %v712 = vpack.c.b16 %v523, %v516
    %v713 = vpack.c.b16 %v524, %v517
    %v714 = vpack.c.b16 %v532, %v525
    %v715 = vpack.c.b16 %v533, %v526
    %v716 = vpack.c.b16 %v534, %v527
    %v717 = vpack.c.b16 %v535, %v528
    %v718 = vpack.c.b16 %v536, %v529
    %v719 = vpack.c.b16 %v537, %v530
    %v720 = vpack.c.b16 %v538, %v531
    %v721 = vpack.c.b16 %v546, %v539
    %v722 = vpack.c.b16 %v547, %v540
    %v723 = vpack.c.b16 %v548, %v541
    %v724 = vpack.c.b16 %v549, %v542
    %v725 = vpack.c.b16 %v550, %v543
    %v726 = vpack.c.b16 %v551, %v544
    %v727 = vpack.c.b16 %v552, %v545
    %v728 = vpack.c.b16 %v560, %v553
    %v729 = vpack.c.b16 %v561, %v554
    %v730 = vpack.c.b16 %v562, %v555
    %v731 = vpack.c.b16 %v563, %v556
    %v732 = vpack.c.b16 %v564, %v557
    %v733 = vpack.c.b16 %v565, %v558
    %v734 = vpack.c.b16 %v566, %v559
    %v735 = vpack.c.b16 %v574, %v567
    %v736 = vpack.c.b16 %v575, %v568
    %v737 = vpack.c.b16 %v576, %v569
    %v738 = vpack.c.b16 %v577, %v570
    %v739 = vpack.c.b16 %v578, %v571
    %v740 = vpack.c.b16 %v579, %v572
    %v741 = vpack.c.b16 %v580, %v573
    %v742 = vpack.c.b16 %v588, %v581
    %v743 = vpack.c.b16 %v589, %v582
    %v744 = vpack.c.b16 %v590, %v583
    %v745 = vpack.c.b16 %v591, %v584
    %v746 = vpack.c.b16 %v592, %v585
    %v747 = vpack.c.b16 %v593, %v586
    %v748 = vpack.c.b16 %v594, %v587
    %v749 = vpack.c.b16 %v602, %v595
    %v750 = vpack.c.b16 %v603, %v596
    %v751 = vpack.c.b16 %v604, %v597
    %v752 = vpack.c.b16 %v605, %v598
    %v753 = vpack.c.b16 %v606, %v599
    %v754 = vpack.c.b16 %v607, %v600
    %v755 = vpack.c.b16 %v608, %v601
    %v756 = vpack.c.b16 %v616, %v609
    %v757 = vpack.c.b16 %v617, %v610
    %v758 = vpack.c.b16 %v618, %v611
    %v759 = vpack.c.b16 %v619, %v612
    %v760 = vpack.c.b16 %v620, %v613
    %v761 = vpack.c.b16 %v621, %v614
    %v762 = vpack.c.b16 %v622, %v615
    %v763 = vpack.c.b16 %v630, %v623
    %v764 = vpack.c.b16 %v631, %v624
    %v765 = vpack.c.b16 %v632, %v625
    %v766 = vpack.c.b16 %v633, %v626
    %v767 = vpack.c.b16 %v634, %v627
    %v768 = vpack.c.b16 %v635, %v628
    %v769 = vpack.c.b16 %v636, %v629
    %v770 = vpack.c.b16 %v644, %v637
    %v771 = vpack.c.b16 %v645, %v638
    %v772 = vpack.c.b16 %v646, %v639
    %v773 = vpack.c.b16 %v647, %v640
    %v774 = vpack.c.b16 %v648, %v641
    %v775 = vpack.c.b16 %v649, %v642
    %v776 = vpack.c.b16 %v650, %v643
    %v777 = vpack.c.b16 %v658, %v651
    %v778 = vpack.c.b16 %v659, %v652
    %v779 = vpack.c.b16 %v660, %v653
    %v780 = vpack.c.b16 %v661, %v654
    %v781 = vpack.c.b16 %v662, %v655
    %v782 = vpack.c.b16 %v663, %v656
    %v783 = vpack.c.b16 %v664, %v657
    %v784 = vpack.c.b16 %v672, %v665
    %v785 = vpack.c.b16 %v673, %v666
    %v786 = vpack.c.b16 %v674, %v667
    %v787 = vpack.c.b16 %v675, %v668
    %v788 = vpack.c.b16 %v676, %v669
    %v789 = vpack.c.b16 %v677, %v670
    %v790 = vpack.c.b16 %v678, %v671
    %v1015 = vunpack.c.l.b16 %v203
    %v1016 = vunpack.c.h.b16 %v203
    %v1017 = vunpack.c.l.b16 %v204
    %v1018 = vunpack.c.h.b16 %v204
    %v1019 = vunpack.c.l.b16 %v205
    %v1020 = vunpack.c.h.b16 %v205
    %v1021 = vunpack.c.l.b16 %v206
    %v1022 = vunpack.c.h.b16 %v206
    %v1023 = vunpack.c.l.b16 %v207
    %v1024 = vunpack.c.h.b16 %v207
    %v1025 = vunpack.c.l.b16 %v208
    %v1026 = vunpack.c.h.b16 %v208
    %v1027 = vunpack.c.l.b16 %v209
    %v1028 = vunpack.c.h.b16 %v209
    %v1029 = vunpack.c.l.b16 %v210
    %v1030 = vunpack.c.h.b16 %v210
    %v1031 = vunpack.c.l.b16 %v211
    %v1032 = vunpack.c.h.b16 %v211
    %v1033 = vunpack.c.l.b16 %v212
    %v1034 = vunpack.c.h.b16 %v212
    %v1035 = vunpack.c.l.b16 %v213
    %v1036 = vunpack.c.h.b16 %v213
    %v1037 = vunpack.c.l.b16 %v214
    %v1038 = vunpack.c.h.b16 %v214
    %v1039 = vunpack.c.l.b16 %v215
    %v1040 = vunpack.c.h.b16 %v215
    %v1041 = vunpack.c.l.b16 %v216
    %v1042 = vunpack.c.h.b16 %v216
    %v1043 = vunpack.c.l.b16 %v217
    %v1044 = vunpack.c.h.b16 %v217
    %v1045 = vunpack.c.l.b16 %v218
    %v1046 = vunpack.c.h.b16 %v218
    %v1047 = vunpack.c.l.b16 %v219
    %v1048 = vunpack.c.h.b16 %v219
    %v1049 = vunpack.c.l.b16 %v220
    %v1050 = vunpack.c.h.b16 %v220
    %v1051 = vunpack.c.l.b16 %v221
    %v1052 = vunpack.c.h.b16 %v221
    %v1053 = vunpack.c.l.b16 %v222
    %v1054 = vunpack.c.h.b16 %v222
    %v1055 = vunpack.c.l.b16 %v223
    %v1056 = vunpack.c.h.b16 %v223
    %v1057 = vunpack.c.l.b16 %v224
    %v1058 = vunpack.c.h.b16 %v224
    %v1059 = vunpack.c.l.b16 %v225
    %v1060 = vunpack.c.h.b16 %v225
    %v1061 = vunpack.c.l.b16 %v226
    %v1062 = vunpack.c.h.b16 %v226
    %v1063 = vunpack.c.l.b16 %v227
    %v1064 = vunpack.c.h.b16 %v227
    %v1065 = vunpack.c.l.b16 %v228
    %v1066 = vunpack.c.h.b16 %v228
    %v1067 = vunpack.c.l.b16 %v229
    %v1068 = vunpack.c.h.b16 %v229
    %v1069 = vunpack.c.l.b16 %v230
    %v1070 = vunpack.c.h.b16 %v230
    %v1071 = vunpack.c.l.b16 %v231
    %v1072 = vunpack.c.h.b16 %v231
    %v1073 = vunpack.c.l.b16 %v232
    %v1074 = vunpack.c.h.b16 %v232
    %v1075 = vunpack.c.l.b16 %v233
    %v1076 = vunpack.c.h.b16 %v233
    %v1077 = vunpack.c.l.b16 %v234
    %v1078 = vunpack.c.h.b16 %v234
    %v1079 = vunpack.c.l.b16 %v235
    %v1080 = vunpack.c.h.b16 %v235
    %v1081 = vunpack.c.l.b16 %v236
    %v1082 = vunpack.c.h.b16 %v236
    %v1083 = vunpack.c.l.b16 %v237
    %v1084 = vunpack.c.h.b16 %v237
    %v1085 = vunpack.c.l.b16 %v238
    %v1086 = vunpack.c.h.b16 %v238
    %v1087 = vunpack.c.l.b16 %v239
    %v1088 = vunpack.c.h.b16 %v239
    %v1089 = vunpack.c.l.b16 %v240
    %v1090 = vunpack.c.h.b16 %v240
    %v1091 = vunpack.c.l.b16 %v241
    %v1092 = vunpack.c.h.b16 %v241
    %v1093 = vunpack.c.l.b16 %v242
    %v1094 = vunpack.c.h.b16 %v242
    %v1095 = vunpack.c.l.b16 %v243
    %v1096 = vunpack.c.h.b16 %v243
    %v1097 = vunpack.c.l.b16 %v244
    %v1098 = vunpack.c.h.b16 %v244
    %v1099 = vunpack.c.l.b16 %v245
    %v1100 = vunpack.c.h.b16 %v245
    %v1101 = vunpack.c.l.b16 %v246
    %v1102 = vunpack.c.h.b16 %v246
    %v1103 = vunpack.c.l.b16 %v247
    %v1104 = vunpack.c.h.b16 %v247
    %v1105 = vunpack.c.l.b16 %v248
    %v1106 = vunpack.c.h.b16 %v248
    %v1107 = vunpack.c.l.b16 %v249
    %v1108 = vunpack.c.h.b16 %v249
    %v1109 = vunpack.c.l.b16 %v250
    %v1110 = vunpack.c.h.b16 %v250
    %v1111 = vunpack.c.l.b16 %v251
    %v1112 = vunpack.c.h.b16 %v251
    %v1113 = vunpack.c.l.b16 %v252
    %v1114 = vunpack.c.h.b16 %v252
    %v1115 = vunpack.c.l.b16 %v253
    %v1116 = vunpack.c.h.b16 %v253
    %v1117 = vunpack.c.l.b16 %v254
    %v1118 = vunpack.c.h.b16 %v254
    %v1119 = vunpack.c.l.b16 %v255
    %v1120 = vunpack.c.h.b16 %v255
    %v1121 = vunpack.c.l.b16 %v256
    %v1122 = vunpack.c.h.b16 %v256
    %v1123 = vunpack.c.l.b16 %v257
    %v1124 = vunpack.c.h.b16 %v257
    %v1125 = vunpack.c.l.b16 %v258
    %v1126 = vunpack.c.h.b16 %v258
    %v1127 = vunpack.c.l.b16 %v259
    %v1128 = vunpack.c.h.b16 %v259
    %v1129 = vunpack.c.l.b16 %v260
    %v1130 = vunpack.c.h.b16 %v260
    %v1131 = vunpack.c.l.b16 %v261
    %v1132 = vunpack.c.h.b16 %v261
    %v1133 = vunpack.c.l.b16 %v262
    %v1134 = vunpack.c.h.b16 %v262
    %v1135 = vunpack.c.l.b16 %v263
    %v1136 = vunpack.c.h.b16 %v263
    %v1137 = vunpack.c.l.b16 %v264
    %v1138 = vunpack.c.h.b16 %v264
    %v1139 = vunpack.c.l.b16 %v265
    %v1140 = vunpack.c.h.b16 %v265
    %v1141 = vunpack.c.l.b16 %v266
    %v1142 = vunpack.c.h.b16 %v266
    %v1143 = vunpack.c.l.b16 %v267
    %v1144 = vunpack.c.h.b16 %v267
    %v1145 = vunpack.c.l.b16 %v268
    %v1146 = vunpack.c.h.b16 %v268
    %v1147 = vunpack.c.l.b16 %v269
    %v1148 = vunpack.c.h.b16 %v269
    %v1149 = vunpack.c.l.b16 %v270
    %v1150 = vunpack.c.h.b16 %v270
    %v1151 = vunpack.c.l.b16 %v271
    %v1152 = vunpack.c.h.b16 %v271
    %v1153 = vunpack.c.l.b16 %v272
    %v1154 = vunpack.c.h.b16 %v272
    %v1155 = vunpack.c.l.b16 %v273
    %v1156 = vunpack.c.h.b16 %v273
    %v1157 = vunpack.c.l.b16 %v274
    %v1158 = vunpack.c.h.b16 %v274
    %v1159 = vunpack.c.l.b16 %v275
    %v1160 = vunpack.c.h.b16 %v275
    %v1161 = vunpack.c.l.b16 %v276
    %v1162 = vunpack.c.h.b16 %v276
    %v1163 = vunpack.c.l.b16 %v277
    %v1164 = vunpack.c.h.b16 %v277
    %v1165 = vunpack.c.l.b16 %v278
    %v1166 = vunpack.c.h.b16 %v278
    %v1167 = vunpack.c.l.b16 %v279
    %v1168 = vunpack.c.h.b16 %v279
    %v1169 = vunpack.c.l.b16 %v280
    %v1170 = vunpack.c.h.b16 %v280
    %v1171 = vunpack.c.l.b16 %v281
    %v1172 = vunpack.c.h.b16 %v281
    %v1173 = vunpack.c.l.b16 %v282
    %v1174 = vunpack.c.h.b16 %v282
    %v1175 = vunpack.c.l.b16 %v283
    %v1176 = vunpack.c.h.b16 %v283
    %v1177 = vunpack.c.l.b16 %v284
    %v1178 = vunpack.c.h.b16 %v284
    %v1179 = vunpack.c.l.b16 %v285
    %v1180 = vunpack.c.h.b16 %v285
    %v1181 = vunpack.c.l.b16 %v286
    %v1182 = vunpack.c.h.b16 %v286
    %v1183 = vunpack.c.l.b16 %v287
    %v1184 = vunpack.c.h.b16 %v287
    %v1185 = vunpack.c.l.b16 %v288
    %v1186 = vunpack.c.h.b16 %v288
    %v1187 = vunpack.c.l.b16 %v289
    %v1188 = vunpack.c.h.b16 %v289
    %v1189 = vunpack.c.l.b16 %v290
    %v1190 = vunpack.c.h.b16 %v290
    %v1191 = vunpack.c.l.b16 %v291
    %v1192 = vunpack.c.h.b16 %v291
    %v1193 = vunpack.c.l.b16 %v292
    %v1194 = vunpack.c.h.b16 %v292
    %v1195 = vunpack.c.l.b16 %v293
    %v1196 = vunpack.c.h.b16 %v293
    %v1197 = vunpack.c.l.b16 %v294
    %v1198 = vunpack.c.h.b16 %v294
    %v1199 = vunpack.c.l.b16 %v295
    %v1200 = vunpack.c.h.b16 %v295
    %v1201 = vunpack.c.l.b16 %v296
    %v1202 = vunpack.c.h.b16 %v296
    %v1203 = vunpack.c.l.b16 %v297
    %v1204 = vunpack.c.h.b16 %v297
    %v1205 = vunpack.c.l.b16 %v298
    %v1206 = vunpack.c.h.b16 %v298
    %v1207 = vunpack.c.l.b16 %v299
    %v1208 = vunpack.c.h.b16 %v299
    %v1209 = vunpack.c.l.b16 %v300
    %v1210 = vunpack.c.h.b16 %v300
    %v1211 = vunpack.c.l.b16 %v301
    %v1212 = vunpack.c.h.b16 %v301
    %v1213 = vunpack.c.l.b16 %v302
    %v1214 = vunpack.c.h.b16 %v302
    %v1215 = vunpack.c.l.b16 %v303
    %v1216 = vunpack.c.h.b16 %v303
    %v1217 = vunpack.c.l.b16 %v304
    %v1218 = vunpack.c.h.b16 %v304
    %v1219 = vunpack.c.l.b16 %v305
    %v1220 = vunpack.c.h.b16 %v305
    %v1221 = vunpack.c.l.b16 %v306
    %v1222 = vunpack.c.h.b16 %v306
    %v1223 = vunpack.c.l.b16 %v307
    %v1224 = vunpack.c.h.b16 %v307
    %v1225 = vunpack.c.l.b16 %v308
    %v1226 = vunpack.c.h.b16 %v308
    %v1227 = vunpack.c.l.b16 %v309
    %v1228 = vunpack.c.h.b16 %v309
    %v1229 = vunpack.c.l.b16 %v310
    %v1230 = vunpack.c.h.b16 %v310
    %v1231 = vunpack.c.l.b16 %v311
    %v1232 = vunpack.c.h.b16 %v311
    %v1233 = vunpack.c.l.b16 %v312
    %v1234 = vunpack.c.h.b16 %v312
    %v1235 = vunpack.c.l.b16 %v313
    %v1236 = vunpack.c.h.b16 %v313
    %v1237 = vunpack.c.l.b16 %v314
    %v1238 = vunpack.c.h.b16 %v314
    %v1239 = vpack.c.b16 %v1017, %v1015
    %v1240 = vpack.c.b16 %v1018, %v1016
    %v1241 = vpack.c.b16 %v1021, %v1019
    %v1242 = vpack.c.b16 %v1022, %v1020
    %v1243 = vpack.c.b16 %v1025, %v1023
    %v1244 = vpack.c.b16 %v1026, %v1024
    %v1245 = vpack.c.b16 %v1029, %v1027
    %v1246 = vpack.c.b16 %v1030, %v1028
    %v1247 = vpack.c.b16 %v1033, %v1031
    %v1248 = vpack.c.b16 %v1034, %v1032
    %v1249 = vpack.c.b16 %v1037, %v1035
    %v1250 = vpack.c.b16 %v1038, %v1036
    %v1251 = vpack.c.b16 %v1041, %v1039
    %v1252 = vpack.c.b16 %v1042, %v1040
    %v1253 = vpack.c.b16 %v1045, %v1043
    %v1254 = vpack.c.b16 %v1046, %v1044
    %v1255 = vpack.c.b16 %v1049, %v1047
    %v1256 = vpack.c.b16 %v1050, %v1048
    %v1257 = vpack.c.b16 %v1053, %v1051
    %v1258 = vpack.c.b16 %v1054, %v1052
    %v1259 = vpack.c.b16 %v1057, %v1055
    %v1260 = vpack.c.b16 %v1058, %v1056
    %v1261 = vpack.c.b16 %v1061, %v1059
    %v1262 = vpack.c.b16 %v1062, %v1060
    %v1263 = vpack.c.b16 %v1065, %v1063
    %v1264 = vpack.c.b16 %v1066, %v1064
    %v1265 = vpack.c.b16 %v1069, %v1067
    %v1266 = vpack.c.b16 %v1070, %v1068
    %v1267 = vpack.c.b16 %v1073, %v1071
    %v1268 = vpack.c.b16 %v1074, %v1072
    %v1269 = vpack.c.b16 %v1077, %v1075
    %v1270 = vpack.c.b16 %v1078, %v1076
    %v1271 = vpack.c.b16 %v1081, %v1079
    %v1272 = vpack.c.b16 %v1082, %v1080
    %v1273 = vpack.c.b16 %v1085, %v1083
    %v1274 = vpack.c.b16 %v1086, %v1084
    %v1275 = vpack.c.b16 %v1089, %v1087
    %v1276 = vpack.c.b16 %v1090, %v1088
    %v1277 = vpack.c.b16 %v1093, %v1091
    %v1278 = vpack.c.b16 %v1094, %v1092
    %v1279 = vpack.c.b16 %v1097, %v1095
    %v1280 = vpack.c.b16 %v1098, %v1096
    %v1281 = vpack.c.b16 %v1101, %v1099
    %v1282 = vpack.c.b16 %v1102, %v1100
    %v1283 = vpack.c.b16 %v1105, %v1103
    %v1284 = vpack.c.b16 %v1106, %v1104
    %v1285 = vpack.c.b16 %v1109, %v1107
    %v1286 = vpack.c.b16 %v1110, %v1108
    %v1287 = vpack.c.b16 %v1113, %v1111
    %v1288 = vpack.c.b16 %v1114, %v1112
    %v1289 = vpack.c.b16 %v1117, %v1115
    %v1290 = vpack.c.b16 %v1118, %v1116
    %v1291 = vpack.c.b16 %v1121, %v1119
    %v1292 = vpack.c.b16 %v1122, %v1120
    %v1293 = vpack.c.b16 %v1125, %v1123
    %v1294 = vpack.c.b16 %v1126, %v1124
    %v1295 = vpack.c.b16 %v1129, %v1127
    %v1296 = vpack.c.b16 %v1130, %v1128
    %v1297 = vpack.c.b16 %v1133, %v1131
    %v1298 = vpack.c.b16 %v1134, %v1132
    %v1299 = vpack.c.b16 %v1137, %v1135
    %v1300 = vpack.c.b16 %v1138, %v1136
    %v1301 = vpack.c.b16 %v1141, %v1139
    %v1302 = vpack.c.b16 %v1142, %v1140
    %v1303 = vpack.c.b16 %v1145, %v1143
    %v1304 = vpack.c.b16 %v1146, %v1144
    %v1305 = vpack.c.b16 %v1149, %v1147
    %v1306 = vpack.c.b16 %v1150, %v1148
    %v1307 = vpack.c.b16 %v1153, %v1151
    %v1308 = vpack.c.b16 %v1154, %v1152
    %v1309 = vpack.c.b16 %v1157, %v1155
    %v1310 = vpack.c.b16 %v1158, %v1156
    %v1311 = vpack.c.b16 %v1161, %v1159
    %v1312 = vpack.c.b16 %v1162, %v1160
    %v1313 = vpack.c.b16 %v1165, %v1163
    %v1314 = vpack.c.b16 %v1166, %v1164
    %v1315 = vpack.c.b16 %v1169, %v1167
    %v1316 = vpack.c.b16 %v1170, %v1168
    %v1317 = vpack.c.b16 %v1173, %v1171
    %v1318 = vpack.c.b16 %v1174, %v1172
    %v1319 = vpack.c.b16 %v1177, %v1175
    %v1320 = vpack.c.b16 %v1178, %v1176
    %v1321 = vpack.c.b16 %v1181, %v1179
    %v1322 = vpack.c.b16 %v1182, %v1180
    %v1323 = vpack.c.b16 %v1185, %v1183
    %v1324 = vpack.c.b16 %v1186, %v1184
    %v1325 = vpack.c.b16 %v1189, %v1187
    %v1326 = vpack.c.b16 %v1190, %v1188
    %v1327 = vpack.c.b16 %v1193, %v1191
    %v1328 = vpack.c.b16 %v1194, %v1192
    %v1329 = vpack.c.b16 %v1197, %v1195
    %v1330 = vpack.c.b16 %v1198, %v1196
    %v1331 = vpack.c.b16 %v1201, %v1199
    %v1332 = vpack.c.b16 %v1202, %v1200
    %v1333 = vpack.c.b16 %v1205, %v1203
    %v1334 = vpack.c.b16 %v1206, %v1204
    %v1335 = vpack.c.b16 %v1209, %v1207
    %v1336 = vpack.c.b16 %v1210, %v1208
    %v1337 = vpack.c.b16 %v1213, %v1211
    %v1338 = vpack.c.b16 %v1214, %v1212
    %v1339 = vpack.c.b16 %v1217, %v1215
    %v1340 = vpack.c.b16 %v1218, %v1216
    %v1341 = vpack.c.b16 %v1221, %v1219
    %v1342 = vpack.c.b16 %v1222, %v1220
    %v1343 = vpack.c.b16 %v1225, %v1223
    %v1344 = vpack.c.b16 %v1226, %v1224
    %v1345 = vpack.c.b16 %v1229, %v1227
    %v1346 = vpack.c.b16 %v1230, %v1228
    %v1347 = vpack.c.b16 %v1233, %v1231
    %v1348 = vpack.c.b16 %v1234, %v1232
    %v1349 = vpack.c.b16 %v1237, %v1235
    %v1350 = vpack.c.b16 %v1238, %v1236
    %1463 = vmatprep.subr.bf16.mxu0 %v1254
    %1464 = vmatpush1.bf16.msra.mxu0 %v1253
    %1465 = vmatprep.subr.bf16.mxu0 %v1252
    %1466 = vmatpush1.bf16.msra.mxu0 %v1251
    %1467 = vmatprep.subr.bf16.mxu0 %v1250
    %1468 = vmatpush1.bf16.msra.mxu0 %v1249
    %1469 = vmatprep.subr.bf16.mxu0 %v1248
    %1470 = vmatpush1.bf16.msra.mxu0 %v1247
    %1471 = vmatprep.subr.bf16.mxu0 %v1246
    %1472 = vmatpush1.bf16.msra.mxu0 %v1245
    %1473 = vmatprep.subr.bf16.mxu0 %v1244
    %1474 = vmatpush1.bf16.msra.mxu0 %v1243
    %1475 = vmatprep.subr.bf16.mxu0 %v1242
    %1476 = vmatpush1.bf16.msra.mxu0 %v1241
    %1477 = vmatprep.subr.bf16.mxu0 %v1240
    %1478 = vmatpush1.bf16.msra.mxu0 %v1239
    %1479 = vmatprep.subr.bf16.mxu0 %v1270
    %1480 = vmatpush2.bf16.msra.mxu0 %v1269
    %1481 = vmatprep.subr.bf16.mxu0 %v1268
    %1482 = vmatpush2.bf16.msra.mxu0 %v1267
    %1483 = vmatprep.subr.bf16.mxu0 %v1266
    %1484 = vmatpush2.bf16.msra.mxu0 %v1265
    %1485 = vmatprep.subr.bf16.mxu0 %v1264
    %1486 = vmatpush2.bf16.msra.mxu0 %v1263
    %1487 = vmatprep.subr.bf16.mxu0 %v1262
    %1488 = vmatpush2.bf16.msra.mxu0 %v1261
    %1489 = vmatprep.subr.bf16.mxu0 %v1260
    %1490 = vmatpush2.bf16.msra.mxu0 %v1259
    %1491 = vmatprep.subr.bf16.mxu0 %v1258
    %1492 = vmatpush2.bf16.msra.mxu0 %v1257
    %1493 = vmatprep.subr.bf16.mxu0 %v1256
    %1494 = vmatpush2.bf16.msra.mxu0 %v1255
    %1495 = vmatprep.mubr.bf16.mxu0 %v680
    %1496 = vmatmul.mubr.bf16.gmra.mxu0 %v679
    %v1497 = vpop.f32.mrf.mxu0
    %v1498 = vadd.f32 %v320, %v1497
    %v1499 = vpop.f32.mrf.mxu0
    %v1500 = vadd.f32 %v324, %v1499
    %v1501 = vpop.f32.mrf.mxu0
    %v1502 = vadd.f32 %v320, %v1501
    %v1503 = vpop.f32.mrf.mxu0
    %v1504 = vadd.f32 %v324, %v1503
    %1505 = vmatprep.mubr.bf16.mxu0 %v687
    %1506 = vmatmul.mubr.bf16.gmra.mxu0 %v686
    %v1507 = vpop.f32.mrf.mxu0
    %v1508 = vadd.f32 %v320, %v1507
    %v1509 = vpop.f32.mrf.mxu0
    %v1510 = vadd.f32 %v324, %v1509
    %v1511 = vpop.f32.mrf.mxu0
    %v1512 = vadd.f32 %v320, %v1511
    %v1513 = vpop.f32.mrf.mxu0
    %v1514 = vadd.f32 %v324, %v1513
    %1515 = vmatprep.mubr.bf16.mxu0 %v694
    %1516 = vmatmul.mubr.bf16.gmra.mxu0 %v693
    %v1517 = vpop.f32.mrf.mxu0
    %v1518 = vadd.f32 %v320, %v1517
    %v1519 = vpop.f32.mrf.mxu0
    %v1520 = vadd.f32 %v324, %v1519
    %v1521 = vpop.f32.mrf.mxu0
    %v1522 = vadd.f32 %v320, %v1521
    %v1523 = vpop.f32.mrf.mxu0
    %v1524 = vadd.f32 %v324, %v1523
    %1525 = vmatprep.mubr.bf16.mxu0 %v701
    %1526 = vmatmul.mubr.bf16.gmra.mxu0 %v700
    %v1527 = vpop.f32.mrf.mxu0
    %v1528 = vadd.f32 %v320, %v1527
    %v1529 = vpop.f32.mrf.mxu0
    %v1530 = vadd.f32 %v324, %v1529
    %v1531 = vpop.f32.mrf.mxu0
    %v1532 = vadd.f32 %v320, %v1531
    %v1533 = vpop.f32.mrf.mxu0
    %v1534 = vadd.f32 %v324, %v1533
    %1535 = vmatprep.mubr.bf16.mxu0 %v708
    %1536 = vmatmul.mubr.bf16.gmra.mxu0 %v707
    %v1537 = vpop.f32.mrf.mxu0
    %v1538 = vadd.f32 %v320, %v1537
    %v1539 = vpop.f32.mrf.mxu0
    %v1540 = vadd.f32 %v324, %v1539
    %v1541 = vpop.f32.mrf.mxu0
    %v1542 = vadd.f32 %v320, %v1541
    %v1543 = vpop.f32.mrf.mxu0
    %v1544 = vadd.f32 %v324, %v1543
    %1545 = vmatprep.mubr.bf16.mxu0 %v715
    %1546 = vmatmul.mubr.bf16.gmra.mxu0 %v714
    %v1547 = vpop.f32.mrf.mxu0
    %v1548 = vadd.f32 %v320, %v1547
    %v1549 = vpop.f32.mrf.mxu0
    %v1550 = vadd.f32 %v324, %v1549
    %v1551 = vpop.f32.mrf.mxu0
    %v1552 = vadd.f32 %v320, %v1551
    %v1553 = vpop.f32.mrf.mxu0
    %v1554 = vadd.f32 %v324, %v1553
    %1555 = vmatprep.mubr.bf16.mxu0 %v722
    %1556 = vmatmul.mubr.bf16.gmra.mxu0 %v721
    %v1557 = vpop.f32.mrf.mxu0
    %v1558 = vadd.f32 %v320, %v1557
    %v1559 = vpop.f32.mrf.mxu0
    %v1560 = vadd.f32 %v324, %v1559
    %v1561 = vpop.f32.mrf.mxu0
    %v1562 = vadd.f32 %v320, %v1561
    %v1563 = vpop.f32.mrf.mxu0
    %v1564 = vadd.f32 %v324, %v1563
    %1565 = vmatprep.mubr.bf16.mxu0 %v729
    %1566 = vmatmul.mubr.bf16.gmra.mxu0 %v728
    %v1567 = vpop.f32.mrf.mxu0
    %v1568 = vadd.f32 %v320, %v1567
    %v1569 = vpop.f32.mrf.mxu0
    %v1570 = vadd.f32 %v324, %v1569
    %v1571 = vpop.f32.mrf.mxu0
    %v1572 = vadd.f32 %v320, %v1571
    %v1573 = vpop.f32.mrf.mxu0
    %v1574 = vadd.f32 %v324, %v1573
    %1575 = vmatprep.mubr.bf16.mxu0 %v736
    %1576 = vmatmul.mubr.bf16.gmra.mxu0 %v735
    %v1577 = vpop.f32.mrf.mxu0
    %v1578 = vadd.f32 %v320, %v1577
    %v1579 = vpop.f32.mrf.mxu0
    %v1580 = vadd.f32 %v324, %v1579
    %v1581 = vpop.f32.mrf.mxu0
    %v1582 = vadd.f32 %v320, %v1581
    %v1583 = vpop.f32.mrf.mxu0
    %v1584 = vadd.f32 %v324, %v1583
    %1585 = vmatprep.mubr.bf16.mxu0 %v743
    %1586 = vmatmul.mubr.bf16.gmra.mxu0 %v742
    %v1587 = vpop.f32.mrf.mxu0
    %v1588 = vadd.f32 %v320, %v1587
    %v1589 = vpop.f32.mrf.mxu0
    %v1590 = vadd.f32 %v324, %v1589
    %v1591 = vpop.f32.mrf.mxu0
    %v1592 = vadd.f32 %v320, %v1591
    %v1593 = vpop.f32.mrf.mxu0
    %v1594 = vadd.f32 %v324, %v1593
    %1595 = vmatprep.mubr.bf16.mxu0 %v750
    %1596 = vmatmul.mubr.bf16.gmra.mxu0 %v749
    %v1597 = vpop.f32.mrf.mxu0
    %v1598 = vadd.f32 %v320, %v1597
    %v1599 = vpop.f32.mrf.mxu0
    %v1600 = vadd.f32 %v324, %v1599
    %v1601 = vpop.f32.mrf.mxu0
    %v1602 = vadd.f32 %v320, %v1601
    %v1603 = vpop.f32.mrf.mxu0
    %v1604 = vadd.f32 %v324, %v1603
    %1605 = vmatprep.mubr.bf16.mxu0 %v757
    %1606 = vmatmul.mubr.bf16.gmra.mxu0 %v756
    %v1607 = vpop.f32.mrf.mxu0
    %v1608 = vadd.f32 %v320, %v1607
    %v1609 = vpop.f32.mrf.mxu0
    %v1610 = vadd.f32 %v324, %v1609
    %v1611 = vpop.f32.mrf.mxu0
    %v1612 = vadd.f32 %v320, %v1611
    %v1613 = vpop.f32.mrf.mxu0
    %v1614 = vadd.f32 %v324, %v1613
    %1615 = vmatprep.mubr.bf16.mxu0 %v764
    %1616 = vmatmul.mubr.bf16.gmra.mxu0 %v763
    %v1617 = vpop.f32.mrf.mxu0
    %v1618 = vadd.f32 %v320, %v1617
    %v1619 = vpop.f32.mrf.mxu0
    %v1620 = vadd.f32 %v324, %v1619
    %v1621 = vpop.f32.mrf.mxu0
    %v1622 = vadd.f32 %v320, %v1621
    %v1623 = vpop.f32.mrf.mxu0
    %v1624 = vadd.f32 %v324, %v1623
    %1625 = vmatprep.mubr.bf16.mxu0 %v771
    %1626 = vmatmul.mubr.bf16.gmra.mxu0 %v770
    %v1627 = vpop.f32.mrf.mxu0
    %v1628 = vadd.f32 %v320, %v1627
    %v1629 = vpop.f32.mrf.mxu0
    %v1630 = vadd.f32 %v324, %v1629
    %v1631 = vpop.f32.mrf.mxu0
    %v1632 = vadd.f32 %v320, %v1631
    %v1633 = vpop.f32.mrf.mxu0
    %v1634 = vadd.f32 %v324, %v1633
    %1635 = vmatprep.mubr.bf16.mxu0 %v778
    %1636 = vmatmul.mubr.bf16.gmra.mxu0 %v777
    %v1637 = vpop.f32.mrf.mxu0
    %v1638 = vadd.f32 %v320, %v1637
    %v1639 = vpop.f32.mrf.mxu0
    %v1640 = vadd.f32 %v324, %v1639
    %v1641 = vpop.f32.mrf.mxu0
    %v1642 = vadd.f32 %v320, %v1641
    %v1643 = vpop.f32.mrf.mxu0
    %v1644 = vadd.f32 %v324, %v1643
    %1645 = vmatprep.mubr.bf16.mxu0 %v785
    %1646 = vmatmul.mubr.bf16.gmra.mxu0 %v784
    %v1647 = vpop.f32.mrf.mxu0
    %v1648 = vadd.f32 %v320, %v1647
    %v1649 = vpop.f32.mrf.mxu0
    %v1650 = vadd.f32 %v324, %v1649
    %v1651 = vpop.f32.mrf.mxu0
    %v1652 = vadd.f32 %v320, %v1651
    %v1653 = vpop.f32.mrf.mxu0
    %v1654 = vadd.f32 %v324, %v1653
    %1655 = vdwg.mxu0
    %1656 = vmatprep.subr.bf16.mxu0 %v1286
    %1657 = vmatpush1.bf16.msra.mxu0 %v1285
    %1658 = vmatprep.subr.bf16.mxu0 %v1284
    %1659 = vmatpush1.bf16.msra.mxu0 %v1283
    %1660 = vmatprep.subr.bf16.mxu0 %v1282
    %1661 = vmatpush1.bf16.msra.mxu0 %v1281
    %1662 = vmatprep.subr.bf16.mxu0 %v1280
    %1663 = vmatpush1.bf16.msra.mxu0 %v1279
    %1664 = vmatprep.subr.bf16.mxu0 %v1278
    %1665 = vmatpush1.bf16.msra.mxu0 %v1277
    %1666 = vmatprep.subr.bf16.mxu0 %v1276
    %1667 = vmatpush1.bf16.msra.mxu0 %v1275
    %1668 = vmatprep.subr.bf16.mxu0 %v1274
    %1669 = vmatpush1.bf16.msra.mxu0 %v1273
    %1670 = vmatprep.subr.bf16.mxu0 %v1272
    %1671 = vmatpush1.bf16.msra.mxu0 %v1271
    %1672 = vmatprep.subr.bf16.mxu0 %v1302
    %1673 = vmatpush2.bf16.msra.mxu0 %v1301
    %1674 = vmatprep.subr.bf16.mxu0 %v1300
    %1675 = vmatpush2.bf16.msra.mxu0 %v1299
    %1676 = vmatprep.subr.bf16.mxu0 %v1298
    %1677 = vmatpush2.bf16.msra.mxu0 %v1297
    %1678 = vmatprep.subr.bf16.mxu0 %v1296
    %1679 = vmatpush2.bf16.msra.mxu0 %v1295
    %1680 = vmatprep.subr.bf16.mxu0 %v1294
    %1681 = vmatpush2.bf16.msra.mxu0 %v1293
    %1682 = vmatprep.subr.bf16.mxu0 %v1292
    %1683 = vmatpush2.bf16.msra.mxu0 %v1291
    %1684 = vmatprep.subr.bf16.mxu0 %v1290
    %1685 = vmatpush2.bf16.msra.mxu0 %v1289
    %1686 = vmatprep.subr.bf16.mxu0 %v1288
    %1687 = vmatpush2.bf16.msra.mxu0 %v1287
    %1688 = vmatprep.mubr.bf16.mxu0 %v682
    %1689 = vmatmul.mubr.bf16.gmra.mxu0 %v681
    %v1690 = vpop.f32.mrf.mxu0
    %v1691 = vadd.f32 %v1498, %v1690
    %v1692 = vpop.f32.mrf.mxu0
    %v1693 = vadd.f32 %v1500, %v1692
    %v1694 = vpop.f32.mrf.mxu0
    %v1695 = vadd.f32 %v1502, %v1694
    %v1696 = vpop.f32.mrf.mxu0
    %v1697 = vadd.f32 %v1504, %v1696
    %1698 = vmatprep.mubr.bf16.mxu0 %v689
    %1699 = vmatmul.mubr.bf16.gmra.mxu0 %v688
    %v1700 = vpop.f32.mrf.mxu0
    %v1701 = vadd.f32 %v1508, %v1700
    %v1702 = vpop.f32.mrf.mxu0
    %v1703 = vadd.f32 %v1510, %v1702
    %v1704 = vpop.f32.mrf.mxu0
    %v1705 = vadd.f32 %v1512, %v1704
    %v1706 = vpop.f32.mrf.mxu0
    %v1707 = vadd.f32 %v1514, %v1706
    %1708 = vmatprep.mubr.bf16.mxu0 %v696
    %1709 = vmatmul.mubr.bf16.gmra.mxu0 %v695
    %v1710 = vpop.f32.mrf.mxu0
    %v1711 = vadd.f32 %v1518, %v1710
    %v1712 = vpop.f32.mrf.mxu0
    %v1713 = vadd.f32 %v1520, %v1712
    %v1714 = vpop.f32.mrf.mxu0
    %v1715 = vadd.f32 %v1522, %v1714
    %v1716 = vpop.f32.mrf.mxu0
    %v1717 = vadd.f32 %v1524, %v1716
    %1718 = vmatprep.mubr.bf16.mxu0 %v703
    %1719 = vmatmul.mubr.bf16.gmra.mxu0 %v702
    %v1720 = vpop.f32.mrf.mxu0
    %v1721 = vadd.f32 %v1528, %v1720
    %v1722 = vpop.f32.mrf.mxu0
    %v1723 = vadd.f32 %v1530, %v1722
    %v1724 = vpop.f32.mrf.mxu0
    %v1725 = vadd.f32 %v1532, %v1724
    %v1726 = vpop.f32.mrf.mxu0
    %v1727 = vadd.f32 %v1534, %v1726
    %1728 = vmatprep.mubr.bf16.mxu0 %v710
    %1729 = vmatmul.mubr.bf16.gmra.mxu0 %v709
    %v1730 = vpop.f32.mrf.mxu0
    %v1731 = vadd.f32 %v1538, %v1730
    %v1732 = vpop.f32.mrf.mxu0
    %v1733 = vadd.f32 %v1540, %v1732
    %v1734 = vpop.f32.mrf.mxu0
    %v1735 = vadd.f32 %v1542, %v1734
    %v1736 = vpop.f32.mrf.mxu0
    %v1737 = vadd.f32 %v1544, %v1736
    %1738 = vmatprep.mubr.bf16.mxu0 %v717
    %1739 = vmatmul.mubr.bf16.gmra.mxu0 %v716
    %v1740 = vpop.f32.mrf.mxu0
    %v1741 = vadd.f32 %v1548, %v1740
    %v1742 = vpop.f32.mrf.mxu0
    %v1743 = vadd.f32 %v1550, %v1742
    %v1744 = vpop.f32.mrf.mxu0
    %v1745 = vadd.f32 %v1552, %v1744
    %v1746 = vpop.f32.mrf.mxu0
    %v1747 = vadd.f32 %v1554, %v1746
    %1748 = vmatprep.mubr.bf16.mxu0 %v724
    %1749 = vmatmul.mubr.bf16.gmra.mxu0 %v723
    %v1750 = vpop.f32.mrf.mxu0
    %v1751 = vadd.f32 %v1558, %v1750
    %v1752 = vpop.f32.mrf.mxu0
    %v1753 = vadd.f32 %v1560, %v1752
    %v1754 = vpop.f32.mrf.mxu0
    %v1755 = vadd.f32 %v1562, %v1754
    %v1756 = vpop.f32.mrf.mxu0
    %v1757 = vadd.f32 %v1564, %v1756
    %1758 = vmatprep.mubr.bf16.mxu0 %v731
    %1759 = vmatmul.mubr.bf16.gmra.mxu0 %v730
    %v1760 = vpop.f32.mrf.mxu0
    %v1761 = vadd.f32 %v1568, %v1760
    %v1762 = vpop.f32.mrf.mxu0
    %v1763 = vadd.f32 %v1570, %v1762
    %v1764 = vpop.f32.mrf.mxu0
    %v1765 = vadd.f32 %v1572, %v1764
    %v1766 = vpop.f32.mrf.mxu0
    %v1767 = vadd.f32 %v1574, %v1766
    %1768 = vmatprep.mubr.bf16.mxu0 %v738
    %1769 = vmatmul.mubr.bf16.gmra.mxu0 %v737
    %v1770 = vpop.f32.mrf.mxu0
    %v1771 = vadd.f32 %v1578, %v1770
    %v1772 = vpop.f32.mrf.mxu0
    %v1773 = vadd.f32 %v1580, %v1772
    %v1774 = vpop.f32.mrf.mxu0
    %v1775 = vadd.f32 %v1582, %v1774
    %v1776 = vpop.f32.mrf.mxu0
    %v1777 = vadd.f32 %v1584, %v1776
    %1778 = vmatprep.mubr.bf16.mxu0 %v745
    %1779 = vmatmul.mubr.bf16.gmra.mxu0 %v744
    %v1780 = vpop.f32.mrf.mxu0
    %v1781 = vadd.f32 %v1588, %v1780
    %v1782 = vpop.f32.mrf.mxu0
    %v1783 = vadd.f32 %v1590, %v1782
    %v1784 = vpop.f32.mrf.mxu0
    %v1785 = vadd.f32 %v1592, %v1784
    %v1786 = vpop.f32.mrf.mxu0
    %v1787 = vadd.f32 %v1594, %v1786
    %1788 = vmatprep.mubr.bf16.mxu0 %v752
    %1789 = vmatmul.mubr.bf16.gmra.mxu0 %v751
    %v1790 = vpop.f32.mrf.mxu0
    %v1791 = vadd.f32 %v1598, %v1790
    %v1792 = vpop.f32.mrf.mxu0
    %v1793 = vadd.f32 %v1600, %v1792
    %v1794 = vpop.f32.mrf.mxu0
    %v1795 = vadd.f32 %v1602, %v1794
    %v1796 = vpop.f32.mrf.mxu0
    %v1797 = vadd.f32 %v1604, %v1796
    %1798 = vmatprep.mubr.bf16.mxu0 %v759
    %1799 = vmatmul.mubr.bf16.gmra.mxu0 %v758
    %v1800 = vpop.f32.mrf.mxu0
    %v1801 = vadd.f32 %v1608, %v1800
    %v1802 = vpop.f32.mrf.mxu0
    %v1803 = vadd.f32 %v1610, %v1802
    %v1804 = vpop.f32.mrf.mxu0
    %v1805 = vadd.f32 %v1612, %v1804
    %v1806 = vpop.f32.mrf.mxu0
    %v1807 = vadd.f32 %v1614, %v1806
    %1808 = vmatprep.mubr.bf16.mxu0 %v766
    %1809 = vmatmul.mubr.bf16.gmra.mxu0 %v765
    %v1810 = vpop.f32.mrf.mxu0
    %v1811 = vadd.f32 %v1618, %v1810
    %v1812 = vpop.f32.mrf.mxu0
    %v1813 = vadd.f32 %v1620, %v1812
    %v1814 = vpop.f32.mrf.mxu0
    %v1815 = vadd.f32 %v1622, %v1814
    %v1816 = vpop.f32.mrf.mxu0
    %v1817 = vadd.f32 %v1624, %v1816
    %1818 = vmatprep.mubr.bf16.mxu0 %v773
    %1819 = vmatmul.mubr.bf16.gmra.mxu0 %v772
    %v1820 = vpop.f32.mrf.mxu0
    %v1821 = vadd.f32 %v1628, %v1820
    %v1822 = vpop.f32.mrf.mxu0
    %v1823 = vadd.f32 %v1630, %v1822
    %v1824 = vpop.f32.mrf.mxu0
    %v1825 = vadd.f32 %v1632, %v1824
    %v1826 = vpop.f32.mrf.mxu0
    %v1827 = vadd.f32 %v1634, %v1826
    %1828 = vmatprep.mubr.bf16.mxu0 %v780
    %1829 = vmatmul.mubr.bf16.gmra.mxu0 %v779
    %v1830 = vpop.f32.mrf.mxu0
    %v1831 = vadd.f32 %v1638, %v1830
    %v1832 = vpop.f32.mrf.mxu0
    %v1833 = vadd.f32 %v1640, %v1832
    %v1834 = vpop.f32.mrf.mxu0
    %v1835 = vadd.f32 %v1642, %v1834
    %v1836 = vpop.f32.mrf.mxu0
    %v1837 = vadd.f32 %v1644, %v1836
    %1838 = vmatprep.mubr.bf16.mxu0 %v787
    %1839 = vmatmul.mubr.bf16.gmra.mxu0 %v786
    %v1840 = vpop.f32.mrf.mxu0
    %v1841 = vadd.f32 %v1648, %v1840
    %v1842 = vpop.f32.mrf.mxu0
    %v1843 = vadd.f32 %v1650, %v1842
    %v1844 = vpop.f32.mrf.mxu0
    %v1845 = vadd.f32 %v1652, %v1844
    %v1846 = vpop.f32.mrf.mxu0
    %v1847 = vadd.f32 %v1654, %v1846
    %1848 = vdwg.mxu0
    %1849 = vmatprep.subr.bf16.mxu0 %v1318
    %1850 = vmatpush1.bf16.msra.mxu0 %v1317
    %1851 = vmatprep.subr.bf16.mxu0 %v1316
    %1852 = vmatpush1.bf16.msra.mxu0 %v1315
    %1853 = vmatprep.subr.bf16.mxu0 %v1314
    %1854 = vmatpush1.bf16.msra.mxu0 %v1313
    %1855 = vmatprep.subr.bf16.mxu0 %v1312
    %1856 = vmatpush1.bf16.msra.mxu0 %v1311
    %1857 = vmatprep.subr.bf16.mxu0 %v1310
    %1858 = vmatpush1.bf16.msra.mxu0 %v1309
    %1859 = vmatprep.subr.bf16.mxu0 %v1308
    %1860 = vmatpush1.bf16.msra.mxu0 %v1307
    %1861 = vmatprep.subr.bf16.mxu0 %v1306
    %1862 = vmatpush1.bf16.msra.mxu0 %v1305
    %1863 = vmatprep.subr.bf16.mxu0 %v1304
    %1864 = vmatpush1.bf16.msra.mxu0 %v1303
    %1865 = vmatprep.subr.bf16.mxu0 %v1334
    %1866 = vmatpush2.bf16.msra.mxu0 %v1333
    %1867 = vmatprep.subr.bf16.mxu0 %v1332
    %1868 = vmatpush2.bf16.msra.mxu0 %v1331
    %1869 = vmatprep.subr.bf16.mxu0 %v1330
    %1870 = vmatpush2.bf16.msra.mxu0 %v1329
    %1871 = vmatprep.subr.bf16.mxu0 %v1328
    %1872 = vmatpush2.bf16.msra.mxu0 %v1327
    %1873 = vmatprep.subr.bf16.mxu0 %v1326
    %1874 = vmatpush2.bf16.msra.mxu0 %v1325
    %1875 = vmatprep.subr.bf16.mxu0 %v1324
    %1876 = vmatpush2.bf16.msra.mxu0 %v1323
    %1877 = vmatprep.subr.bf16.mxu0 %v1322
    %1878 = vmatpush2.bf16.msra.mxu0 %v1321
    %1879 = vmatprep.subr.bf16.mxu0 %v1320
    %1880 = vmatpush2.bf16.msra.mxu0 %v1319
    %1881 = vmatprep.mubr.bf16.mxu0 %v684
    %1882 = vmatmul.mubr.bf16.gmra.mxu0 %v683
    %v1883 = vpop.f32.mrf.mxu0
    %v1884 = vadd.f32 %v1691, %v1883
    %v1885 = vpop.f32.mrf.mxu0
    %v1886 = vadd.f32 %v1693, %v1885
    %v1887 = vpop.f32.mrf.mxu0
    %v1888 = vadd.f32 %v1695, %v1887
    %v1889 = vpop.f32.mrf.mxu0
    %v1890 = vadd.f32 %v1697, %v1889
    %1891 = vmatprep.mubr.bf16.mxu0 %v691
    %1892 = vmatmul.mubr.bf16.gmra.mxu0 %v690
    %v1893 = vpop.f32.mrf.mxu0
    %v1894 = vadd.f32 %v1701, %v1893
    %v1895 = vpop.f32.mrf.mxu0
    %v1896 = vadd.f32 %v1703, %v1895
    %v1897 = vpop.f32.mrf.mxu0
    %v1898 = vadd.f32 %v1705, %v1897
    %v1899 = vpop.f32.mrf.mxu0
    %v1900 = vadd.f32 %v1707, %v1899
    %1901 = vmatprep.mubr.bf16.mxu0 %v698
    %1902 = vmatmul.mubr.bf16.gmra.mxu0 %v697
    %v1903 = vpop.f32.mrf.mxu0
    %v1904 = vadd.f32 %v1711, %v1903
    %v1905 = vpop.f32.mrf.mxu0
    %v1906 = vadd.f32 %v1713, %v1905
    %v1907 = vpop.f32.mrf.mxu0
    %v1908 = vadd.f32 %v1715, %v1907
    %v1909 = vpop.f32.mrf.mxu0
    %v1910 = vadd.f32 %v1717, %v1909
    %1911 = vmatprep.mubr.bf16.mxu0 %v705
    %1912 = vmatmul.mubr.bf16.gmra.mxu0 %v704
    %v1913 = vpop.f32.mrf.mxu0
    %v1914 = vadd.f32 %v1721, %v1913
    %v1915 = vpop.f32.mrf.mxu0
    %v1916 = vadd.f32 %v1723, %v1915
    %v1917 = vpop.f32.mrf.mxu0
    %v1918 = vadd.f32 %v1725, %v1917
    %v1919 = vpop.f32.mrf.mxu0
    %v1920 = vadd.f32 %v1727, %v1919
    %1921 = vmatprep.mubr.bf16.mxu0 %v712
    %1922 = vmatmul.mubr.bf16.gmra.mxu0 %v711
    %v1923 = vpop.f32.mrf.mxu0
    %v1924 = vadd.f32 %v1731, %v1923
    %v1925 = vpop.f32.mrf.mxu0
    %v1926 = vadd.f32 %v1733, %v1925
    %v1927 = vpop.f32.mrf.mxu0
    %v1928 = vadd.f32 %v1735, %v1927
    %v1929 = vpop.f32.mrf.mxu0
    %v1930 = vadd.f32 %v1737, %v1929
    %1931 = vmatprep.mubr.bf16.mxu0 %v719
    %1932 = vmatmul.mubr.bf16.gmra.mxu0 %v718
    %v1933 = vpop.f32.mrf.mxu0
    %v1934 = vadd.f32 %v1741, %v1933
    %v1935 = vpop.f32.mrf.mxu0
    %v1936 = vadd.f32 %v1743, %v1935
    %v1937 = vpop.f32.mrf.mxu0
    %v1938 = vadd.f32 %v1745, %v1937
    %v1939 = vpop.f32.mrf.mxu0
    %v1940 = vadd.f32 %v1747, %v1939
    %1941 = vmatprep.mubr.bf16.mxu0 %v726
    %1942 = vmatmul.mubr.bf16.gmra.mxu0 %v725
    %v1943 = vpop.f32.mrf.mxu0
    %v1944 = vadd.f32 %v1751, %v1943
    %v1945 = vpop.f32.mrf.mxu0
    %v1946 = vadd.f32 %v1753, %v1945
    %v1947 = vpop.f32.mrf.mxu0
    %v1948 = vadd.f32 %v1755, %v1947
    %v1949 = vpop.f32.mrf.mxu0
    %v1950 = vadd.f32 %v1757, %v1949
    %1951 = vmatprep.mubr.bf16.mxu0 %v733
    %1952 = vmatmul.mubr.bf16.gmra.mxu0 %v732
    %v1953 = vpop.f32.mrf.mxu0
    %v1954 = vadd.f32 %v1761, %v1953
    %v1955 = vpop.f32.mrf.mxu0
    %v1956 = vadd.f32 %v1763, %v1955
    %v1957 = vpop.f32.mrf.mxu0
    %v1958 = vadd.f32 %v1765, %v1957
    %v1959 = vpop.f32.mrf.mxu0
    %v1960 = vadd.f32 %v1767, %v1959
    %1961 = vmatprep.mubr.bf16.mxu0 %v740
    %1962 = vmatmul.mubr.bf16.gmra.mxu0 %v739
    %v1963 = vpop.f32.mrf.mxu0
    %v1964 = vadd.f32 %v1771, %v1963
    %v1965 = vpop.f32.mrf.mxu0
    %v1966 = vadd.f32 %v1773, %v1965
    %v1967 = vpop.f32.mrf.mxu0
    %v1968 = vadd.f32 %v1775, %v1967
    %v1969 = vpop.f32.mrf.mxu0
    %v1970 = vadd.f32 %v1777, %v1969
    %1971 = vmatprep.mubr.bf16.mxu0 %v747
    %1972 = vmatmul.mubr.bf16.gmra.mxu0 %v746
    %v1973 = vpop.f32.mrf.mxu0
    %v1974 = vadd.f32 %v1781, %v1973
    %v1975 = vpop.f32.mrf.mxu0
    %v1976 = vadd.f32 %v1783, %v1975
    %v1977 = vpop.f32.mrf.mxu0
    %v1978 = vadd.f32 %v1785, %v1977
    %v1979 = vpop.f32.mrf.mxu0
    %v1980 = vadd.f32 %v1787, %v1979
    %1981 = vmatprep.mubr.bf16.mxu0 %v754
    %1982 = vmatmul.mubr.bf16.gmra.mxu0 %v753
    %v1983 = vpop.f32.mrf.mxu0
    %v1984 = vadd.f32 %v1791, %v1983
    %v1985 = vpop.f32.mrf.mxu0
    %v1986 = vadd.f32 %v1793, %v1985
    %v1987 = vpop.f32.mrf.mxu0
    %v1988 = vadd.f32 %v1795, %v1987
    %v1989 = vpop.f32.mrf.mxu0
    %v1990 = vadd.f32 %v1797, %v1989
    %1991 = vmatprep.mubr.bf16.mxu0 %v761
    %1992 = vmatmul.mubr.bf16.gmra.mxu0 %v760
    %v1993 = vpop.f32.mrf.mxu0
    %v1994 = vadd.f32 %v1801, %v1993
    %v1995 = vpop.f32.mrf.mxu0
    %v1996 = vadd.f32 %v1803, %v1995
    %v1997 = vpop.f32.mrf.mxu0
    %v1998 = vadd.f32 %v1805, %v1997
    %v1999 = vpop.f32.mrf.mxu0
    %v2000 = vadd.f32 %v1807, %v1999
    %2001 = vmatprep.mubr.bf16.mxu0 %v768
    %2002 = vmatmul.mubr.bf16.gmra.mxu0 %v767
    %v2003 = vpop.f32.mrf.mxu0
    %v2004 = vadd.f32 %v1811, %v2003
    %v2005 = vpop.f32.mrf.mxu0
    %v2006 = vadd.f32 %v1813, %v2005
    %v2007 = vpop.f32.mrf.mxu0
    %v2008 = vadd.f32 %v1815, %v2007
    %v2009 = vpop.f32.mrf.mxu0
    %v2010 = vadd.f32 %v1817, %v2009
    %2011 = vmatprep.mubr.bf16.mxu0 %v775
    %2012 = vmatmul.mubr.bf16.gmra.mxu0 %v774
    %v2013 = vpop.f32.mrf.mxu0
    %v2014 = vadd.f32 %v1821, %v2013
    %v2015 = vpop.f32.mrf.mxu0
    %v2016 = vadd.f32 %v1823, %v2015
    %v2017 = vpop.f32.mrf.mxu0
    %v2018 = vadd.f32 %v1825, %v2017
    %v2019 = vpop.f32.mrf.mxu0
    %v2020 = vadd.f32 %v1827, %v2019
    %2021 = vmatprep.mubr.bf16.mxu0 %v782
    %2022 = vmatmul.mubr.bf16.gmra.mxu0 %v781
    %v2023 = vpop.f32.mrf.mxu0
    %v2024 = vadd.f32 %v1831, %v2023
    %v2025 = vpop.f32.mrf.mxu0
    %v2026 = vadd.f32 %v1833, %v2025
    %v2027 = vpop.f32.mrf.mxu0
    %v2028 = vadd.f32 %v1835, %v2027
    %v2029 = vpop.f32.mrf.mxu0
    %v2030 = vadd.f32 %v1837, %v2029
    %2031 = vmatprep.mubr.bf16.mxu0 %v789
    %2032 = vmatmul.mubr.bf16.gmra.mxu0 %v788
    %v2033 = vpop.f32.mrf.mxu0
    %v2034 = vadd.f32 %v1841, %v2033
    %v2035 = vpop.f32.mrf.mxu0
    %v2036 = vadd.f32 %v1843, %v2035
    %v2037 = vpop.f32.mrf.mxu0
    %v2038 = vadd.f32 %v1845, %v2037
    %v2039 = vpop.f32.mrf.mxu0
    %v2040 = vadd.f32 %v1847, %v2039
    %2041 = vdwg.mxu0
    %2042 = vmatprep.subr.bf16.mxu0 %v1350
    %2043 = vmatpush1.bf16.msra.mxu0 %v1349
    %2044 = vmatprep.subr.bf16.mxu0 %v1348
    %2045 = vmatpush1.bf16.msra.mxu0 %v1347
    %2046 = vmatprep.subr.bf16.mxu0 %v1346
    %2047 = vmatpush1.bf16.msra.mxu0 %v1345
    %2048 = vmatprep.subr.bf16.mxu0 %v1344
    %2049 = vmatpush1.bf16.msra.mxu0 %v1343
    %2050 = vmatprep.subr.bf16.mxu0 %v1342
    %2051 = vmatpush1.bf16.msra.mxu0 %v1341
    %2052 = vmatprep.subr.bf16.mxu0 %v1340
    %2053 = vmatpush1.bf16.msra.mxu0 %v1339
    %2054 = vmatprep.subr.bf16.mxu0 %v1338
    %2055 = vmatpush1.bf16.msra.mxu0 %v1337
    %2056 = vmatprep.subr.bf16.mxu0 %v1336
    %2057 = vmatpush1.bf16.msra.mxu0 %v1335
    %2058 = vmatprep.subr.bf16.mxu0 0
    %2059 = vmatpush2.bf16.msra.mxu0 0
    %2060 = vmatprep.subr.bf16.mxu0 0
    %2061 = vmatpush2.bf16.msra.mxu0 0
    %2062 = vmatprep.subr.bf16.mxu0 0
    %2063 = vmatpush2.bf16.msra.mxu0 0
    %2064 = vmatprep.subr.bf16.mxu0 0
    %2065 = vmatpush2.bf16.msra.mxu0 0
    %2066 = vmatprep.subr.bf16.mxu0 0
    %2067 = vmatpush2.bf16.msra.mxu0 0
    %2068 = vmatprep.subr.bf16.mxu0 0
    %2069 = vmatpush2.bf16.msra.mxu0 0
    %2070 = vmatprep.subr.bf16.mxu0 0
    %2071 = vmatpush2.bf16.msra.mxu0 0
    %2072 = vmatprep.subr.bf16.mxu0 0
    %2073 = vmatpush2.bf16.msra.mxu0 0
    %2074 = vmatprep.mubr.bf16.mxu0 0
    %2075 = vmatmul.mubr.bf16.gmra.mxu0 %v685
    %v2076 = vpop.f32.mrf.mxu0
    %v2077 = vadd.f32 %v1884, %v2076
    %v2078 = vpop.f32.mrf.mxu0
    %v2079 = vadd.f32 %v1886, %v2078
    %v2080 = vpop.f32.mrf.mxu0
    %v2081 = vadd.f32 %v1888, %v2080
    %v2082 = vpop.f32.mrf.mxu0
    %v2083 = vadd.f32 %v1890, %v2082
    %2084 = vmatprep.mubr.bf16.mxu0 0
    %2085 = vmatmul.mubr.bf16.gmra.mxu0 %v692
    %v2086 = vpop.f32.mrf.mxu0
    %v2087 = vadd.f32 %v1894, %v2086
    %v2088 = vpop.f32.mrf.mxu0
    %v2089 = vadd.f32 %v1896, %v2088
    %v2090 = vpop.f32.mrf.mxu0
    %v2091 = vadd.f32 %v1898, %v2090
    %v2092 = vpop.f32.mrf.mxu0
    %v2093 = vadd.f32 %v1900, %v2092
    %2094 = vmatprep.mubr.bf16.mxu0 0
    %2095 = vmatmul.mubr.bf16.gmra.mxu0 %v699
    %v2096 = vpop.f32.mrf.mxu0
    %v2097 = vadd.f32 %v1904, %v2096
    %v2098 = vpop.f32.mrf.mxu0
    %v2099 = vadd.f32 %v1906, %v2098
    %v2100 = vpop.f32.mrf.mxu0
    %v2101 = vadd.f32 %v1908, %v2100
    %v2102 = vpop.f32.mrf.mxu0
    %v2103 = vadd.f32 %v1910, %v2102
    %2104 = vmatprep.mubr.bf16.mxu0 0
    %2105 = vmatmul.mubr.bf16.gmra.mxu0 %v706
    %v2106 = vpop.f32.mrf.mxu0
    %v2107 = vadd.f32 %v1914, %v2106
    %v2108 = vpop.f32.mrf.mxu0
    %v2109 = vadd.f32 %v1916, %v2108
    %v2110 = vpop.f32.mrf.mxu0
    %v2111 = vadd.f32 %v1918, %v2110
    %v2112 = vpop.f32.mrf.mxu0
    %v2113 = vadd.f32 %v1920, %v2112
    %2114 = vmatprep.mubr.bf16.mxu0 0
    %2115 = vmatmul.mubr.bf16.gmra.mxu0 %v713
    %v2116 = vpop.f32.mrf.mxu0
    %v2117 = vadd.f32 %v1924, %v2116
    %v2118 = vpop.f32.mrf.mxu0
    %v2119 = vadd.f32 %v1926, %v2118
    %v2120 = vpop.f32.mrf.mxu0
    %v2121 = vadd.f32 %v1928, %v2120
    %v2122 = vpop.f32.mrf.mxu0
    %v2123 = vadd.f32 %v1930, %v2122
    %2124 = vmatprep.mubr.bf16.mxu0 0
    %2125 = vmatmul.mubr.bf16.gmra.mxu0 %v720
    %v2126 = vpop.f32.mrf.mxu0
    %v2127 = vadd.f32 %v1934, %v2126
    %v2128 = vpop.f32.mrf.mxu0
    %v2129 = vadd.f32 %v1936, %v2128
    %v2130 = vpop.f32.mrf.mxu0
    %v2131 = vadd.f32 %v1938, %v2130
    %v2132 = vpop.f32.mrf.mxu0
    %v2133 = vadd.f32 %v1940, %v2132
    %2134 = vmatprep.mubr.bf16.mxu0 0
    %2135 = vmatmul.mubr.bf16.gmra.mxu0 %v727
    %v2136 = vpop.f32.mrf.mxu0
    %v2137 = vadd.f32 %v1944, %v2136
    %v2138 = vpop.f32.mrf.mxu0
    %v2139 = vadd.f32 %v1946, %v2138
    %v2140 = vpop.f32.mrf.mxu0
    %v2141 = vadd.f32 %v1948, %v2140
    %v2142 = vpop.f32.mrf.mxu0
    %v2143 = vadd.f32 %v1950, %v2142
    %2144 = vmatprep.mubr.bf16.mxu0 0
    %2145 = vmatmul.mubr.bf16.gmra.mxu0 %v734
    %v2146 = vpop.f32.mrf.mxu0
    %v2147 = vadd.f32 %v1954, %v2146
    %v2148 = vpop.f32.mrf.mxu0
    %v2149 = vadd.f32 %v1956, %v2148
    %v2150 = vpop.f32.mrf.mxu0
    %v2151 = vadd.f32 %v1958, %v2150
    %v2152 = vpop.f32.mrf.mxu0
    %v2153 = vadd.f32 %v1960, %v2152
    %2154 = vmatprep.mubr.bf16.mxu0 0
    %2155 = vmatmul.mubr.bf16.gmra.mxu0 %v741
    %v2156 = vpop.f32.mrf.mxu0
    %v2157 = vadd.f32 %v1964, %v2156
    %v2158 = vpop.f32.mrf.mxu0
    %v2159 = vadd.f32 %v1966, %v2158
    %v2160 = vpop.f32.mrf.mxu0
    %v2161 = vadd.f32 %v1968, %v2160
    %v2162 = vpop.f32.mrf.mxu0
    %v2163 = vadd.f32 %v1970, %v2162
    %2164 = vmatprep.mubr.bf16.mxu0 0
    %2165 = vmatmul.mubr.bf16.gmra.mxu0 %v748
    %v2166 = vpop.f32.mrf.mxu0
    %v2167 = vadd.f32 %v1974, %v2166
    %v2168 = vpop.f32.mrf.mxu0
    %v2169 = vadd.f32 %v1976, %v2168
    %v2170 = vpop.f32.mrf.mxu0
    %v2171 = vadd.f32 %v1978, %v2170
    %v2172 = vpop.f32.mrf.mxu0
    %v2173 = vadd.f32 %v1980, %v2172
    %2174 = vmatprep.mubr.bf16.mxu0 0
    %2175 = vmatmul.mubr.bf16.gmra.mxu0 %v755
    %v2176 = vpop.f32.mrf.mxu0
    %v2177 = vadd.f32 %v1984, %v2176
    %v2178 = vpop.f32.mrf.mxu0
    %v2179 = vadd.f32 %v1986, %v2178
    %v2180 = vpop.f32.mrf.mxu0
    %v2181 = vadd.f32 %v1988, %v2180
    %v2182 = vpop.f32.mrf.mxu0
    %v2183 = vadd.f32 %v1990, %v2182
    %2184 = vmatprep.mubr.bf16.mxu0 0
    %2185 = vmatmul.mubr.bf16.gmra.mxu0 %v762
    %v2186 = vpop.f32.mrf.mxu0
    %v2187 = vadd.f32 %v1994, %v2186
    %v2188 = vpop.f32.mrf.mxu0
    %v2189 = vadd.f32 %v1996, %v2188
    %v2190 = vpop.f32.mrf.mxu0
    %v2191 = vadd.f32 %v1998, %v2190
    %v2192 = vpop.f32.mrf.mxu0
    %v2193 = vadd.f32 %v2000, %v2192
    %2194 = vmatprep.mubr.bf16.mxu0 0
    %2195 = vmatmul.mubr.bf16.gmra.mxu0 %v769
    %v2196 = vpop.f32.mrf.mxu0
    %v2197 = vadd.f32 %v2004, %v2196
    %v2198 = vpop.f32.mrf.mxu0
    %v2199 = vadd.f32 %v2006, %v2198
    %v2200 = vpop.f32.mrf.mxu0
    %v2201 = vadd.f32 %v2008, %v2200
    %v2202 = vpop.f32.mrf.mxu0
    %v2203 = vadd.f32 %v2010, %v2202
    %2204 = vmatprep.mubr.bf16.mxu0 0
    %2205 = vmatmul.mubr.bf16.gmra.mxu0 %v776
    %v2206 = vpop.f32.mrf.mxu0
    %v2207 = vadd.f32 %v2014, %v2206
    %v2208 = vpop.f32.mrf.mxu0
    %v2209 = vadd.f32 %v2016, %v2208
    %v2210 = vpop.f32.mrf.mxu0
    %v2211 = vadd.f32 %v2018, %v2210
    %v2212 = vpop.f32.mrf.mxu0
    %v2213 = vadd.f32 %v2020, %v2212
    %2214 = vmatprep.mubr.bf16.mxu0 0
    %2215 = vmatmul.mubr.bf16.gmra.mxu0 %v783
    %v2216 = vpop.f32.mrf.mxu0
    %v2217 = vadd.f32 %v2024, %v2216
    %v2218 = vpop.f32.mrf.mxu0
    %v2219 = vadd.f32 %v2026, %v2218
    %v2220 = vpop.f32.mrf.mxu0
    %v2221 = vadd.f32 %v2028, %v2220
    %v2222 = vpop.f32.mrf.mxu0
    %v2223 = vadd.f32 %v2030, %v2222
    %2224 = vmatprep.mubr.bf16.mxu0 0
    %2225 = vmatmul.mubr.bf16.gmra.mxu0 %v790
    %v2226 = vpop.f32.mrf.mxu0
    %v2227 = vadd.f32 %v2034, %v2226
    %v2228 = vpop.f32.mrf.mxu0
    %v2229 = vadd.f32 %v2036, %v2228
    %v2230 = vpop.f32.mrf.mxu0
    %v2231 = vadd.f32 %v2038, %v2230
    %v2232 = vpop.f32.mrf.mxu0
    %v2233 = vadd.f32 %v2040, %v2232
    %2234 = vdwg.mxu0
    %v2235 = vmax.f32 %v2077, 0.0
    %v2236 = vmax.f32 %v2079, 0.0
    %v2237 = vmax.f32 %v2081, 0.0
    %v2238 = vmax.f32 %v2083, 0.0
    %v2239 = vmax.f32 %v2087, 0.0
    %v2240 = vmax.f32 %v2089, 0.0
    %v2241 = vmax.f32 %v2091, 0.0
    %v2242 = vmax.f32 %v2093, 0.0
    %v2243 = vmax.f32 %v2097, 0.0
    %v2244 = vmax.f32 %v2099, 0.0
    %v2245 = vmax.f32 %v2101, 0.0
    %v2246 = vmax.f32 %v2103, 0.0
    %v2247 = vmax.f32 %v2107, 0.0
    %v2248 = vmax.f32 %v2109, 0.0
    %v2249 = vmax.f32 %v2111, 0.0
    %v2250 = vmax.f32 %v2113, 0.0
    %v2251 = vmax.f32 %v2117, 0.0
    %v2252 = vmax.f32 %v2119, 0.0
    %v2253 = vmax.f32 %v2121, 0.0
    %v2254 = vmax.f32 %v2123, 0.0
    %v2255 = vmax.f32 %v2127, 0.0
    %v2256 = vmax.f32 %v2129, 0.0
    %v2257 = vmax.f32 %v2131, 0.0
    %v2258 = vmax.f32 %v2133, 0.0
    %v2259 = vmax.f32 %v2137, 0.0
    %v2260 = vmax.f32 %v2139, 0.0
    %v2261 = vmax.f32 %v2141, 0.0
    %v2262 = vmax.f32 %v2143, 0.0
    %v2263 = vmax.f32 %v2147, 0.0
    %v2264 = vmax.f32 %v2149, 0.0
    %v2265 = vmax.f32 %v2151, 0.0
    %v2266 = vmax.f32 %v2153, 0.0
    %v2267 = vmax.f32 %v2157, 0.0
    %v2268 = vmax.f32 %v2159, 0.0
    %v2269 = vmax.f32 %v2161, 0.0
    %v2270 = vmax.f32 %v2163, 0.0
    %v2271 = vmax.f32 %v2167, 0.0
    %v2272 = vmax.f32 %v2169, 0.0
    %v2273 = vmax.f32 %v2171, 0.0
    %v2274 = vmax.f32 %v2173, 0.0
    %v2275 = vmax.f32 %v2177, 0.0
    %v2276 = vmax.f32 %v2179, 0.0
    %v2277 = vmax.f32 %v2181, 0.0
    %v2278 = vmax.f32 %v2183, 0.0
    %v2279 = vmax.f32 %v2187, 0.0
    %v2280 = vmax.f32 %v2189, 0.0
    %v2281 = vmax.f32 %v2191, 0.0
    %v2282 = vmax.f32 %v2193, 0.0
    %v2283 = vmax.f32 %v2197, 0.0
    %v2284 = vmax.f32 %v2199, 0.0
    %v2285 = vmax.f32 %v2201, 0.0
    %v2286 = vmax.f32 %v2203, 0.0
    %v2287 = vmax.f32 %v2207, 0.0
    %v2288 = vmax.f32 %v2209, 0.0
    %v2289 = vmax.f32 %v2211, 0.0
    %v2290 = vmax.f32 %v2213, 0.0
    %v2291 = vmax.f32 %v2217, 0.0
    %v2292 = vmax.f32 %v2219, 0.0
    %v2293 = vmax.f32 %v2221, 0.0
    %v2294 = vmax.f32 %v2223, 0.0
    %v2295 = vmax.f32 %v2227, 0.0
    %v2296 = vmax.f32 %v2229, 0.0
    %v2297 = vmax.f32 %v2231, 0.0
    %v2298 = vmax.f32 %v2233, 0.0
    %v2299 = vpack.c.bf16 %v2237, %v2235
    %v2300 = vpack.c.bf16 %v2238, %v2236
    %v2301 = vpack.c.bf16 %v2241, %v2239
    %v2302 = vpack.c.bf16 %v2242, %v2240
    %v2303 = vpack.c.bf16 %v2245, %v2243
    %v2304 = vpack.c.bf16 %v2246, %v2244
    %v2305 = vpack.c.bf16 %v2249, %v2247
    %v2306 = vpack.c.bf16 %v2250, %v2248
    %v2307 = vpack.c.bf16 %v2253, %v2251
    %v2308 = vpack.c.bf16 %v2254, %v2252
    %v2309 = vpack.c.bf16 %v2257, %v2255
    %v2310 = vpack.c.bf16 %v2258, %v2256
    %v2311 = vpack.c.bf16 %v2261, %v2259
    %v2312 = vpack.c.bf16 %v2262, %v2260
    %v2313 = vpack.c.bf16 %v2265, %v2263
    %v2314 = vpack.c.bf16 %v2266, %v2264
    %v2315 = vpack.c.bf16 %v2269, %v2267
    %v2316 = vpack.c.bf16 %v2270, %v2268
    %v2317 = vpack.c.bf16 %v2273, %v2271
    %v2318 = vpack.c.bf16 %v2274, %v2272
    %v2319 = vpack.c.bf16 %v2277, %v2275
    %v2320 = vpack.c.bf16 %v2278, %v2276
    %v2321 = vpack.c.bf16 %v2281, %v2279
    %v2322 = vpack.c.bf16 %v2282, %v2280
    %v2323 = vpack.c.bf16 %v2285, %v2283
    %v2324 = vpack.c.bf16 %v2286, %v2284
    %v2325 = vpack.c.bf16 %v2289, %v2287
    %v2326 = vpack.c.bf16 %v2290, %v2288
    %v2327 = vpack.c.bf16 %v2293, %v2291
    %v2328 = vpack.c.bf16 %v2294, %v2292
    %v2329 = vpack.c.bf16 %v2297, %v2295
    %v2330 = vpack.c.bf16 %v2298, %v2296
    %v2331 = vld [vmem:[#allocation7] sm:$0xf]
    %v2332 = vld [vmem:[#allocation7 + $0x4] sm:$0xf]
    %v2333 = vld [vmem:[#allocation7 + $0x8] sm:$0xf]
    %v2334 = vld [vmem:[#allocation7 + $0xc] sm:$0xf]
    %v2335 = vld [vmem:[#allocation7 + $0x10] sm:$0xf]
    %v2336 = vld [vmem:[#allocation7 + $0x14] sm:$0xf]
    %v2337 = vld [vmem:[#allocation7 + $0x18] sm:$0xf]
    %v2338 = vld [vmem:[#allocation7 + $0x1c] sm:$0xf]
    %v2339 = vld [vmem:[#allocation7 + $0x20] sm:$0xf]
    %v2340 = vld [vmem:[#allocation7 + $0x24] sm:$0xf]
    %v2341 = vld [vmem:[#allocation7 + $0x28] sm:$0xf]
    %v2342 = vld [vmem:[#allocation7 + $0x2c] sm:$0xf]
    %v2343 = vld [vmem:[#allocation7 + $0x30] sm:$0xf]
    %v2344 = vld [vmem:[#allocation7 + $0x34] sm:$0xf]
    %v2345 = vld [vmem:[#allocation7 + $0x38] sm:$0xf]
    %v2346 = vld [vmem:[#allocation7 + $0x3c] sm:$0xf]
    %v2347 = vld [vmem:[#allocation7 + $0x40] sm:$0xf]
    %v2348 = vld [vmem:[#allocation7 + $0x44] sm:$0xf]
    %v2349 = vld [vmem:[#allocation7 + $0x48] sm:$0xf]
    %v2350 = vld [vmem:[#allocation7 + $0x4c] sm:$0xf]
    %v2351 = vld [vmem:[#allocation7 + $0x50] sm:$0xf]
    %v2352 = vld [vmem:[#allocation7 + $0x54] sm:$0xf]
    %v2353 = vld [vmem:[#allocation7 + $0x58] sm:$0xf]
    %v2354 = vld [vmem:[#allocation7 + $0x5c] sm:$0xf]
    %v2355 = vld [vmem:[#allocation7 + $0x60] sm:$0xf]
    %v2356 = vld [vmem:[#allocation7 + $0x64] sm:$0xf]
    %v2357 = vld [vmem:[#allocation7 + $0x68] sm:$0xf]
    %v2358 = vld [vmem:[#allocation7 + $0x6c] sm:$0xf]
    %v2359 = vld [vmem:[#allocation7 + $0x70] sm:$0xf]
    %v2360 = vld [vmem:[#allocation7 + $0x74] sm:$0xf]
    %v2361 = vld [vmem:[#allocation7 + $0x78] sm:$0xf]
    %v2362 = vld [vmem:[#allocation7 + $0x7c] sm:$0xf]
    %v2363 = vld [vmem:[%s4] sm:$0x1]
    %v2365 = vlaneseq
    %v2366 = vshrl.u32 %v2365, 7
    %v2367 = vsub.s32 0, %v2366
    %v2368 = vrot.slane %v2363, %v2367
    %v2402 = vunpack.c.l.b16 %v2331
    %v2403 = vunpack.c.l.b16 %v2332
    %v2404 = vunpack.c.l.b16 %v2333
    %v2405 = vunpack.c.l.b16 %v2334
    %v2406 = vunpack.c.l.b16 %v2335
    %v2407 = vunpack.c.l.b16 %v2336
    %v2408 = vunpack.c.l.b16 %v2337
    %v2409 = vunpack.c.l.b16 %v2338
    %v2410 = vunpack.c.l.b16 %v2339
    %v2411 = vunpack.c.l.b16 %v2340
    %v2412 = vunpack.c.l.b16 %v2341
    %v2413 = vunpack.c.l.b16 %v2342
    %v2414 = vunpack.c.l.b16 %v2343
    %v2415 = vunpack.c.l.b16 %v2344
    %v2416 = vunpack.c.l.b16 %v2345
    %v2417 = vunpack.c.l.b16 %v2346
    %v2418 = vunpack.c.l.b16 %v2347
    %v2419 = vunpack.c.l.b16 %v2348
    %v2420 = vunpack.c.l.b16 %v2349
    %v2421 = vunpack.c.l.b16 %v2350
    %v2422 = vunpack.c.l.b16 %v2351
    %v2423 = vunpack.c.l.b16 %v2352
    %v2424 = vunpack.c.l.b16 %v2353
    %v2425 = vunpack.c.l.b16 %v2354
    %v2426 = vunpack.c.l.b16 %v2355
    %v2427 = vunpack.c.l.b16 %v2356
    %v2428 = vunpack.c.l.b16 %v2357
    %v2429 = vunpack.c.l.b16 %v2358
    %v2430 = vunpack.c.l.b16 %v2359
    %v2431 = vunpack.c.l.b16 %v2360
    %v2432 = vunpack.c.l.b16 %v2361
    %v2433 = vunpack.c.l.b16 %v2362
    %v2434 = vpack.c.b16 %v2403, %v2402
    %v2435 = vpack.c.b16 %v2405, %v2404
    %v2436 = vpack.c.b16 %v2407, %v2406
    %v2437 = vpack.c.b16 %v2409, %v2408
    %v2438 = vpack.c.b16 %v2411, %v2410
    %v2439 = vpack.c.b16 %v2413, %v2412
    %v2440 = vpack.c.b16 %v2415, %v2414
    %v2441 = vpack.c.b16 %v2417, %v2416
    %v2442 = vpack.c.b16 %v2419, %v2418
    %v2443 = vpack.c.b16 %v2421, %v2420
    %v2444 = vpack.c.b16 %v2423, %v2422
    %v2445 = vpack.c.b16 %v2425, %v2424
    %v2446 = vpack.c.b16 %v2427, %v2426
    %v2447 = vpack.c.b16 %v2429, %v2428
    %v2448 = vpack.c.b16 %v2431, %v2430
    %v2449 = vpack.c.b16 %v2433, %v2432
    %2466 = vmatprep.subr.bf16.mxu0 0
    %2467 = vmatpush1.bf16.msra.mxu0 %v2441
    %2468 = vmatprep.subr.bf16.mxu0 0
    %2469 = vmatpush1.bf16.msra.mxu0 %v2440
    %2470 = vmatprep.subr.bf16.mxu0 0
    %2471 = vmatpush1.bf16.msra.mxu0 %v2439
    %2472 = vmatprep.subr.bf16.mxu0 0
    %2473 = vmatpush1.bf16.msra.mxu0 %v2438
    %2474 = vmatprep.subr.bf16.mxu0 0
    %2475 = vmatpush1.bf16.msra.mxu0 %v2437
    %2476 = vmatprep.subr.bf16.mxu0 0
    %2477 = vmatpush1.bf16.msra.mxu0 %v2436
    %2478 = vmatprep.subr.bf16.mxu0 0
    %2479 = vmatpush1.bf16.msra.mxu0 %v2435
    %2480 = vmatprep.subr.bf16.mxu0 0
    %2481 = vmatpush1.bf16.msra.mxu0 %v2434
    %2482 = vmatprep.subr.bf16.mxu0 0
    %2483 = vmatpush2.bf16.msra.mxu0 %v2449
    %2484 = vmatprep.subr.bf16.mxu0 0
    %2485 = vmatpush2.bf16.msra.mxu0 %v2448
    %2486 = vmatprep.subr.bf16.mxu0 0
    %2487 = vmatpush2.bf16.msra.mxu0 %v2447
    %2488 = vmatprep.subr.bf16.mxu0 0
    %2489 = vmatpush2.bf16.msra.mxu0 %v2446
    %2490 = vmatprep.subr.bf16.mxu0 0
    %2491 = vmatpush2.bf16.msra.mxu0 %v2445
    %2492 = vmatprep.subr.bf16.mxu0 0
    %2493 = vmatpush2.bf16.msra.mxu0 %v2444
    %2494 = vmatprep.subr.bf16.mxu0 0
    %2495 = vmatpush2.bf16.msra.mxu0 %v2443
    %2496 = vmatprep.subr.bf16.mxu0 0
    %2497 = vmatpush2.bf16.msra.mxu0 %v2442
    %2498 = vmatprep.mubr.bf16.mxu0 %v2300
    %2499 = vmatmul.mubr.bf16.gmra.mxu0 %v2299
    %v2500 = vpop.f32.mrf.mxu0
    %v2501 = vadd.f32 %v2368, %v2500
    %v2502 = vpop.f32.mrf.mxu0
    %v2503 = vpop.f32.mrf.mxu0
    %v2504 = vadd.f32 %v2368, %v2503
    %v2505 = vpop.f32.mrf.mxu0
    %2506 = vmatprep.mubr.bf16.mxu0 %v2302
    %2507 = vmatmul.mubr.bf16.gmra.mxu0 %v2301
    %v2508 = vpop.f32.mrf.mxu0
    %v2509 = vadd.f32 %v2368, %v2508
    %v2510 = vpop.f32.mrf.mxu0
    %v2511 = vpop.f32.mrf.mxu0
    %v2512 = vadd.f32 %v2368, %v2511
    %v2513 = vpop.f32.mrf.mxu0
    %2514 = vmatprep.mubr.bf16.mxu0 %v2304
    %2515 = vmatmul.mubr.bf16.gmra.mxu0 %v2303
    %v2516 = vpop.f32.mrf.mxu0
    %v2517 = vadd.f32 %v2368, %v2516
    %v2518 = vpop.f32.mrf.mxu0
    %v2519 = vpop.f32.mrf.mxu0
    %v2520 = vadd.f32 %v2368, %v2519
    %v2521 = vpop.f32.mrf.mxu0
    %2522 = vmatprep.mubr.bf16.mxu0 %v2306
    %2523 = vmatmul.mubr.bf16.gmra.mxu0 %v2305
    %v2524 = vpop.f32.mrf.mxu0
    %v2525 = vadd.f32 %v2368, %v2524
    %v2526 = vpop.f32.mrf.mxu0
    %v2527 = vpop.f32.mrf.mxu0
    %v2528 = vadd.f32 %v2368, %v2527
    %v2529 = vpop.f32.mrf.mxu0
    %2530 = vmatprep.mubr.bf16.mxu0 %v2308
    %2531 = vmatmul.mubr.bf16.gmra.mxu0 %v2307
    %v2532 = vpop.f32.mrf.mxu0
    %v2533 = vadd.f32 %v2368, %v2532
    %v2534 = vpop.f32.mrf.mxu0
    %v2535 = vpop.f32.mrf.mxu0
    %v2536 = vadd.f32 %v2368, %v2535
    %v2537 = vpop.f32.mrf.mxu0
    %2538 = vmatprep.mubr.bf16.mxu0 %v2310
    %2539 = vmatmul.mubr.bf16.gmra.mxu0 %v2309
    %v2540 = vpop.f32.mrf.mxu0
    %v2541 = vadd.f32 %v2368, %v2540
    %v2542 = vpop.f32.mrf.mxu0
    %v2543 = vpop.f32.mrf.mxu0
    %v2544 = vadd.f32 %v2368, %v2543
    %v2545 = vpop.f32.mrf.mxu0
    %2546 = vmatprep.mubr.bf16.mxu0 %v2312
    %2547 = vmatmul.mubr.bf16.gmra.mxu0 %v2311
    %v2548 = vpop.f32.mrf.mxu0
    %v2549 = vadd.f32 %v2368, %v2548
    %v2550 = vpop.f32.mrf.mxu0
    %v2551 = vpop.f32.mrf.mxu0
    %v2552 = vadd.f32 %v2368, %v2551
    %v2553 = vpop.f32.mrf.mxu0
    %2554 = vmatprep.mubr.bf16.mxu0 %v2314
    %2555 = vmatmul.mubr.bf16.gmra.mxu0 %v2313
    %v2556 = vpop.f32.mrf.mxu0
    %v2557 = vadd.f32 %v2368, %v2556
    %v2558 = vpop.f32.mrf.mxu0
    %v2559 = vpop.f32.mrf.mxu0
    %v2560 = vadd.f32 %v2368, %v2559
    %v2561 = vpop.f32.mrf.mxu0
    %2562 = vmatprep.mubr.bf16.mxu0 %v2316
    %2563 = vmatmul.mubr.bf16.gmra.mxu0 %v2315
    %v2564 = vpop.f32.mrf.mxu0
    %v2565 = vadd.f32 %v2368, %v2564
    %v2566 = vpop.f32.mrf.mxu0
    %v2567 = vpop.f32.mrf.mxu0
    %v2568 = vadd.f32 %v2368, %v2567
    %v2569 = vpop.f32.mrf.mxu0
    %2570 = vmatprep.mubr.bf16.mxu0 %v2318
    %2571 = vmatmul.mubr.bf16.gmra.mxu0 %v2317
    %v2572 = vpop.f32.mrf.mxu0
    %v2573 = vadd.f32 %v2368, %v2572
    %v2574 = vpop.f32.mrf.mxu0
    %v2575 = vpop.f32.mrf.mxu0
    %v2576 = vadd.f32 %v2368, %v2575
    %v2577 = vpop.f32.mrf.mxu0
    %2578 = vmatprep.mubr.bf16.mxu0 %v2320
    %2579 = vmatmul.mubr.bf16.gmra.mxu0 %v2319
    %v2580 = vpop.f32.mrf.mxu0
    %v2581 = vadd.f32 %v2368, %v2580
    %v2582 = vpop.f32.mrf.mxu0
    %v2583 = vpop.f32.mrf.mxu0
    %v2584 = vadd.f32 %v2368, %v2583
    %v2585 = vpop.f32.mrf.mxu0
    %2586 = vmatprep.mubr.bf16.mxu0 %v2322
    %2587 = vmatmul.mubr.bf16.gmra.mxu0 %v2321
    %v2588 = vpop.f32.mrf.mxu0
    %v2589 = vadd.f32 %v2368, %v2588
    %v2590 = vpop.f32.mrf.mxu0
    %v2591 = vpop.f32.mrf.mxu0
    %v2592 = vadd.f32 %v2368, %v2591
    %v2593 = vpop.f32.mrf.mxu0
    %2594 = vmatprep.mubr.bf16.mxu0 %v2324
    %2595 = vmatmul.mubr.bf16.gmra.mxu0 %v2323
    %v2596 = vpop.f32.mrf.mxu0
    %v2597 = vadd.f32 %v2368, %v2596
    %v2598 = vpop.f32.mrf.mxu0
    %v2599 = vpop.f32.mrf.mxu0
    %v2600 = vadd.f32 %v2368, %v2599
    %v2601 = vpop.f32.mrf.mxu0
    %2602 = vmatprep.mubr.bf16.mxu0 %v2326
    %2603 = vmatmul.mubr.bf16.gmra.mxu0 %v2325
    %v2604 = vpop.f32.mrf.mxu0
    %v2605 = vadd.f32 %v2368, %v2604
    %v2606 = vpop.f32.mrf.mxu0
    %v2607 = vpop.f32.mrf.mxu0
    %v2608 = vadd.f32 %v2368, %v2607
    %v2609 = vpop.f32.mrf.mxu0
    %2610 = vmatprep.mubr.bf16.mxu0 %v2328
    %2611 = vmatmul.mubr.bf16.gmra.mxu0 %v2327
    %v2612 = vpop.f32.mrf.mxu0
    %v2613 = vadd.f32 %v2368, %v2612
    %v2614 = vpop.f32.mrf.mxu0
    %v2615 = vpop.f32.mrf.mxu0
    %v2616 = vadd.f32 %v2368, %v2615
    %v2617 = vpop.f32.mrf.mxu0
    %2618 = vmatprep.mubr.bf16.mxu0 %v2330
    %2619 = vmatmul.mubr.bf16.gmra.mxu0 %v2329
    %v2620 = vpop.f32.mrf.mxu0
    %v2621 = vadd.f32 %v2368, %v2620
    %v2622 = vpop.f32.mrf.mxu0
    %v2623 = vpop.f32.mrf.mxu0
    %v2624 = vadd.f32 %v2368, %v2623
    %v2625 = vpop.f32.mrf.mxu0
    %2626 = vdwg.mxu0
    %v2627 = vmax.f32 %v2501, 0.0
    %v2628 = vmax.f32 %v2504, 0.0
    %v2629 = vmax.f32 %v2509, 0.0
    %v2630 = vmax.f32 %v2512, 0.0
    %v2631 = vmax.f32 %v2517, 0.0
    %v2632 = vmax.f32 %v2520, 0.0
    %v2633 = vmax.f32 %v2525, 0.0
    %v2634 = vmax.f32 %v2528, 0.0
    %v2635 = vmax.f32 %v2533, 0.0
    %v2636 = vmax.f32 %v2536, 0.0
    %v2637 = vmax.f32 %v2541, 0.0
    %v2638 = vmax.f32 %v2544, 0.0
    %v2639 = vmax.f32 %v2549, 0.0
    %v2640 = vmax.f32 %v2552, 0.0
    %v2641 = vmax.f32 %v2557, 0.0
    %v2642 = vmax.f32 %v2560, 0.0
    %v2643 = vmax.f32 %v2565, 0.0
    %v2644 = vmax.f32 %v2568, 0.0
    %v2645 = vmax.f32 %v2573, 0.0
    %v2646 = vmax.f32 %v2576, 0.0
    %v2647 = vmax.f32 %v2581, 0.0
    %v2648 = vmax.f32 %v2584, 0.0
    %v2649 = vmax.f32 %v2589, 0.0
    %v2650 = vmax.f32 %v2592, 0.0
    %v2651 = vmax.f32 %v2597, 0.0
    %v2652 = vmax.f32 %v2600, 0.0
    %v2653 = vmax.f32 %v2605, 0.0
    %v2654 = vmax.f32 %v2608, 0.0
    %v2655 = vmax.f32 %v2613, 0.0
    %v2656 = vmax.f32 %v2616, 0.0
    %v2657 = vmax.f32 %v2621, 0.0
    %v2658 = vmax.f32 %v2624, 0.0
    %v2659 = vpack.c.bf16 %v2628, %v2627
    %v2660 = vpack.c.bf16 %v2630, %v2629
    %v2661 = vpack.c.bf16 %v2632, %v2631
    %v2662 = vpack.c.bf16 %v2634, %v2633
    %v2663 = vpack.c.bf16 %v2636, %v2635
    %v2664 = vpack.c.bf16 %v2638, %v2637
    %v2665 = vpack.c.bf16 %v2640, %v2639
    %v2666 = vpack.c.bf16 %v2642, %v2641
    %v2667 = vpack.c.bf16 %v2644, %v2643
    %v2668 = vpack.c.bf16 %v2646, %v2645
    %v2669 = vpack.c.bf16 %v2648, %v2647
    %v2670 = vpack.c.bf16 %v2650, %v2649
    %v2671 = vpack.c.bf16 %v2652, %v2651
    %v2672 = vpack.c.bf16 %v2654, %v2653
    %v2673 = vpack.c.bf16 %v2656, %v2655
    %v2674 = vpack.c.bf16 %v2658, %v2657
    %v2675 = vld [vmem:[%s5] sm:$0xf]
    %v2676 = vld [vmem:[%s5 + $0x4] sm:$0xf]
    %v2677 = vld [vmem:[%s5 + $0x8] sm:$0xf]
    %v2678 = vld [vmem:[%s5 + $0xc] sm:$0xf]
    %v2679 = vld [vmem:[%s5 + $0x10] sm:$0xf]
    %v2680 = vld [vmem:[%s5 + $0x14] sm:$0xf]
    %v2681 = vld [vmem:[%s5 + $0x18] sm:$0xf]
    %v2682 = vld [vmem:[%s5 + $0x1c] sm:$0xf]
    %v2683 = vld [vmem:[%s5 + $0x20] sm:$0xf]
    %v2684 = vld [vmem:[%s5 + $0x24] sm:$0xf]
    %v2685 = vld [vmem:[%s5 + $0x28] sm:$0xf]
    %v2686 = vld [vmem:[%s5 + $0x2c] sm:$0xf]
    %v2687 = vld [vmem:[%s5 + $0x30] sm:$0xf]
    %v2688 = vld [vmem:[%s5 + $0x34] sm:$0xf]
    %v2689 = vld [vmem:[%s5 + $0x38] sm:$0xf]
    %v2690 = vld [vmem:[%s5 + $0x3c] sm:$0xf]
    %v2691 = vld [vmem:[%s6] sm:$0x1]
    %v2693 = vlaneseq
    %v2694 = vshrl.u32 %v2693, 7
    %v2695 = vsub.s32 0, %v2694
    %v2696 = vrot.slane %v2691, %v2695
    %v2714 = vunpack.c.l.b16 %v2675
    %v2715 = vunpack.c.l.b16 %v2676
    %v2716 = vunpack.c.l.b16 %v2677
    %v2717 = vunpack.c.l.b16 %v2678
    %v2718 = vunpack.c.l.b16 %v2679
    %v2719 = vunpack.c.l.b16 %v2680
    %v2720 = vunpack.c.l.b16 %v2681
    %v2721 = vunpack.c.l.b16 %v2682
    %v2722 = vunpack.c.l.b16 %v2683
    %v2723 = vunpack.c.l.b16 %v2684
    %v2724 = vunpack.c.l.b16 %v2685
    %v2725 = vunpack.c.l.b16 %v2686
    %v2726 = vunpack.c.l.b16 %v2687
    %v2727 = vunpack.c.l.b16 %v2688
    %v2728 = vunpack.c.l.b16 %v2689
    %v2729 = vunpack.c.l.b16 %v2690
    %v2730 = vpack.c.b16 %v2715, %v2714
    %v2731 = vpack.c.b16 %v2717, %v2716
    %v2732 = vpack.c.b16 %v2719, %v2718
    %v2733 = vpack.c.b16 %v2721, %v2720
    %v2734 = vpack.c.b16 %v2723, %v2722
    %v2735 = vpack.c.b16 %v2725, %v2724
    %v2736 = vpack.c.b16 %v2727, %v2726
    %v2737 = vpack.c.b16 %v2729, %v2728
    %2746 = vmatprep.subr.bf16.mxu0 0
    %2747 = vmatpush1.bf16.msra.mxu0 %v2737
    %2748 = vmatprep.subr.bf16.mxu0 0
    %2749 = vmatpush1.bf16.msra.mxu0 %v2736
    %2750 = vmatprep.subr.bf16.mxu0 0
    %2751 = vmatpush1.bf16.msra.mxu0 %v2735
    %2752 = vmatprep.subr.bf16.mxu0 0
    %2753 = vmatpush1.bf16.msra.mxu0 %v2734
    %2754 = vmatprep.subr.bf16.mxu0 0
    %2755 = vmatpush1.bf16.msra.mxu0 %v2733
    %2756 = vmatprep.subr.bf16.mxu0 0
    %2757 = vmatpush1.bf16.msra.mxu0 %v2732
    %2758 = vmatprep.subr.bf16.mxu0 0
    %2759 = vmatpush1.bf16.msra.mxu0 %v2731
    %2760 = vmatprep.subr.bf16.mxu0 0
    %2761 = vmatpush1.bf16.msra.mxu0 %v2730
    %2762 = vmatprep.subr.bf16.mxu0 0
    %2763 = vmatpush2.bf16.msra.mxu0 0
    %2764 = vmatprep.subr.bf16.mxu0 0
    %2765 = vmatpush2.bf16.msra.mxu0 0
    %2766 = vmatprep.subr.bf16.mxu0 0
    %2767 = vmatpush2.bf16.msra.mxu0 0
    %2768 = vmatprep.subr.bf16.mxu0 0
    %2769 = vmatpush2.bf16.msra.mxu0 0
    %2770 = vmatprep.subr.bf16.mxu0 0
    %2771 = vmatpush2.bf16.msra.mxu0 0
    %2772 = vmatprep.subr.bf16.mxu0 0
    %2773 = vmatpush2.bf16.msra.mxu0 0
    %2774 = vmatprep.subr.bf16.mxu0 0
    %2775 = vmatpush2.bf16.msra.mxu0 0
    %2776 = vmatprep.subr.bf16.mxu0 0
    %2777 = vmatpush2.bf16.msra.mxu0 0
    %2778 = vmatprep.mubr.bf16.mxu0 0
    %2779 = vmatmul.mubr.bf16.gmra.mxu0 %v2659
    %v2780 = vpop.f32.mrf.mxu0
    %v2781 = vadd.f32 %v2696, %v2780
    %v2782 = vpop.f32.mrf.mxu0
    %v2783 = vpop.f32.mrf.mxu0
    %v2784 = vadd.f32 %v2696, %v2783
    %v2785 = vpop.f32.mrf.mxu0
    %2786 = vmatprep.mubr.bf16.mxu0 0
    %2787 = vmatmul.mubr.bf16.gmra.mxu0 %v2660
    %v2788 = vpop.f32.mrf.mxu0
    %v2789 = vadd.f32 %v2696, %v2788
    %v2790 = vpop.f32.mrf.mxu0
    %v2791 = vpop.f32.mrf.mxu0
    %v2792 = vadd.f32 %v2696, %v2791
    %v2793 = vpop.f32.mrf.mxu0
    %2794 = vmatprep.mubr.bf16.mxu0 0
    %2795 = vmatmul.mubr.bf16.gmra.mxu0 %v2661
    %v2796 = vpop.f32.mrf.mxu0
    %v2797 = vadd.f32 %v2696, %v2796
    %v2798 = vpop.f32.mrf.mxu0
    %v2799 = vpop.f32.mrf.mxu0
    %v2800 = vadd.f32 %v2696, %v2799
    %v2801 = vpop.f32.mrf.mxu0
    %2802 = vmatprep.mubr.bf16.mxu0 0
    %2803 = vmatmul.mubr.bf16.gmra.mxu0 %v2662
    %v2804 = vpop.f32.mrf.mxu0
    %v2805 = vadd.f32 %v2696, %v2804
    %v2806 = vpop.f32.mrf.mxu0
    %v2807 = vpop.f32.mrf.mxu0
    %v2808 = vadd.f32 %v2696, %v2807
    %v2809 = vpop.f32.mrf.mxu0
    %2810 = vmatprep.mubr.bf16.mxu0 0
    %2811 = vmatmul.mubr.bf16.gmra.mxu0 %v2663
    %v2812 = vpop.f32.mrf.mxu0
    %v2813 = vadd.f32 %v2696, %v2812
    %v2814 = vpop.f32.mrf.mxu0
    %v2815 = vpop.f32.mrf.mxu0
    %v2816 = vadd.f32 %v2696, %v2815
    %v2817 = vpop.f32.mrf.mxu0
    %2818 = vmatprep.mubr.bf16.mxu0 0
    %2819 = vmatmul.mubr.bf16.gmra.mxu0 %v2664
    %v2820 = vpop.f32.mrf.mxu0
    %v2821 = vadd.f32 %v2696, %v2820
    %v2822 = vpop.f32.mrf.mxu0
    %v2823 = vpop.f32.mrf.mxu0
    %v2824 = vadd.f32 %v2696, %v2823
    %v2825 = vpop.f32.mrf.mxu0
    %2826 = vmatprep.mubr.bf16.mxu0 0
    %2827 = vmatmul.mubr.bf16.gmra.mxu0 %v2665
    %v2828 = vpop.f32.mrf.mxu0
    %v2829 = vadd.f32 %v2696, %v2828
    %v2830 = vpop.f32.mrf.mxu0
    %v2831 = vpop.f32.mrf.mxu0
    %v2832 = vadd.f32 %v2696, %v2831
    %v2833 = vpop.f32.mrf.mxu0
    %2834 = vmatprep.mubr.bf16.mxu0 0
    %2835 = vmatmul.mubr.bf16.gmra.mxu0 %v2666
    %v2836 = vpop.f32.mrf.mxu0
    %v2837 = vadd.f32 %v2696, %v2836
    %v2838 = vpop.f32.mrf.mxu0
    %v2839 = vpop.f32.mrf.mxu0
    %v2840 = vadd.f32 %v2696, %v2839
    %v2841 = vpop.f32.mrf.mxu0
    %2842 = vmatprep.mubr.bf16.mxu0 0
    %2843 = vmatmul.mubr.bf16.gmra.mxu0 %v2667
    %v2844 = vpop.f32.mrf.mxu0
    %v2845 = vadd.f32 %v2696, %v2844
    %v2846 = vpop.f32.mrf.mxu0
    %v2847 = vpop.f32.mrf.mxu0
    %v2848 = vadd.f32 %v2696, %v2847
    %v2849 = vpop.f32.mrf.mxu0
    %2850 = vmatprep.mubr.bf16.mxu0 0
    %2851 = vmatmul.mubr.bf16.gmra.mxu0 %v2668
    %v2852 = vpop.f32.mrf.mxu0
    %v2853 = vadd.f32 %v2696, %v2852
    %v2854 = vpop.f32.mrf.mxu0
    %v2855 = vpop.f32.mrf.mxu0
    %v2856 = vadd.f32 %v2696, %v2855
    %v2857 = vpop.f32.mrf.mxu0
    %2858 = vmatprep.mubr.bf16.mxu0 0
    %2859 = vmatmul.mubr.bf16.gmra.mxu0 %v2669
    %v2860 = vpop.f32.mrf.mxu0
    %v2861 = vadd.f32 %v2696, %v2860
    %v2862 = vpop.f32.mrf.mxu0
    %v2863 = vpop.f32.mrf.mxu0
    %v2864 = vadd.f32 %v2696, %v2863
    %v2865 = vpop.f32.mrf.mxu0
    %2866 = vmatprep.mubr.bf16.mxu0 0
    %2867 = vmatmul.mubr.bf16.gmra.mxu0 %v2670
    %v2868 = vpop.f32.mrf.mxu0
    %v2869 = vadd.f32 %v2696, %v2868
    %v2870 = vpop.f32.mrf.mxu0
    %v2871 = vpop.f32.mrf.mxu0
    %v2872 = vadd.f32 %v2696, %v2871
    %v2873 = vpop.f32.mrf.mxu0
    %2874 = vmatprep.mubr.bf16.mxu0 0
    %2875 = vmatmul.mubr.bf16.gmra.mxu0 %v2671
    %v2876 = vpop.f32.mrf.mxu0
    %v2877 = vadd.f32 %v2696, %v2876
    %v2878 = vpop.f32.mrf.mxu0
    %v2879 = vpop.f32.mrf.mxu0
    %v2880 = vadd.f32 %v2696, %v2879
    %v2881 = vpop.f32.mrf.mxu0
    %2882 = vmatprep.mubr.bf16.mxu0 0
    %2883 = vmatmul.mubr.bf16.gmra.mxu0 %v2672
    %v2884 = vpop.f32.mrf.mxu0
    %v2885 = vadd.f32 %v2696, %v2884
    %v2886 = vpop.f32.mrf.mxu0
    %v2887 = vpop.f32.mrf.mxu0
    %v2888 = vadd.f32 %v2696, %v2887
    %v2889 = vpop.f32.mrf.mxu0
    %2890 = vmatprep.mubr.bf16.mxu0 0
    %2891 = vmatmul.mubr.bf16.gmra.mxu0 %v2673
    %v2892 = vpop.f32.mrf.mxu0
    %v2893 = vadd.f32 %v2696, %v2892
    %v2894 = vpop.f32.mrf.mxu0
    %v2895 = vpop.f32.mrf.mxu0
    %v2896 = vadd.f32 %v2696, %v2895
    %v2897 = vpop.f32.mrf.mxu0
    %2898 = vmatprep.mubr.bf16.mxu0 0
    %2899 = vmatmul.mubr.bf16.gmra.mxu0 %v2674
    %v2900 = vpop.f32.mrf.mxu0
    %v2901 = vadd.f32 %v2696, %v2900
    %v2902 = vpop.f32.mrf.mxu0
    %v2903 = vpop.f32.mrf.mxu0
    %v2904 = vadd.f32 %v2696, %v2903
    %v2905 = vpop.f32.mrf.mxu0
    %2906 = vdwg.mxu0
    %v2907 = vmax.f32 %v2781, 0.0
    %v2908 = vmax.f32 %v2784, 0.0
    %v2909 = vmax.f32 %v2789, 0.0
    %v2910 = vmax.f32 %v2792, 0.0
    %v2911 = vmax.f32 %v2797, 0.0
    %v2912 = vmax.f32 %v2800, 0.0
    %v2913 = vmax.f32 %v2805, 0.0
    %v2914 = vmax.f32 %v2808, 0.0
    %v2915 = vmax.f32 %v2813, 0.0
    %v2916 = vmax.f32 %v2816, 0.0
    %v2917 = vmax.f32 %v2821, 0.0
    %v2918 = vmax.f32 %v2824, 0.0
    %v2919 = vmax.f32 %v2829, 0.0
    %v2920 = vmax.f32 %v2832, 0.0
    %v2921 = vmax.f32 %v2837, 0.0
    %v2922 = vmax.f32 %v2840, 0.0
    %v2923 = vmax.f32 %v2845, 0.0
    %v2924 = vmax.f32 %v2848, 0.0
    %v2925 = vmax.f32 %v2853, 0.0
    %v2926 = vmax.f32 %v2856, 0.0
    %v2927 = vmax.f32 %v2861, 0.0
    %v2928 = vmax.f32 %v2864, 0.0
    %v2929 = vmax.f32 %v2869, 0.0
    %v2930 = vmax.f32 %v2872, 0.0
    %v2931 = vmax.f32 %v2877, 0.0
    %v2932 = vmax.f32 %v2880, 0.0
    %v2933 = vmax.f32 %v2885, 0.0
    %v2934 = vmax.f32 %v2888, 0.0
    %v2935 = vmax.f32 %v2893, 0.0
    %v2936 = vmax.f32 %v2896, 0.0
    %v2937 = vmax.f32 %v2901, 0.0
    %v2938 = vmax.f32 %v2904, 0.0
    %v2939 = vpack.c.bf16 %v2908, %v2907
    %v2940 = vpack.c.bf16 %v2910, %v2909
    %v2941 = vpack.c.bf16 %v2912, %v2911
    %v2942 = vpack.c.bf16 %v2914, %v2913
    %v2943 = vpack.c.bf16 %v2916, %v2915
    %v2944 = vpack.c.bf16 %v2918, %v2917
    %v2945 = vpack.c.bf16 %v2920, %v2919
    %v2946 = vpack.c.bf16 %v2922, %v2921
    %v2947 = vpack.c.bf16 %v2924, %v2923
    %v2948 = vpack.c.bf16 %v2926, %v2925
    %v2949 = vpack.c.bf16 %v2928, %v2927
    %v2950 = vpack.c.bf16 %v2930, %v2929
    %v2951 = vpack.c.bf16 %v2932, %v2931
    %v2952 = vpack.c.bf16 %v2934, %v2933
    %v2953 = vpack.c.bf16 %v2936, %v2935
    %v2954 = vpack.c.bf16 %v2938, %v2937
    %v2955 = vld [vmem:[%s7] sm:$0xf]
    %v2956 = vld [vmem:[%s7 + $0x4] sm:$0xf]
    %v2957 = vld [vmem:[%s7 + $0x8] sm:$0xf]
    %v2958 = vld [vmem:[%s7 + $0xc] sm:$0xf]
    %v2959 = vld [vmem:[%s7 + $0x10] sm:$0xf]
    %v2960 = vld [vmem:[%s7 + $0x14] sm:$0xf]
    %v2961 = vld [vmem:[%s7 + $0x18] sm:$0xf]
    %v2962 = vld [vmem:[%s7 + $0x1c] sm:$0xf]
    %v2963 = vld [vmem:[%s8] sm:$0x1]
    %v2965 = vlaneseq
    %v2966 = vshrl.u32 %v2965, 7
    %v2967 = vsub.s32 0, %v2966
    %v2968 = vrot.slane %v2963, %v2967
    %v2978 = vunpack.c.l.b16 %v2955
    %v2979 = vunpack.c.l.b16 %v2956
    %v2980 = vunpack.c.l.b16 %v2957
    %v2981 = vunpack.c.l.b16 %v2958
    %v2982 = vunpack.c.l.b16 %v2959
    %v2983 = vunpack.c.l.b16 %v2960
    %v2984 = vunpack.c.l.b16 %v2961
    %v2985 = vunpack.c.l.b16 %v2962
    %v2986 = vpack.c.b16 %v2979, %v2978
    %v2987 = vpack.c.b16 %v2981, %v2980
    %v2988 = vpack.c.b16 %v2983, %v2982
    %v2989 = vpack.c.b16 %v2985, %v2984
    %vm2994 = vcmask 523264
    %v2996 = vsel %vm2994, %v2939, 0
    %v2999 = vsel %vm2994, %v2940, 0
    %v3002 = vsel %vm2994, %v2941, 0
    %v3005 = vsel %vm2994, %v2942, 0
    %v3008 = vsel %vm2994, %v2943, 0
    %v3011 = vsel %vm2994, %v2944, 0
    %v3014 = vsel %vm2994, %v2945, 0
    %v3017 = vsel %vm2994, %v2946, 0
    %v3020 = vsel %vm2994, %v2947, 0
    %v3023 = vsel %vm2994, %v2948, 0
    %v3026 = vsel %vm2994, %v2949, 0
    %v3029 = vsel %vm2994, %v2950, 0
    %v3032 = vsel %vm2994, %v2951, 0
    %v3035 = vsel %vm2994, %v2952, 0
    %v3038 = vsel %vm2994, %v2953, 0
    %v3041 = vsel %vm2994, %v2954, 0
    %3043 = vmatprep.subr.bf16.mxu0 0
    %3044 = vmatpush1.bf16.msra.mxu0 0
    %3045 = vmatprep.subr.bf16.mxu0 0
    %3046 = vmatpush1.bf16.msra.mxu0 0
    %3047 = vmatprep.subr.bf16.mxu0 0
    %3048 = vmatpush1.bf16.msra.mxu0 0
    %3049 = vmatprep.subr.bf16.mxu0 0
    %3050 = vmatpush1.bf16.msra.mxu0 0
    %3051 = vmatprep.subr.bf16.mxu0 0
    %3052 = vmatpush1.bf16.msra.mxu0 %v2989
    %3053 = vmatprep.subr.bf16.mxu0 0
    %3054 = vmatpush1.bf16.msra.mxu0 %v2988
    %3055 = vmatprep.subr.bf16.mxu0 0
    %3056 = vmatpush1.bf16.msra.mxu0 %v2987
    %3057 = vmatprep.subr.bf16.mxu0 0
    %3058 = vmatpush1.bf16.msra.mxu0 %v2986
    %3059 = vmatprep.subr.bf16.mxu0 0
    %3060 = vmatpush2.bf16.msra.mxu0 0
    %3061 = vmatprep.subr.bf16.mxu0 0
    %3062 = vmatpush2.bf16.msra.mxu0 0
    %3063 = vmatprep.subr.bf16.mxu0 0
    %3064 = vmatpush2.bf16.msra.mxu0 0
    %3065 = vmatprep.subr.bf16.mxu0 0
    %3066 = vmatpush2.bf16.msra.mxu0 0
    %3067 = vmatprep.subr.bf16.mxu0 0
    %3068 = vmatpush2.bf16.msra.mxu0 0
    %3069 = vmatprep.subr.bf16.mxu0 0
    %3070 = vmatpush2.bf16.msra.mxu0 0
    %3071 = vmatprep.subr.bf16.mxu0 0
    %3072 = vmatpush2.bf16.msra.mxu0 0
    %3073 = vmatprep.subr.bf16.mxu0 0
    %3074 = vmatpush2.bf16.msra.mxu0 0
    %3075 = vmatprep.mubr.bf16.mxu0 0
    %3076 = vmatmul.mubr.bf16.gmra.mxu0 %v2996
    %v3077 = vpop.f32.mrf.mxu0
    %v3078 = vadd.f32 %v2968, %v3077
    %v3079 = vpop.f32.mrf.mxu0
    %v3080 = vpop.f32.mrf.mxu0
    %v3081 = vadd.f32 %v2968, %v3080
    %v3082 = vpop.f32.mrf.mxu0
    %3083 = vmatprep.mubr.bf16.mxu0 0
    %3084 = vmatmul.mubr.bf16.gmra.mxu0 %v2999
    %v3085 = vpop.f32.mrf.mxu0
    %v3086 = vadd.f32 %v2968, %v3085
    %v3087 = vpop.f32.mrf.mxu0
    %v3088 = vpop.f32.mrf.mxu0
    %v3089 = vadd.f32 %v2968, %v3088
    %v3090 = vpop.f32.mrf.mxu0
    %3091 = vmatprep.mubr.bf16.mxu0 0
    %3092 = vmatmul.mubr.bf16.gmra.mxu0 %v3002
    %v3093 = vpop.f32.mrf.mxu0
    %v3094 = vadd.f32 %v2968, %v3093
    %v3095 = vpop.f32.mrf.mxu0
    %v3096 = vpop.f32.mrf.mxu0
    %v3097 = vadd.f32 %v2968, %v3096
    %v3098 = vpop.f32.mrf.mxu0
    %3099 = vmatprep.mubr.bf16.mxu0 0
    %3100 = vmatmul.mubr.bf16.gmra.mxu0 %v3005
    %v3101 = vpop.f32.mrf.mxu0
    %v3102 = vadd.f32 %v2968, %v3101
    %v3103 = vpop.f32.mrf.mxu0
    %v3104 = vpop.f32.mrf.mxu0
    %v3105 = vadd.f32 %v2968, %v3104
    %v3106 = vpop.f32.mrf.mxu0
    %3107 = vmatprep.mubr.bf16.mxu0 0
    %3108 = vmatmul.mubr.bf16.gmra.mxu0 %v3008
    %v3109 = vpop.f32.mrf.mxu0
    %v3110 = vadd.f32 %v2968, %v3109
    %v3111 = vpop.f32.mrf.mxu0
    %v3112 = vpop.f32.mrf.mxu0
    %v3113 = vadd.f32 %v2968, %v3112
    %v3114 = vpop.f32.mrf.mxu0
    %3115 = vmatprep.mubr.bf16.mxu0 0
    %3116 = vmatmul.mubr.bf16.gmra.mxu0 %v3011
    %v3117 = vpop.f32.mrf.mxu0
    %v3118 = vadd.f32 %v2968, %v3117
    %v3119 = vpop.f32.mrf.mxu0
    %v3120 = vpop.f32.mrf.mxu0
    %v3121 = vadd.f32 %v2968, %v3120
    %v3122 = vpop.f32.mrf.mxu0
    %3123 = vmatprep.mubr.bf16.mxu0 0
    %3124 = vmatmul.mubr.bf16.gmra.mxu0 %v3014
    %v3125 = vpop.f32.mrf.mxu0
    %v3126 = vadd.f32 %v2968, %v3125
    %v3127 = vpop.f32.mrf.mxu0
    %v3128 = vpop.f32.mrf.mxu0
    %v3129 = vadd.f32 %v2968, %v3128
    %v3130 = vpop.f32.mrf.mxu0
    %3131 = vmatprep.mubr.bf16.mxu0 0
    %3132 = vmatmul.mubr.bf16.gmra.mxu0 %v3017
    %v3133 = vpop.f32.mrf.mxu0
    %v3134 = vadd.f32 %v2968, %v3133
    %v3135 = vpop.f32.mrf.mxu0
    %v3136 = vpop.f32.mrf.mxu0
    %v3137 = vadd.f32 %v2968, %v3136
    %v3138 = vpop.f32.mrf.mxu0
    %3139 = vmatprep.mubr.bf16.mxu0 0
    %3140 = vmatmul.mubr.bf16.gmra.mxu0 %v3020
    %v3141 = vpop.f32.mrf.mxu0
    %v3142 = vadd.f32 %v2968, %v3141
    %v3143 = vpop.f32.mrf.mxu0
    %v3144 = vpop.f32.mrf.mxu0
    %v3145 = vadd.f32 %v2968, %v3144
    %v3146 = vpop.f32.mrf.mxu0
    %3147 = vmatprep.mubr.bf16.mxu0 0
    %3148 = vmatmul.mubr.bf16.gmra.mxu0 %v3023
    %v3149 = vpop.f32.mrf.mxu0
    %v3150 = vadd.f32 %v2968, %v3149
    %v3151 = vpop.f32.mrf.mxu0
    %v3152 = vpop.f32.mrf.mxu0
    %v3153 = vadd.f32 %v2968, %v3152
    %v3154 = vpop.f32.mrf.mxu0
    %3155 = vmatprep.mubr.bf16.mxu0 0
    %3156 = vmatmul.mubr.bf16.gmra.mxu0 %v3026
    %v3157 = vpop.f32.mrf.mxu0
    %v3158 = vadd.f32 %v2968, %v3157
    %v3159 = vpop.f32.mrf.mxu0
    %v3160 = vpop.f32.mrf.mxu0
    %v3161 = vadd.f32 %v2968, %v3160
    %v3162 = vpop.f32.mrf.mxu0
    %3163 = vmatprep.mubr.bf16.mxu0 0
    %3164 = vmatmul.mubr.bf16.gmra.mxu0 %v3029
    %v3165 = vpop.f32.mrf.mxu0
    %v3166 = vadd.f32 %v2968, %v3165
    %v3167 = vpop.f32.mrf.mxu0
    %v3168 = vpop.f32.mrf.mxu0
    %v3169 = vadd.f32 %v2968, %v3168
    %v3170 = vpop.f32.mrf.mxu0
    %3171 = vmatprep.mubr.bf16.mxu0 0
    %3172 = vmatmul.mubr.bf16.gmra.mxu0 %v3032
    %v3173 = vpop.f32.mrf.mxu0
    %v3174 = vadd.f32 %v2968, %v3173
    %v3175 = vpop.f32.mrf.mxu0
    %v3176 = vpop.f32.mrf.mxu0
    %v3177 = vadd.f32 %v2968, %v3176
    %v3178 = vpop.f32.mrf.mxu0
    %3179 = vmatprep.mubr.bf16.mxu0 0
    %3180 = vmatmul.mubr.bf16.gmra.mxu0 %v3035
    %v3181 = vpop.f32.mrf.mxu0
    %v3182 = vadd.f32 %v2968, %v3181
    %v3183 = vpop.f32.mrf.mxu0
    %v3184 = vpop.f32.mrf.mxu0
    %v3185 = vadd.f32 %v2968, %v3184
    %v3186 = vpop.f32.mrf.mxu0
    %3187 = vmatprep.mubr.bf16.mxu0 0
    %3188 = vmatmul.mubr.bf16.gmra.mxu0 %v3038
    %v3189 = vpop.f32.mrf.mxu0
    %v3190 = vadd.f32 %v2968, %v3189
    %v3191 = vpop.f32.mrf.mxu0
    %v3192 = vpop.f32.mrf.mxu0
    %v3193 = vadd.f32 %v2968, %v3192
    %v3194 = vpop.f32.mrf.mxu0
    %3195 = vmatprep.mubr.bf16.mxu0 0
    %3196 = vmatmul.mubr.bf16.gmra.mxu0 %v3041
    %v3197 = vpop.f32.mrf.mxu0
    %v3198 = vadd.f32 %v2968, %v3197
    %v3199 = vpop.f32.mrf.mxu0
    %v3200 = vpop.f32.mrf.mxu0
    %v3201 = vadd.f32 %v2968, %v3200
    %v3202 = vpop.f32.mrf.mxu0
    %3203 = vdwg.mxu0
    %3204 = vmax.xlane.f32.xlu0 %v3078
    %v3205 = vpop.xlane.xlu0 %3204
    %3206 = vmax.xlane.f32.xlu0 %v3081
    %v3207 = vpop.xlane.xlu0 %3206
    %3208 = vmax.xlane.f32.xlu0 %v3086
    %v3209 = vpop.xlane.xlu0 %3208
    %3210 = vmax.xlane.f32.xlu0 %v3089
    %v3211 = vpop.xlane.xlu0 %3210
    %3212 = vmax.xlane.f32.xlu0 %v3094
    %v3213 = vpop.xlane.xlu0 %3212
    %3214 = vmax.xlane.f32.xlu0 %v3097
    %v3215 = vpop.xlane.xlu0 %3214
    %3216 = vmax.xlane.f32.xlu0 %v3102
    %v3217 = vpop.xlane.xlu0 %3216
    %3218 = vmax.xlane.f32.xlu0 %v3105
    %v3219 = vpop.xlane.xlu0 %3218
    %3220 = vmax.xlane.f32.xlu0 %v3110
    %v3221 = vpop.xlane.xlu0 %3220
    %3222 = vmax.xlane.f32.xlu0 %v3113
    %v3223 = vpop.xlane.xlu0 %3222
    %3224 = vmax.xlane.f32.xlu0 %v3118
    %v3225 = vpop.xlane.xlu0 %3224
    %3226 = vmax.xlane.f32.xlu0 %v3121
    %v3227 = vpop.xlane.xlu0 %3226
    %3228 = vmax.xlane.f32.xlu0 %v3126
    %v3229 = vpop.xlane.xlu0 %3228
    %3230 = vmax.xlane.f32.xlu0 %v3129
    %v3231 = vpop.xlane.xlu0 %3230
    %3232 = vmax.xlane.f32.xlu0 %v3134
    %v3233 = vpop.xlane.xlu0 %3232
    %3234 = vmax.xlane.f32.xlu0 %v3137
    %v3235 = vpop.xlane.xlu0 %3234
    %3236 = vmax.xlane.f32.xlu0 %v3142
    %v3237 = vpop.xlane.xlu0 %3236
    %3238 = vmax.xlane.f32.xlu0 %v3145
    %v3239 = vpop.xlane.xlu0 %3238
    %3240 = vmax.xlane.f32.xlu0 %v3150
    %v3241 = vpop.xlane.xlu0 %3240
    %3242 = vmax.xlane.f32.xlu0 %v3153
    %v3243 = vpop.xlane.xlu0 %3242
    %3244 = vmax.xlane.f32.xlu0 %v3158
    %v3245 = vpop.xlane.xlu0 %3244
    %3246 = vmax.xlane.f32.xlu0 %v3161
    %v3247 = vpop.xlane.xlu0 %3246
    %3248 = vmax.xlane.f32.xlu0 %v3166
    %v3249 = vpop.xlane.xlu0 %3248
    %3250 = vmax.xlane.f32.xlu0 %v3169
    %v3251 = vpop.xlane.xlu0 %3250
    %3252 = vmax.xlane.f32.xlu0 %v3174
    %v3253 = vpop.xlane.xlu0 %3252
    %3254 = vmax.xlane.f32.xlu0 %v3177
    %v3255 = vpop.xlane.xlu0 %3254
    %3256 = vmax.xlane.f32.xlu0 %v3182
    %v3257 = vpop.xlane.xlu0 %3256
    %3258 = vmax.xlane.f32.xlu0 %v3185
    %v3259 = vpop.xlane.xlu0 %3258
    %3260 = vmax.xlane.f32.xlu0 %v3190
    %v3261 = vpop.xlane.xlu0 %3260
    %3262 = vmax.xlane.f32.xlu0 %v3193
    %v3263 = vpop.xlane.xlu0 %3262
    %3264 = vmax.xlane.f32.xlu0 %v3198
    %v3265 = vpop.xlane.xlu0 %3264
    %3266 = vmax.xlane.f32.xlu0 %v3201
    %v3267 = vpop.xlane.xlu0 %3266
    %v3268 = vsub.f32 %v3078, %v3205
    %v3269 = vsub.f32 %v3081, %v3207
    %v3270 = vsub.f32 %v3086, %v3209
    %v3271 = vsub.f32 %v3089, %v3211
    %v3272 = vsub.f32 %v3094, %v3213
    %v3273 = vsub.f32 %v3097, %v3215
    %v3274 = vsub.f32 %v3102, %v3217
    %v3275 = vsub.f32 %v3105, %v3219
    %v3276 = vsub.f32 %v3110, %v3221
    %v3277 = vsub.f32 %v3113, %v3223
    %v3278 = vsub.f32 %v3118, %v3225
    %v3279 = vsub.f32 %v3121, %v3227
    %v3280 = vsub.f32 %v3126, %v3229
    %v3281 = vsub.f32 %v3129, %v3231
    %v3282 = vsub.f32 %v3134, %v3233
    %v3283 = vsub.f32 %v3137, %v3235
    %v3284 = vsub.f32 %v3142, %v3237
    %v3285 = vsub.f32 %v3145, %v3239
    %v3286 = vsub.f32 %v3150, %v3241
    %v3287 = vsub.f32 %v3153, %v3243
    %v3288 = vsub.f32 %v3158, %v3245
    %v3289 = vsub.f32 %v3161, %v3247
    %v3290 = vsub.f32 %v3166, %v3249
    %v3291 = vsub.f32 %v3169, %v3251
    %v3292 = vsub.f32 %v3174, %v3253
    %v3293 = vsub.f32 %v3177, %v3255
    %v3294 = vsub.f32 %v3182, %v3257
    %v3295 = vsub.f32 %v3185, %v3259
    %v3296 = vsub.f32 %v3190, %v3261
    %v3297 = vsub.f32 %v3193, %v3263
    %v3298 = vsub.f32 %v3198, %v3265
    %v3299 = vsub.f32 %v3201, %v3267
    %v3300 = vmul.f32 %v3268, 1.442695
    %v3301 = vpow.pop %v3300
    %v3302 = vmul.f32 %v3269, 1.442695
    %v3303 = vpow.pop %v3302
    %v3304 = vmul.f32 %v3270, 1.442695
    %v3305 = vpow.pop %v3304
    %v3306 = vmul.f32 %v3271, 1.442695
    %v3307 = vpow.pop %v3306
    %v3308 = vmul.f32 %v3272, 1.442695
    %v3309 = vpow.pop %v3308
    %v3310 = vmul.f32 %v3273, 1.442695
    %v3311 = vpow.pop %v3310
    %v3312 = vmul.f32 %v3274, 1.442695
    %v3313 = vpow.pop %v3312
    %v3314 = vmul.f32 %v3275, 1.442695
    %v3315 = vpow.pop %v3314
    %v3316 = vmul.f32 %v3276, 1.442695
    %v3317 = vpow.pop %v3316
    %v3318 = vmul.f32 %v3277, 1.442695
    %v3319 = vpow.pop %v3318
    %v3320 = vmul.f32 %v3278, 1.442695
    %v3321 = vpow.pop %v3320
    %v3322 = vmul.f32 %v3279, 1.442695
    %v3323 = vpow.pop %v3322
    %v3324 = vmul.f32 %v3280, 1.442695
    %v3325 = vpow.pop %v3324
    %v3326 = vmul.f32 %v3281, 1.442695
    %v3327 = vpow.pop %v3326
    %v3328 = vmul.f32 %v3282, 1.442695
    %v3329 = vpow.pop %v3328
    %v3330 = vmul.f32 %v3283, 1.442695
    %v3331 = vpow.pop %v3330
    %v3332 = vmul.f32 %v3284, 1.442695
    %v3333 = vpow.pop %v3332
    %v3334 = vmul.f32 %v3285, 1.442695
    %v3335 = vpow.pop %v3334
    %v3336 = vmul.f32 %v3286, 1.442695
    %v3337 = vpow.pop %v3336
    %v3338 = vmul.f32 %v3287, 1.442695
    %v3339 = vpow.pop %v3338
    %v3340 = vmul.f32 %v3288, 1.442695
    %v3341 = vpow.pop %v3340
    %v3342 = vmul.f32 %v3289, 1.442695
    %v3343 = vpow.pop %v3342
    %v3344 = vmul.f32 %v3290, 1.442695
    %v3345 = vpow.pop %v3344
    %v3346 = vmul.f32 %v3291, 1.442695
    %v3347 = vpow.pop %v3346
    %v3348 = vmul.f32 %v3292, 1.442695
    %v3349 = vpow.pop %v3348
    %v3350 = vmul.f32 %v3293, 1.442695
    %v3351 = vpow.pop %v3350
    %v3352 = vmul.f32 %v3294, 1.442695
    %v3353 = vpow.pop %v3352
    %v3354 = vmul.f32 %v3295, 1.442695
    %v3355 = vpow.pop %v3354
    %v3356 = vmul.f32 %v3296, 1.442695
    %v3357 = vpow.pop %v3356
    %v3358 = vmul.f32 %v3297, 1.442695
    %v3359 = vpow.pop %v3358
    %v3360 = vmul.f32 %v3298, 1.442695
    %v3361 = vpow.pop %v3360
    %v3362 = vmul.f32 %v3299, 1.442695
    %v3363 = vpow.pop %v3362
    %3364 = vadd.xlane.f32.xlu0 %v3301
    %v3365 = vpop.xlane.xlu0 %3364
    %3366 = vadd.xlane.f32.xlu0 %v3303
    %v3367 = vpop.xlane.xlu0 %3366
    %3368 = vadd.xlane.f32.xlu0 %v3305
    %v3369 = vpop.xlane.xlu0 %3368
    %3370 = vadd.xlane.f32.xlu0 %v3307
    %v3371 = vpop.xlane.xlu0 %3370
    %3372 = vadd.xlane.f32.xlu0 %v3309
    %v3373 = vpop.xlane.xlu0 %3372
    %3374 = vadd.xlane.f32.xlu0 %v3311
    %v3375 = vpop.xlane.xlu0 %3374
    %3376 = vadd.xlane.f32.xlu0 %v3313
    %v3377 = vpop.xlane.xlu0 %3376
    %3378 = vadd.xlane.f32.xlu0 %v3315
    %v3379 = vpop.xlane.xlu0 %3378
    %3380 = vadd.xlane.f32.xlu0 %v3317
    %v3381 = vpop.xlane.xlu0 %3380
    %3382 = vadd.xlane.f32.xlu0 %v3319
    %v3383 = vpop.xlane.xlu0 %3382
    %3384 = vadd.xlane.f32.xlu0 %v3321
    %v3385 = vpop.xlane.xlu0 %3384
    %3386 = vadd.xlane.f32.xlu0 %v3323
    %v3387 = vpop.xlane.xlu0 %3386
    %3388 = vadd.xlane.f32.xlu0 %v3325
    %v3389 = vpop.xlane.xlu0 %3388
    %3390 = vadd.xlane.f32.xlu0 %v3327
    %v3391 = vpop.xlane.xlu0 %3390
    %3392 = vadd.xlane.f32.xlu0 %v3329
    %v3393 = vpop.xlane.xlu0 %3392
    %3394 = vadd.xlane.f32.xlu0 %v3331
    %v3395 = vpop.xlane.xlu0 %3394
    %3396 = vadd.xlane.f32.xlu0 %v3333
    %v3397 = vpop.xlane.xlu0 %3396
    %3398 = vadd.xlane.f32.xlu0 %v3335
    %v3399 = vpop.xlane.xlu0 %3398
    %3400 = vadd.xlane.f32.xlu0 %v3337
    %v3401 = vpop.xlane.xlu0 %3400
    %3402 = vadd.xlane.f32.xlu0 %v3339
    %v3403 = vpop.xlane.xlu0 %3402
    %3404 = vadd.xlane.f32.xlu0 %v3341
    %v3405 = vpop.xlane.xlu0 %3404
    %3406 = vadd.xlane.f32.xlu0 %v3343
    %v3407 = vpop.xlane.xlu0 %3406
    %3408 = vadd.xlane.f32.xlu0 %v3345
    %v3409 = vpop.xlane.xlu0 %3408
    %3410 = vadd.xlane.f32.xlu0 %v3347
    %v3411 = vpop.xlane.xlu0 %3410
    %3412 = vadd.xlane.f32.xlu0 %v3349
    %v3413 = vpop.xlane.xlu0 %3412
    %3414 = vadd.xlane.f32.xlu0 %v3351
    %v3415 = vpop.xlane.xlu0 %3414
    %3416 = vadd.xlane.f32.xlu0 %v3353
    %v3417 = vpop.xlane.xlu0 %3416
    %3418 = vadd.xlane.f32.xlu0 %v3355
    %v3419 = vpop.xlane.xlu0 %3418
    %3420 = vadd.xlane.f32.xlu0 %v3357
    %v3421 = vpop.xlane.xlu0 %3420
    %3422 = vadd.xlane.f32.xlu0 %v3359
    %v3423 = vpop.xlane.xlu0 %3422
    %3424 = vadd.xlane.f32.xlu0 %v3361
    %v3425 = vpop.xlane.xlu0 %3424
    %3426 = vadd.xlane.f32.xlu0 %v3363
    %v3427 = vpop.xlane.xlu0 %3426
    %v3428 = vlog2.pop %v3365
    %v3429 = vmul.f32 %v3428, 0.6931472
    %v3430 = vlog2.pop %v3367
    %v3431 = vmul.f32 %v3430, 0.6931472
    %v3432 = vlog2.pop %v3369
    %v3433 = vmul.f32 %v3432, 0.6931472
    %v3434 = vlog2.pop %v3371
    %v3435 = vmul.f32 %v3434, 0.6931472
    %v3436 = vlog2.pop %v3373
    %v3437 = vmul.f32 %v3436, 0.6931472
    %v3438 = vlog2.pop %v3375
    %v3439 = vmul.f32 %v3438, 0.6931472
    %v3440 = vlog2.pop %v3377
    %v3441 = vmul.f32 %v3440, 0.6931472
    %v3442 = vlog2.pop %v3379
    %v3443 = vmul.f32 %v3442, 0.6931472
    %v3444 = vlog2.pop %v3381
    %v3445 = vmul.f32 %v3444, 0.6931472
    %v3446 = vlog2.pop %v3383
    %v3447 = vmul.f32 %v3446, 0.6931472
    %v3448 = vlog2.pop %v3385
    %v3449 = vmul.f32 %v3448, 0.6931472
    %v3450 = vlog2.pop %v3387
    %v3451 = vmul.f32 %v3450, 0.6931472
    %v3452 = vlog2.pop %v3389
    %v3453 = vmul.f32 %v3452, 0.6931472
    %v3454 = vlog2.pop %v3391
    %v3455 = vmul.f32 %v3454, 0.6931472
    %v3456 = vlog2.pop %v3393
    %v3457 = vmul.f32 %v3456, 0.6931472
    %v3458 = vlog2.pop %v3395
    %v3459 = vmul.f32 %v3458, 0.6931472
    %v3460 = vlog2.pop %v3397
    %v3461 = vmul.f32 %v3460, 0.6931472
    %v3462 = vlog2.pop %v3399
    %v3463 = vmul.f32 %v3462, 0.6931472
    %v3464 = vlog2.pop %v3401
    %v3465 = vmul.f32 %v3464, 0.6931472
    %v3466 = vlog2.pop %v3403
    %v3467 = vmul.f32 %v3466, 0.6931472
    %v3468 = vlog2.pop %v3405
    %v3469 = vmul.f32 %v3468, 0.6931472
    %v3470 = vlog2.pop %v3407
    %v3471 = vmul.f32 %v3470, 0.6931472
    %v3472 = vlog2.pop %v3409
    %v3473 = vmul.f32 %v3472, 0.6931472
    %v3474 = vlog2.pop %v3411
    %v3475 = vmul.f32 %v3474, 0.6931472
    %v3476 = vlog2.pop %v3413
    %v3477 = vmul.f32 %v3476, 0.6931472
    %v3478 = vlog2.pop %v3415
    %v3479 = vmul.f32 %v3478, 0.6931472
    %v3480 = vlog2.pop %v3417
    %v3481 = vmul.f32 %v3480, 0.6931472
    %v3482 = vlog2.pop %v3419
    %v3483 = vmul.f32 %v3482, 0.6931472
    %v3484 = vlog2.pop %v3421
    %v3485 = vmul.f32 %v3484, 0.6931472
    %v3486 = vlog2.pop %v3423
    %v3487 = vmul.f32 %v3486, 0.6931472
    %v3488 = vlog2.pop %v3425
    %v3489 = vmul.f32 %v3488, 0.6931472
    %v3490 = vlog2.pop %v3427
    %v3491 = vmul.f32 %v3490, 0.6931472
    %v3492 = vsub.f32 %v3268, %v3429
    %v3493 = vsub.f32 %v3269, %v3431
    %v3494 = vsub.f32 %v3270, %v3433
    %v3495 = vsub.f32 %v3271, %v3435
    %v3496 = vsub.f32 %v3272, %v3437
    %v3497 = vsub.f32 %v3273, %v3439
    %v3498 = vsub.f32 %v3274, %v3441
    %v3499 = vsub.f32 %v3275, %v3443
    %v3500 = vsub.f32 %v3276, %v3445
    %v3501 = vsub.f32 %v3277, %v3447
    %v3502 = vsub.f32 %v3278, %v3449
    %v3503 = vsub.f32 %v3279, %v3451
    %v3504 = vsub.f32 %v3280, %v3453
    %v3505 = vsub.f32 %v3281, %v3455
    %v3506 = vsub.f32 %v3282, %v3457
    %v3507 = vsub.f32 %v3283, %v3459
    %v3508 = vsub.f32 %v3284, %v3461
    %v3509 = vsub.f32 %v3285, %v3463
    %v3510 = vsub.f32 %v3286, %v3465
    %v3511 = vsub.f32 %v3287, %v3467
    %v3512 = vsub.f32 %v3288, %v3469
    %v3513 = vsub.f32 %v3289, %v3471
    %v3514 = vsub.f32 %v3290, %v3473
    %v3515 = vsub.f32 %v3291, %v3475
    %v3516 = vsub.f32 %v3292, %v3477
    %v3517 = vsub.f32 %v3293, %v3479
    %v3518 = vsub.f32 %v3294, %v3481
    %v3519 = vsub.f32 %v3295, %v3483
    %v3520 = vsub.f32 %v3296, %v3485
    %v3521 = vsub.f32 %v3297, %v3487
    %v3522 = vsub.f32 %v3298, %v3489
    %v3523 = vsub.f32 %v3299, %v3491
    %3524 = vst [vmem:[#allocation8] sm:$0xff] %v3492
    %3525 = vst [vmem:[#allocation8 + $0x8] sm:$0xff] %v3493
    %3526 = vst [vmem:[#allocation8 + $0x10] sm:$0xff] %v3494
    %3527 = vst [vmem:[#allocation8 + $0x18] sm:$0xff] %v3495
    %3528 = vst [vmem:[#allocation8 + $0x20] sm:$0xff] %v3496
    %3529 = vst [vmem:[#allocation8 + $0x28] sm:$0xff] %v3497
    %3530 = vst [vmem:[#allocation8 + $0x30] sm:$0xff] %v3498
    %3531 = vst [vmem:[#allocation8 + $0x38] sm:$0xff] %v3499
    %3532 = vst [vmem:[#allocation8 + $0x40] sm:$0xff] %v3500
    %3533 = vst [vmem:[#allocation8 + $0x48] sm:$0xff] %v3501
    %3534 = vst [vmem:[#allocation8 + $0x50] sm:$0xff] %v3502
    %3535 = vst [vmem:[#allocation8 + $0x58] sm:$0xff] %v3503
    %3536 = vst [vmem:[#allocation8 + $0x60] sm:$0xff] %v3504
    %3537 = vst [vmem:[#allocation8 + $0x68] sm:$0xff] %v3505
    %3538 = vst [vmem:[#allocation8 + $0x70] sm:$0xff] %v3506
    %3539 = vst [vmem:[#allocation8 + $0x78] sm:$0xff] %v3507
    %3540 = vst [vmem:[#allocation8 + $0x80] sm:$0xff] %v3508
    %3541 = vst [vmem:[#allocation8 + $0x88] sm:$0xff] %v3509
    %3542 = vst [vmem:[#allocation8 + $0x90] sm:$0xff] %v3510
    %3543 = vst [vmem:[#allocation8 + $0x98] sm:$0xff] %v3511
    %3544 = vst [vmem:[#allocation8 + $0xa0] sm:$0xff] %v3512
    %3545 = vst [vmem:[#allocation8 + $0xa8] sm:$0xff] %v3513
    %3546 = vst [vmem:[#allocation8 + $0xb0] sm:$0xff] %v3514
    %3547 = vst [vmem:[#allocation8 + $0xb8] sm:$0xff] %v3515
    %3548 = vst [vmem:[#allocation8 + $0xc0] sm:$0xff] %v3516
    %3549 = vst [vmem:[#allocation8 + $0xc8] sm:$0xff] %v3517
    %3550 = vst [vmem:[#allocation8 + $0xd0] sm:$0xff] %v3518
    %3551 = vst [vmem:[#allocation8 + $0xd8] sm:$0xff] %v3519
    %3552 = vst [vmem:[#allocation8 + $0xe0] sm:$0xff] %v3520
    %3553 = vst [vmem:[#allocation8 + $0xe8] sm:$0xff] %v3521
    %3554 = vst [vmem:[#allocation8 + $0xf0] sm:$0xff] %v3522
    %3555 = vst [vmem:[#allocation8 + $0xf8] sm:$0xff] %v3523
    // Predicated region
    $region50: #{tpu_custom_call.1} parent=1 // pred_check
      _
    $region51: #{tpu_custom_call.1} parent=1 // pred_check_branch
      %3557 = sbr.rel (0) target = $region53
    $region52: #{tpu_custom_call.1} parent=1 // pred_region
      %s3559 = ssub.s32 4096, 4096
      %3560 = vsyncadd [#allocation4], %s3559
      %s3561 = sshll.u32 [#allocation8], 4
      %s3562 = int_to_ptr.vmem [resolvable:$true] %s3561
      %3567 = dma.vmem_to_hbm [thread:$0]  %s3562, 4096, %s9, [#allocation4], 128, 128, 8
    $region53: #{tpu_custom_call.1} parent=1 // pred_fallthru
      _
    // Predicated region
    $region54: #{tpu_custom_call.1} parent=1 // pred_check
      _
    $region55: #{tpu_custom_call.1} parent=1 // pred_check_branch
      %3569 = sbr.rel (0) target = $region57
    $region56: #{tpu_custom_call.1} parent=1 // pred_region
      %3570 = dma.done [#allocation4], 4096
    $region57: #{tpu_custom_call.1} parent=1 // pred_fallthru
      _
    %3571 = vsyncpa [#allocation3], 1
    %3572 = vsyncpa [#allocation6], 1
    %3573 = vsyncpa [#allocation4], 1

</llo_original>
